<compile_context>
chip_gen: v6e
topology: v6e:2x2x1
jax: 0.10.0
libtpu: 0.0.40
codegen_flags: <defaults>
</compile_context>

<pallas_src>
import functools

import jax
import jax.numpy as jnp
from jax import lax
from jax.experimental import pallas as pl
from jax.experimental.pallas import tpu as pltpu


def _round_up(x, m):
    return ((x + m - 1) // m) * m


# ----------------------------------------------------------------------------
# Fused kernel: backbone stand-in (conv-as-matmul + swish + GAP) + MLP head.
# Processes one batch tile of `bt` images per grid step.
# ----------------------------------------------------------------------------
def fused_kernel(patches_ref, w_conv_ref, b_conv_ref,
                 w1_ref, b1_ref, w2_ref, b2_ref, w3_ref, b3_ref,
                 m1_ref, m2_ref, out_ref, *, bt, p):
    # --- Backbone: stem conv over im2col patches, swish, global avg pool. ---
    x = patches_ref[...]                                          # (bt*p, K)
    h = jnp.dot(x, w_conv_ref[...], preferred_element_type=jnp.float32)
    h = h + b_conv_ref[...]
    h = h * jax.nn.sigmoid(h)                                     # swish (EUP)
    cf = h.shape[-1]
    # GAP over the p spatial positions of each image -> (bt, CF)
    feats = jnp.sum(h.reshape(bt, p, cf), axis=1) * (1.0 / p)

    # --- MLP head: linear1 -> dropout -> relu -> linear2 -> dropout -> relu
    #     -> linear3.  Masks are 0/1 floats; 2.0 = 1/(1-p) for p=0.5. ---
    h1 = jnp.dot(feats, w1_ref[...], preferred_element_type=jnp.float32)
    h1 = h1 + b1_ref[...]
    h1 = jnp.maximum(h1 * m1_ref[...] * 2.0, 0.0)                 # relu(dropout(.))

    h2 = jnp.dot(h1, w2_ref[...], preferred_element_type=jnp.float32)
    h2 = h2 + b2_ref[...]
    h2 = jnp.maximum(h2 * m2_ref[...] * 2.0, 0.0)

    out_ref[...] = jnp.dot(h2, w3_ref[...],
                           preferred_element_type=jnp.float32) + b3_ref[...]


def fused_forward(patches2d, params, m1, m2, *, bt, p, n_pad):
    k_pad = patches2d.shape[-1]
    h1p = params["w1"].shape[1]
    h2p = params["w2"].shape[1]
    outp = params["w3"].shape[1]
    rows = bt * p
    n_tiles = n_pad // bt

    def fixed(shape):
        return pl.BlockSpec(shape, lambda i, _s=shape: tuple(0 for _ in _s))

    kernel = functools.partial(fused_kernel, bt=bt, p=p)

    return pl.pallas_call(
        kernel,
        out_shape=jax.ShapeDtypeStruct((n_pad, outp), jnp.float32),
        grid=(n_tiles,),
        in_specs=[
            pl.BlockSpec((rows, k_pad), lambda i: (i, 0)),        # patch rows
            fixed(params["w_conv"].shape),
            fixed(params["b_conv"].shape),
            fixed(params["w1"].shape),
            fixed(params["b1"].shape),
            fixed(params["w2"].shape),
            fixed(params["b2"].shape),
            fixed(params["w3"].shape),
            fixed(params["b3"].shape),
            pl.BlockSpec((bt, h1p), lambda i: (i, 0)),            # dropout mask 1
            pl.BlockSpec((bt, h2p), lambda i: (i, 0)),            # dropout mask 2
        ],
        out_specs=pl.BlockSpec((bt, outp), lambda i: (i, 0)),
        compiler_params=pltpu.CompilerParams(
            dimension_semantics=("parallel",)),
    )(patches2d, params["w_conv"], params["b_conv"],
      params["w1"], params["b1"], params["w2"], params["b2"],
      params["w3"], params["b3"], m1, m2)


# ----------------------------------------------------------------------------
# Full forward.  Glue in plain JAX: NHWC im2col (feature axis last, no big
# transpose), zero-padding to lane-friendly widths, dropout mask generation.
# ----------------------------------------------------------------------------
def full_efficientnet_dropout_forward(x_nchw, params, dropout_key, *,
                                      output_dim, batch_tile=8):
    n = x_nchw.shape[0]
    # NHWC so the im2col feature (K) axis lands on the lane axis directly;
    # only the small input image is transposed, never the 9x larger patches.
    x_nhwc = jnp.transpose(x_nchw, (0, 2, 3, 1))
    patches = lax.conv_general_dilated_patches(
        x_nhwc, filter_shape=(3, 3), window_strides=(2, 2),
        padding=((1, 1), (1, 1)),
        dimension_numbers=("NHWC", "HWIO", "NHWC"))               # (N,Ho,Wo,C*9)
    _, ho, wo, k0 = patches.shape
    p = ho * wo

    k_pad = params["w_conv"].shape[0]                             # 128
    n_pad = _round_up(max(n, batch_tile), batch_tile)

    # Pad K -> k_pad lanes and batch -> n_pad rows (zero-padded, inert math),
    # then flatten to a 2-D (n_pad*P, k_pad) slab for clean (8,128) tiling.
    patches_p = jnp.zeros((n_pad, p, k_pad), jnp.float32)
    patches_p = patches_p.at[:n, :, :k0].set(patches.reshape(n, p, k0))
    patches2d = patches_p.reshape(n_pad * p, k_pad)

    # Per-row dropout keep-masks (p = 0.5, training mode).
    k1, k2 = jax.random.split(dropout_key)
    h1p = params["w1"].shape[1]
    h2p = params["w2"].shape[1]
    m1 = jax.random.bernoulli(k1, 0.5, (n_pad, h1p)).astype(jnp.float32)
    m2 = jax.random.bernoulli(k2, 0.5, (n_pad, h2p)).astype(jnp.float32)

    out = fused_forward(patches2d, params, m1, m2,
                        bt=batch_tile, p=p, n_pad=n_pad)
    return out[:n, :output_dim]


# ----------------------------------------------------------------------------
# Deterministic parameters (PyTorch-style uniform(-1/sqrt(fan_in))), zero-
# padded to lane-friendly widths.  Zero bias padding keeps padded lanes dead.
# ----------------------------------------------------------------------------
def make_params(key, in_channels, fc_in_features, output_dim):
    ks = jax.random.split(key, 8)

    def init(k, shape, fan_in):
        bound = 1.0 / (fan_in ** 0.5)
        return jax.random.uniform(k, shape, jnp.float32, -bound, bound)

    def pad_to(a, shape):
        out = jnp.zeros(shape, jnp.float32)
        return out.at[tuple(slice(0, s) for s in a.shape)].set(a)

    k0 = in_channels * 3 * 3
    k_pad = _round_up(k0, 128)
    cf = fc_in_features
    cf_p = _round_up(cf, 128)
    h1, h2 = 200, 100
    h1p, h2p = _round_up(h1, 128), _round_up(h2, 128)             # 256, 128
    outp = _round_up(output_dim, 128)                             # 128

    return {
        "w_conv": pad_to(init(ks[0], (k0, cf), k0), (k_pad, cf_p)),
        "b_conv": pad_to(init(ks[1], (1, cf), k0), (1, cf_p)),
        "w1": pad_to(init(ks[2], (cf, h1), cf), (cf_p, h1p)),
        "b1": pad_to(init(ks[3], (1, h1), cf), (1, h1p)),
        "w2": pad_to(init(ks[4], (h1, h2), h1), (h1p, h2p)),
        "b2": pad_to(init(ks[5], (1, h2), h1), (1, h2p)),
        "w3": pad_to(init(ks[6], (h2, output_dim), h2), (h2p, outp)),
        "b3": pad_to(init(ks[7], (1, output_dim), h2), (1, outp)),
    }


if __name__ == "__main__":
    # Small, module-consistent shapes: batch=2, RGB 32x32 images,
    # fc_in_features=128 (stand-in for EfficientNet-b0's 1280), output_dim=10.
    N, C, H, W = 2, 3, 32, 32
    FC_IN, OUT_DIM = 128, 10

    key = jax.random.PRNGKey(0)
    k_x, k_p, k_d = jax.random.split(key, 3)
    x = jax.random.normal(k_x, (N, C, H, W), jnp.float32)   # NCHW, like PyTorch
    params = make_params(k_p, C, FC_IN, OUT_DIM)

    fwd = jax.jit(functools.partial(full_efficientnet_dropout_forward,
                                    output_dim=OUT_DIM))
    out = fwd(x, params, k_d)
    out = jax.block_until_ready(out)

    assert out.shape == (N, OUT_DIM), out.shape
    assert bool(jnp.all(jnp.isfinite(out)))
    print("KERNEL_OK")
</pallas_src>

<mosaic_0001>
module attributes {stable_mosaic.version = 11 : i64} {
  func.func @fused_kernel(%arg0: i32, %arg1: memref<2048x128xf32, #tpu.memory_space<vmem>>, %arg2: memref<128x128xf32, #tpu.memory_space<vmem>>, %arg3: memref<1x128xf32, #tpu.memory_space<vmem>>, %arg4: memref<128x256xf32, #tpu.memory_space<vmem>>, %arg5: memref<1x256xf32, #tpu.memory_space<vmem>>, %arg6: memref<256x128xf32, #tpu.memory_space<vmem>>, %arg7: memref<1x128xf32, #tpu.memory_space<vmem>>, %arg8: memref<128x128xf32, #tpu.memory_space<vmem>>, %arg9: memref<1x128xf32, #tpu.memory_space<vmem>>, %arg10: memref<8x256xf32, #tpu.memory_space<vmem>>, %arg11: memref<8x128xf32, #tpu.memory_space<vmem>>, %arg12: memref<8x128xf32, #tpu.memory_space<vmem>>) attributes {dimension_semantics = [#tpu.dimension_semantics<parallel>], iteration_bounds = array<i64: 1>, scalar_prefetch = 0 : i64, scratch_operands = 0 : i64, tpu.core_type = #tpu.core_type<tc>, window_params = [{transform_indices = @transform_0, window_bounds = array<i64: 2048, 128>}, {pipeline_mode = #tpu.pipeline_mode<synchronous>, transform_indices = @transform_1, window_bounds = array<i64: 128, 128>}, {pipeline_mode = #tpu.pipeline_mode<synchronous>, transform_indices = @transform_2, window_bounds = array<i64: 1, 128>}, {pipeline_mode = #tpu.pipeline_mode<synchronous>, transform_indices = @transform_3, window_bounds = array<i64: 128, 256>}, {pipeline_mode = #tpu.pipeline_mode<synchronous>, transform_indices = @transform_4, window_bounds = array<i64: 1, 256>}, {pipeline_mode = #tpu.pipeline_mode<synchronous>, transform_indices = @transform_5, window_bounds = array<i64: 256, 128>}, {pipeline_mode = #tpu.pipeline_mode<synchronous>, transform_indices = @transform_6, window_bounds = array<i64: 1, 128>}, {pipeline_mode = #tpu.pipeline_mode<synchronous>, transform_indices = @transform_7, window_bounds = array<i64: 128, 128>}, {pipeline_mode = #tpu.pipeline_mode<synchronous>, transform_indices = @transform_8, window_bounds = array<i64: 1, 128>}, {transform_indices = @transform_9, window_bounds = array<i64: 8, 256>}, {transform_indices = @transform_10, window_bounds = array<i64: 8, 128>}, {transform_indices = @transform_11, window_bounds = array<i64: 8, 128>}]} {
    %c0 = arith.constant 0 : index
    %c0_0 = arith.constant 0 : index
    %0 = vector.load %arg1[%c0, %c0_0] : memref<2048x128xf32, #tpu.memory_space<vmem>>, vector<2048x128xf32>
    %c0_1 = arith.constant 0 : index
    %c0_2 = arith.constant 0 : index
    %1 = vector.load %arg2[%c0_1, %c0_2] : memref<128x128xf32, #tpu.memory_space<vmem>>, vector<128x128xf32>
    %cst = arith.constant dense<0.000000e+00> : vector<2048x128xf32>
    %2 = tpu.matmul %0, %1, %cst {dimension_numbers = #tpu.dot_dimension_numbers<[1], [0], [0], [1], [0, 0, 1, 1], [], []>} : vector<2048x128xf32>, vector<128x128xf32>, vector<2048x128xf32> -> vector<2048x128xf32>
    %c0_3 = arith.constant 0 : index
    %c0_4 = arith.constant 0 : index
    %3 = vector.load %arg3[%c0_3, %c0_4] : memref<1x128xf32, #tpu.memory_space<vmem>>, vector<1x128xf32>
    %4 = vector.broadcast %3 : vector<1x128xf32> to vector<2048x128xf32>
    %5 = arith.addf %2, %4 : vector<2048x128xf32>
    %6 = arith.negf %5 : vector<2048x128xf32>
    %7 = math.exp %6 : vector<2048x128xf32>
    %cst_5 = arith.constant 1.000000e+00 : f32
    %8 = vector.broadcast %cst_5 : f32 to vector<2048x128xf32>
    %9 = arith.addf %8, %7 : vector<2048x128xf32>
    %10 = arith.divf %8, %9 : vector<2048x128xf32>
    %11 = arith.mulf %5, %10 : vector<2048x128xf32>
    %12 = vector.shape_cast %11 : vector<2048x128xf32> to vector<8x256x128xf32>
    %cst_6 = arith.constant dense<0.000000e+00> : vector<8x128xf32>
    %13 = vector.multi_reduction <add>, %12, %cst_6 [1] : vector<8x256x128xf32> to vector<8x128xf32>
    %cst_7 = arith.constant 3.906250e-03 : f32
    %14 = vector.broadcast %cst_7 : f32 to vector<8x128xf32>
    %15 = arith.mulf %13, %14 : vector<8x128xf32>
    %c0_8 = arith.constant 0 : index
    %c0_9 = arith.constant 0 : index
    %16 = vector.load %arg4[%c0_8, %c0_9] : memref<128x256xf32, #tpu.memory_space<vmem>>, vector<128x256xf32>
    %cst_10 = arith.constant dense<0.000000e+00> : vector<8x256xf32>
    %17 = tpu.matmul %15, %16, %cst_10 {dimension_numbers = #tpu.dot_dimension_numbers<[1], [0], [0], [1], [0, 0, 1, 1], [], []>} : vector<8x128xf32>, vector<128x256xf32>, vector<8x256xf32> -> vector<8x256xf32>
    %c0_11 = arith.constant 0 : index
    %c0_12 = arith.constant 0 : index
    %18 = vector.load %arg5[%c0_11, %c0_12] : memref<1x256xf32, #tpu.memory_space<vmem>>, vector<1x256xf32>
    %19 = vector.broadcast %18 : vector<1x256xf32> to vector<8x256xf32>
    %20 = arith.addf %17, %19 : vector<8x256xf32>
    %c0_13 = arith.constant 0 : index
    %c0_14 = arith.constant 0 : index
    %21 = vector.load %arg10[%c0_13, %c0_14] : memref<8x256xf32, #tpu.memory_space<vmem>>, vector<8x256xf32>
    %22 = arith.mulf %20, %21 : vector<8x256xf32>
    %cst_15 = arith.constant 2.000000e+00 : f32
    %23 = vector.broadcast %cst_15 : f32 to vector<8x256xf32>
    %24 = arith.mulf %22, %23 : vector<8x256xf32>
    %cst_16 = arith.constant 0.000000e+00 : f32
    %25 = vector.broadcast %cst_16 : f32 to vector<8x256xf32>
    %26 = arith.maximumf %24, %25 : vector<8x256xf32>
    %c0_17 = arith.constant 0 : index
    %c0_18 = arith.constant 0 : index
    %27 = vector.load %arg6[%c0_17, %c0_18] : memref<256x128xf32, #tpu.memory_space<vmem>>, vector<256x128xf32>
    %cst_19 = arith.constant dense<0.000000e+00> : vector<8x128xf32>
    %28 = tpu.matmul %26, %27, %cst_19 {dimension_numbers = #tpu.dot_dimension_numbers<[1], [0], [0], [1], [0, 0, 1, 1], [], []>} : vector<8x256xf32>, vector<256x128xf32>, vector<8x128xf32> -> vector<8x128xf32>
    %c0_20 = arith.constant 0 : index
    %c0_21 = arith.constant 0 : index
    %29 = vector.load %arg7[%c0_20, %c0_21] : memref<1x128xf32, #tpu.memory_space<vmem>>, vector<1x128xf32>
    %30 = vector.broadcast %29 : vector<1x128xf32> to vector<8x128xf32>
    %31 = arith.addf %28, %30 : vector<8x128xf32>
    %c0_22 = arith.constant 0 : index
    %c0_23 = arith.constant 0 : index
    %32 = vector.load %arg11[%c0_22, %c0_23] : memref<8x128xf32, #tpu.memory_space<vmem>>, vector<8x128xf32>
    %33 = arith.mulf %31, %32 : vector<8x128xf32>
    %cst_24 = arith.constant 2.000000e+00 : f32
    %34 = vector.broadcast %cst_24 : f32 to vector<8x128xf32>
    %35 = arith.mulf %33, %34 : vector<8x128xf32>
    %cst_25 = arith.constant 0.000000e+00 : f32
    %36 = vector.broadcast %cst_25 : f32 to vector<8x128xf32>
    %37 = arith.maximumf %35, %36 : vector<8x128xf32>
    %c0_26 = arith.constant 0 : index
    %c0_27 = arith.constant 0 : index
    %38 = vector.load %arg8[%c0_26, %c0_27] : memref<128x128xf32, #tpu.memory_space<vmem>>, vector<128x128xf32>
    %cst_28 = arith.constant dense<0.000000e+00> : vector<8x128xf32>
    %39 = tpu.matmul %37, %38, %cst_28 {dimension_numbers = #tpu.dot_dimension_numbers<[1], [0], [0], [1], [0, 0, 1, 1], [], []>} : vector<8x128xf32>, vector<128x128xf32>, vector<8x128xf32> -> vector<8x128xf32>
    %c0_29 = arith.constant 0 : index
    %c0_30 = arith.constant 0 : index
    %40 = vector.load %arg9[%c0_29, %c0_30] : memref<1x128xf32, #tpu.memory_space<vmem>>, vector<1x128xf32>
    %41 = vector.broadcast %40 : vector<1x128xf32> to vector<8x128xf32>
    %42 = arith.addf %39, %41 : vector<8x128xf32>
    %c0_31 = arith.constant 0 : index
    %c0_32 = arith.constant 0 : index
    %43 = vector.load %arg12[%c0_31, %c0_32] : memref<8x128xf32, #tpu.memory_space<vmem>>, vector<8x128xf32>
    tpu.vector_store %arg12[%c0_31, %c0_32], %42 {strides = array<i32>} : memref<8x128xf32, #tpu.memory_space<vmem>>, vector<8x128xf32>,
    return
  }
  func.func @transform_0(%arg0: i32) -> (i32, i32) {
    %c0_i32 = arith.constant 0 : i32
    %c0_i32_0 = arith.constant 0 : i32
    return %arg0, %c0_i32 : i32, i32
  }
  func.func @transform_1(%arg0: i32) -> (i32, i32) {
    %c0_i32 = arith.constant 0 : i32
    %c0_i32_0 = arith.constant 0 : i32
    %c0_i32_1 = arith.constant 0 : i32
    return %c0_i32, %c0_i32_0 : i32, i32
  }
  func.func @transform_2(%arg0: i32) -> (i32, i32) {
    %c0_i32 = arith.constant 0 : i32
    %c0_i32_0 = arith.constant 0 : i32
    %c0_i32_1 = arith.constant 0 : i32
    return %c0_i32, %c0_i32_0 : i32, i32
  }
  func.func @transform_3(%arg0: i32) -> (i32, i32) {
    %c0_i32 = arith.constant 0 : i32
    %c0_i32_0 = arith.constant 0 : i32
    %c0_i32_1 = arith.constant 0 : i32
    return %c0_i32, %c0_i32_0 : i32, i32
  }
  func.func @transform_4(%arg0: i32) -> (i32, i32) {
    %c0_i32 = arith.constant 0 : i32
    %c0_i32_0 = arith.constant 0 : i32
    %c0_i32_1 = arith.constant 0 : i32
    return %c0_i32, %c0_i32_0 : i32, i32
  }
  func.func @transform_5(%arg0: i32) -> (i32, i32) {
    %c0_i32 = arith.constant 0 : i32
    %c0_i32_0 = arith.constant 0 : i32
    %c0_i32_1 = arith.constant 0 : i32
    return %c0_i32, %c0_i32_0 : i32, i32
  }
  func.func @transform_6(%arg0: i32) -> (i32, i32) {
    %c0_i32 = arith.constant 0 : i32
    %c0_i32_0 = arith.constant 0 : i32
    %c0_i32_1 = arith.constant 0 : i32
    return %c0_i32, %c0_i32_0 : i32, i32
  }
  func.func @transform_7(%arg0: i32) -> (i32, i32) {
    %c0_i32 = arith.constant 0 : i32
    %c0_i32_0 = arith.constant 0 : i32
    %c0_i32_1 = arith.constant 0 : i32
    return %c0_i32, %c0_i32_0 : i32, i32
  }
  func.func @transform_8(%arg0: i32) -> (i32, i32) {
    %c0_i32 = arith.constant 0 : i32
    %c0_i32_0 = arith.constant 0 : i32
    %c0_i32_1 = arith.constant 0 : i32
    return %c0_i32, %c0_i32_0 : i32, i32
  }
  func.func @transform_9(%arg0: i32) -> (i32, i32) {
    %c0_i32 = arith.constant 0 : i32
    %c0_i32_0 = arith.constant 0 : i32
    return %arg0, %c0_i32 : i32, i32
  }
  func.func @transform_10(%arg0: i32) -> (i32, i32) {
    %c0_i32 = arith.constant 0 : i32
    %c0_i32_0 = arith.constant 0 : i32
    return %arg0, %c0_i32 : i32, i32
  }
  func.func @transform_11(%arg0: i32) -> (i32, i32) {
    %c0_i32 = arith.constant 0 : i32
    %c0_i32_0 = arith.constant 0 : i32
    return %arg0, %c0_i32 : i32, i32
  }
}

</mosaic_0001>

<llo_original>
// kernel: full_efficientnet_dropout_forward.3
$region0: #{full_efficientnet_dropout_forward.3}
  #allocation0 [shape = 'u32[]', space=smem, size = 0x4, offset = 0x4, fixed_abs, tag = 'smem constant byte address 0x4 - core index']
  #allocation1 [shape = 'u32[144,128]{1,0:T(1,128)}', space=vmem, size = 0x12000, scoped, tag = 'internal scratch']
  %s0 = inlined_call_operand.vmem [shape: f32[2048,128], index: 0, kind: input, shape index: {}]
  %s1 = inlined_call_operand.vmem [shape: f32[128,128], index: 1, kind: input, shape index: {}]
  %s2 = inlined_call_operand.vmem [shape: f32[1,128], index: 2, kind: input, shape index: {}]
  %s3 = inlined_call_operand.vmem [shape: f32[128,256], index: 3, kind: input, shape index: {}]
  %s4 = inlined_call_operand.vmem [shape: f32[1,256], index: 4, kind: input, shape index: {}]
  %s5 = inlined_call_operand.vmem [shape: f32[256,128], index: 5, kind: input, shape index: {}]
  %s6 = inlined_call_operand.vmem [shape: f32[1,128], index: 6, kind: input, shape index: {}]
  %s7 = inlined_call_operand.vmem [shape: f32[128,128], index: 7, kind: input, shape index: {}]
  %s8 = inlined_call_operand.vmem [shape: f32[1,128], index: 8, kind: input, shape index: {}]
  %s9 = inlined_call_operand.vmem [shape: f32[8,256], index: 9, kind: input, shape index: {}]
  %s10 = inlined_call_operand.vmem [shape: f32[8,128], index: 10, kind: input, shape index: {}]
  %s11 = inlined_call_operand.vmem [shape: f32[8,128], index: 11, kind: output, shape index: {}]
  %s12 = sld [smem:[#allocation0]]
  $region54: #{full_efficientnet_dropout_forward.3} parent=0
    _
  %s14 = ssub.s32 1, %s12
  %s15 = scalar_select 0, %s14, %s12
  // Predicated region
  $region2: #{full_efficientnet_dropout_forward.3} parent=0 // pred_check
    _
  $region3: #{full_efficientnet_dropout_forward.3} parent=0 // pred_check_branch
    %17 = sbr.rel (0) target = $region5
  $region4: #{full_efficientnet_dropout_forward.3} parent=0 // pred_region
    _
  $region5: #{full_efficientnet_dropout_forward.3} parent=0 // pred_fallthru
    _
  // Predicated region
  $region6: #{full_efficientnet_dropout_forward.3} parent=0 // pred_check
    _
  $region7: #{full_efficientnet_dropout_forward.3} parent=0 // pred_check_branch
    %19 = sbr.rel (0) target = $region9
  $region8: #{full_efficientnet_dropout_forward.3} parent=0 // pred_region
    _
  $region9: #{full_efficientnet_dropout_forward.3} parent=0 // pred_fallthru
    _
  // Predicated region
  $region10: #{full_efficientnet_dropout_forward.3} parent=0 // pred_check
    _
  $region11: #{full_efficientnet_dropout_forward.3} parent=0 // pred_check_branch
    %21 = sbr.rel (0) target = $region13
  $region12: #{full_efficientnet_dropout_forward.3} parent=0 // pred_region
    _
  $region13: #{full_efficientnet_dropout_forward.3} parent=0 // pred_fallthru
    _
  // Predicated region
  $region14: #{full_efficientnet_dropout_forward.3} parent=0 // pred_check
    _
  $region15: #{full_efficientnet_dropout_forward.3} parent=0 // pred_check_branch
    %23 = sbr.rel (0) target = $region17
  $region16: #{full_efficientnet_dropout_forward.3} parent=0 // pred_region
    _
  $region17: #{full_efficientnet_dropout_forward.3} parent=0 // pred_fallthru
    _
  // Predicated region
  $region18: #{full_efficientnet_dropout_forward.3} parent=0 // pred_check
    _
  $region19: #{full_efficientnet_dropout_forward.3} parent=0 // pred_check_branch
    %25 = sbr.rel (0) target = $region21
  $region20: #{full_efficientnet_dropout_forward.3} parent=0 // pred_region
    _
  $region21: #{full_efficientnet_dropout_forward.3} parent=0 // pred_fallthru
    _
  // Predicated region
  $region22: #{full_efficientnet_dropout_forward.3} parent=0 // pred_check
    _
  $region23: #{full_efficientnet_dropout_forward.3} parent=0 // pred_check_branch
    %27 = sbr.rel (0) target = $region25
  $region24: #{full_efficientnet_dropout_forward.3} parent=0 // pred_region
    _
  $region25: #{full_efficientnet_dropout_forward.3} parent=0 // pred_fallthru
    _
  // Predicated region
  $region26: #{full_efficientnet_dropout_forward.3} parent=0 // pred_check
    _
  $region27: #{full_efficientnet_dropout_forward.3} parent=0 // pred_check_branch
    %29 = sbr.rel (0) target = $region29
  $region28: #{full_efficientnet_dropout_forward.3} parent=0 // pred_region
    _
  $region29: #{full_efficientnet_dropout_forward.3} parent=0 // pred_fallthru
    _
  // Predicated region
  $region30: #{full_efficientnet_dropout_forward.3} parent=0 // pred_check
    _
  $region31: #{full_efficientnet_dropout_forward.3} parent=0 // pred_check_branch
    %31 = sbr.rel (0) target = $region33
  $region32: #{full_efficientnet_dropout_forward.3} parent=0 // pred_region
    _
  $region33: #{full_efficientnet_dropout_forward.3} parent=0 // pred_fallthru
    _
  // Predicated region
  $region34: #{full_efficientnet_dropout_forward.3} parent=0 // pred_check
    _
  $region35: #{full_efficientnet_dropout_forward.3} parent=0 // pred_check_branch
    %33 = sbr.rel (0) target = $region37
  $region36: #{full_efficientnet_dropout_forward.3} parent=0 // pred_region
    _
  $region37: #{full_efficientnet_dropout_forward.3} parent=0 // pred_fallthru
    _
  // Predicated region
  $region38: #{full_efficientnet_dropout_forward.3} parent=0 // pred_check
    _
  $region39: #{full_efficientnet_dropout_forward.3} parent=0 // pred_check_branch
    %35 = sbr.rel (0) target = $region41
  $region40: #{full_efficientnet_dropout_forward.3} parent=0 // pred_region
    _
  $region41: #{full_efficientnet_dropout_forward.3} parent=0 // pred_fallthru
    _
  // Predicated region
  $region42: #{full_efficientnet_dropout_forward.3} parent=0 // pred_check
    _
  $region43: #{full_efficientnet_dropout_forward.3} parent=0 // pred_check_branch
    %37 = sbr.rel (0) target = $region45
  $region44: #{full_efficientnet_dropout_forward.3} parent=0 // pred_region
    _
  $region45: #{full_efficientnet_dropout_forward.3} parent=0 // pred_fallthru
    _
  %v38 = vld [vmem:[%s0] sm:$0xff]
  %v39 = vld [vmem:[%s0 + $0x8] sm:$0xff]
  %v40 = vld [vmem:[%s0 + $0x10] sm:$0xff]
  %v41 = vld [vmem:[%s0 + $0x18] sm:$0xff]
  %v42 = vld [vmem:[%s0 + $0x20] sm:$0xff]
  %v43 = vld [vmem:[%s0 + $0x28] sm:$0xff]
  %v44 = vld [vmem:[%s0 + $0x30] sm:$0xff]
  %v45 = vld [vmem:[%s0 + $0x38] sm:$0xff]
  %v46 = vld [vmem:[%s0 + $0x40] sm:$0xff]
  %v47 = vld [vmem:[%s0 + $0x48] sm:$0xff]
  %v48 = vld [vmem:[%s0 + $0x50] sm:$0xff]
  %v49 = vld [vmem:[%s0 + $0x58] sm:$0xff]
  %v50 = vld [vmem:[%s0 + $0x60] sm:$0xff]
  %v51 = vld [vmem:[%s0 + $0x68] sm:$0xff]
  %v52 = vld [vmem:[%s0 + $0x70] sm:$0xff]
  %v53 = vld [vmem:[%s0 + $0x78] sm:$0xff]
  %v54 = vld [vmem:[%s0 + $0x80] sm:$0xff]
  %v55 = vld [vmem:[%s0 + $0x88] sm:$0xff]
  %v56 = vld [vmem:[%s0 + $0x90] sm:$0xff]
  %v57 = vld [vmem:[%s0 + $0x98] sm:$0xff]
  %v58 = vld [vmem:[%s0 + $0xa0] sm:$0xff]
  %v59 = vld [vmem:[%s0 + $0xa8] sm:$0xff]
  %v60 = vld [vmem:[%s0 + $0xb0] sm:$0xff]
  %v61 = vld [vmem:[%s0 + $0xb8] sm:$0xff]
  %v62 = vld [vmem:[%s0 + $0xc0] sm:$0xff]
  %v63 = vld [vmem:[%s0 + $0xc8] sm:$0xff]
  %v64 = vld [vmem:[%s0 + $0xd0] sm:$0xff]
  %v65 = vld [vmem:[%s0 + $0xd8] sm:$0xff]
  %v66 = vld [vmem:[%s0 + $0xe0] sm:$0xff]
  %v67 = vld [vmem:[%s0 + $0xe8] sm:$0xff]
  %v68 = vld [vmem:[%s0 + $0xf0] sm:$0xff]
  %v69 = vld [vmem:[%s0 + $0xf8] sm:$0xff]
  %v70 = vld [vmem:[%s0 + $0x100] sm:$0xff]
  %v71 = vld [vmem:[%s0 + $0x108] sm:$0xff]
  %v72 = vld [vmem:[%s0 + $0x110] sm:$0xff]
  %v73 = vld [vmem:[%s0 + $0x118] sm:$0xff]
  %v74 = vld [vmem:[%s0 + $0x120] sm:$0xff]
  %v75 = vld [vmem:[%s0 + $0x128] sm:$0xff]
  %v76 = vld [vmem:[%s0 + $0x130] sm:$0xff]
  %v77 = vld [vmem:[%s0 + $0x138] sm:$0xff]
  %v78 = vld [vmem:[%s0 + $0x140] sm:$0xff]
  %v79 = vld [vmem:[%s0 + $0x148] sm:$0xff]
  %v80 = vld [vmem:[%s0 + $0x150] sm:$0xff]
  %v81 = vld [vmem:[%s0 + $0x158] sm:$0xff]
  %v82 = vld [vmem:[%s0 + $0x160] sm:$0xff]
  %v83 = vld [vmem:[%s0 + $0x168] sm:$0xff]
  %v84 = vld [vmem:[%s0 + $0x170] sm:$0xff]
  %v85 = vld [vmem:[%s0 + $0x178] sm:$0xff]
  %v86 = vld [vmem:[%s0 + $0x180] sm:$0xff]
  %v87 = vld [vmem:[%s0 + $0x188] sm:$0xff]
  %v88 = vld [vmem:[%s0 + $0x190] sm:$0xff]
  %v89 = vld [vmem:[%s0 + $0x198] sm:$0xff]
  %v90 = vld [vmem:[%s0 + $0x1a0] sm:$0xff]
  %v91 = vld [vmem:[%s0 + $0x1a8] sm:$0xff]
  %v92 = vld [vmem:[%s0 + $0x1b0] sm:$0xff]
  %v93 = vld [vmem:[%s0 + $0x1b8] sm:$0xff]
  %v94 = vld [vmem:[%s0 + $0x1c0] sm:$0xff]
  %v95 = vld [vmem:[%s0 + $0x1c8] sm:$0xff]
  %v96 = vld [vmem:[%s0 + $0x1d0] sm:$0xff]
  %v97 = vld [vmem:[%s0 + $0x1d8] sm:$0xff]
  %v98 = vld [vmem:[%s0 + $0x1e0] sm:$0xff]
  %v99 = vld [vmem:[%s0 + $0x1e8] sm:$0xff]
  %v100 = vld [vmem:[%s0 + $0x1f0] sm:$0xff]
  %v101 = vld [vmem:[%s0 + $0x1f8] sm:$0xff]
  %v102 = vld [vmem:[%s0 + $0x200] sm:$0xff]
  %v103 = vld [vmem:[%s0 + $0x208] sm:$0xff]
  %v104 = vld [vmem:[%s0 + $0x210] sm:$0xff]
  %v105 = vld [vmem:[%s0 + $0x218] sm:$0xff]
  %v106 = vld [vmem:[%s0 + $0x220] sm:$0xff]
  %v107 = vld [vmem:[%s0 + $0x228] sm:$0xff]
  %v108 = vld [vmem:[%s0 + $0x230] sm:$0xff]
  %v109 = vld [vmem:[%s0 + $0x238] sm:$0xff]
  %v110 = vld [vmem:[%s0 + $0x240] sm:$0xff]
  %v111 = vld [vmem:[%s0 + $0x248] sm:$0xff]
  %v112 = vld [vmem:[%s0 + $0x250] sm:$0xff]
  %v113 = vld [vmem:[%s0 + $0x258] sm:$0xff]
  %v114 = vld [vmem:[%s0 + $0x260] sm:$0xff]
  %v115 = vld [vmem:[%s0 + $0x268] sm:$0xff]
  %v116 = vld [vmem:[%s0 + $0x270] sm:$0xff]
  %v117 = vld [vmem:[%s0 + $0x278] sm:$0xff]
  %v118 = vld [vmem:[%s0 + $0x280] sm:$0xff]
  %v119 = vld [vmem:[%s0 + $0x288] sm:$0xff]
  %v120 = vld [vmem:[%s0 + $0x290] sm:$0xff]
  %v121 = vld [vmem:[%s0 + $0x298] sm:$0xff]
  %v122 = vld [vmem:[%s0 + $0x2a0] sm:$0xff]
  %v123 = vld [vmem:[%s0 + $0x2a8] sm:$0xff]
  %v124 = vld [vmem:[%s0 + $0x2b0] sm:$0xff]
  %v125 = vld [vmem:[%s0 + $0x2b8] sm:$0xff]
  %v126 = vld [vmem:[%s0 + $0x2c0] sm:$0xff]
  %v127 = vld [vmem:[%s0 + $0x2c8] sm:$0xff]
  %v128 = vld [vmem:[%s0 + $0x2d0] sm:$0xff]
  %v129 = vld [vmem:[%s0 + $0x2d8] sm:$0xff]
  %v130 = vld [vmem:[%s0 + $0x2e0] sm:$0xff]
  %v131 = vld [vmem:[%s0 + $0x2e8] sm:$0xff]
  %v132 = vld [vmem:[%s0 + $0x2f0] sm:$0xff]
  %v133 = vld [vmem:[%s0 + $0x2f8] sm:$0xff]
  %v134 = vld [vmem:[%s0 + $0x300] sm:$0xff]
  %v135 = vld [vmem:[%s0 + $0x308] sm:$0xff]
  %v136 = vld [vmem:[%s0 + $0x310] sm:$0xff]
  %v137 = vld [vmem:[%s0 + $0x318] sm:$0xff]
  %v138 = vld [vmem:[%s0 + $0x320] sm:$0xff]
  %v139 = vld [vmem:[%s0 + $0x328] sm:$0xff]
  %v140 = vld [vmem:[%s0 + $0x330] sm:$0xff]
  %v141 = vld [vmem:[%s0 + $0x338] sm:$0xff]
  %v142 = vld [vmem:[%s0 + $0x340] sm:$0xff]
  %v143 = vld [vmem:[%s0 + $0x348] sm:$0xff]
  %v144 = vld [vmem:[%s0 + $0x350] sm:$0xff]
  %v145 = vld [vmem:[%s0 + $0x358] sm:$0xff]
  %v146 = vld [vmem:[%s0 + $0x360] sm:$0xff]
  %v147 = vld [vmem:[%s0 + $0x368] sm:$0xff]
  %v148 = vld [vmem:[%s0 + $0x370] sm:$0xff]
  %v149 = vld [vmem:[%s0 + $0x378] sm:$0xff]
  %v150 = vld [vmem:[%s0 + $0x380] sm:$0xff]
  %v151 = vld [vmem:[%s0 + $0x388] sm:$0xff]
  %v152 = vld [vmem:[%s0 + $0x390] sm:$0xff]
  %v153 = vld [vmem:[%s0 + $0x398] sm:$0xff]
  %v154 = vld [vmem:[%s0 + $0x3a0] sm:$0xff]
  %v155 = vld [vmem:[%s0 + $0x3a8] sm:$0xff]
  %v156 = vld [vmem:[%s0 + $0x3b0] sm:$0xff]
  %v157 = vld [vmem:[%s0 + $0x3b8] sm:$0xff]
  %v158 = vld [vmem:[%s0 + $0x3c0] sm:$0xff]
  %v159 = vld [vmem:[%s0 + $0x3c8] sm:$0xff]
  %v160 = vld [vmem:[%s0 + $0x3d0] sm:$0xff]
  %v161 = vld [vmem:[%s0 + $0x3d8] sm:$0xff]
  %v162 = vld [vmem:[%s0 + $0x3e0] sm:$0xff]
  %v163 = vld [vmem:[%s0 + $0x3e8] sm:$0xff]
  %v164 = vld [vmem:[%s0 + $0x3f0] sm:$0xff]
  %v165 = vld [vmem:[%s0 + $0x3f8] sm:$0xff]
  %v166 = vld [vmem:[%s0 + $0x400] sm:$0xff]
  %v167 = vld [vmem:[%s0 + $0x408] sm:$0xff]
  %v168 = vld [vmem:[%s0 + $0x410] sm:$0xff]
  %v169 = vld [vmem:[%s0 + $0x418] sm:$0xff]
  %v170 = vld [vmem:[%s0 + $0x420] sm:$0xff]
  %v171 = vld [vmem:[%s0 + $0x428] sm:$0xff]
  %v172 = vld [vmem:[%s0 + $0x430] sm:$0xff]
  %v173 = vld [vmem:[%s0 + $0x438] sm:$0xff]
  %v174 = vld [vmem:[%s0 + $0x440] sm:$0xff]
  %v175 = vld [vmem:[%s0 + $0x448] sm:$0xff]
  %v176 = vld [vmem:[%s0 + $0x450] sm:$0xff]
  %v177 = vld [vmem:[%s0 + $0x458] sm:$0xff]
  %v178 = vld [vmem:[%s0 + $0x460] sm:$0xff]
  %v179 = vld [vmem:[%s0 + $0x468] sm:$0xff]
  %v180 = vld [vmem:[%s0 + $0x470] sm:$0xff]
  %v181 = vld [vmem:[%s0 + $0x478] sm:$0xff]
  %v182 = vld [vmem:[%s0 + $0x480] sm:$0xff]
  %v183 = vld [vmem:[%s0 + $0x488] sm:$0xff]
  %v184 = vld [vmem:[%s0 + $0x490] sm:$0xff]
  %v185 = vld [vmem:[%s0 + $0x498] sm:$0xff]
  %v186 = vld [vmem:[%s0 + $0x4a0] sm:$0xff]
  %v187 = vld [vmem:[%s0 + $0x4a8] sm:$0xff]
  %v188 = vld [vmem:[%s0 + $0x4b0] sm:$0xff]
  %v189 = vld [vmem:[%s0 + $0x4b8] sm:$0xff]
  %v190 = vld [vmem:[%s0 + $0x4c0] sm:$0xff]
  %v191 = vld [vmem:[%s0 + $0x4c8] sm:$0xff]
  %v192 = vld [vmem:[%s0 + $0x4d0] sm:$0xff]
  %v193 = vld [vmem:[%s0 + $0x4d8] sm:$0xff]
  %v194 = vld [vmem:[%s0 + $0x4e0] sm:$0xff]
  %v195 = vld [vmem:[%s0 + $0x4e8] sm:$0xff]
  %v196 = vld [vmem:[%s0 + $0x4f0] sm:$0xff]
  %v197 = vld [vmem:[%s0 + $0x4f8] sm:$0xff]
  %v198 = vld [vmem:[%s0 + $0x500] sm:$0xff]
  %v199 = vld [vmem:[%s0 + $0x508] sm:$0xff]
  %v200 = vld [vmem:[%s0 + $0x510] sm:$0xff]
  %v201 = vld [vmem:[%s0 + $0x518] sm:$0xff]
  %v202 = vld [vmem:[%s0 + $0x520] sm:$0xff]
  %v203 = vld [vmem:[%s0 + $0x528] sm:$0xff]
  %v204 = vld [vmem:[%s0 + $0x530] sm:$0xff]
  %v205 = vld [vmem:[%s0 + $0x538] sm:$0xff]
  %v206 = vld [vmem:[%s0 + $0x540] sm:$0xff]
  %v207 = vld [vmem:[%s0 + $0x548] sm:$0xff]
  %v208 = vld [vmem:[%s0 + $0x550] sm:$0xff]
  %v209 = vld [vmem:[%s0 + $0x558] sm:$0xff]
  %v210 = vld [vmem:[%s0 + $0x560] sm:$0xff]
  %v211 = vld [vmem:[%s0 + $0x568] sm:$0xff]
  %v212 = vld [vmem:[%s0 + $0x570] sm:$0xff]
  %v213 = vld [vmem:[%s0 + $0x578] sm:$0xff]
  %v214 = vld [vmem:[%s0 + $0x580] sm:$0xff]
  %v215 = vld [vmem:[%s0 + $0x588] sm:$0xff]
  %v216 = vld [vmem:[%s0 + $0x590] sm:$0xff]
  %v217 = vld [vmem:[%s0 + $0x598] sm:$0xff]
  %v218 = vld [vmem:[%s0 + $0x5a0] sm:$0xff]
  %v219 = vld [vmem:[%s0 + $0x5a8] sm:$0xff]
  %v220 = vld [vmem:[%s0 + $0x5b0] sm:$0xff]
  %v221 = vld [vmem:[%s0 + $0x5b8] sm:$0xff]
  %v222 = vld [vmem:[%s0 + $0x5c0] sm:$0xff]
  %v223 = vld [vmem:[%s0 + $0x5c8] sm:$0xff]
  %v224 = vld [vmem:[%s0 + $0x5d0] sm:$0xff]
  %v225 = vld [vmem:[%s0 + $0x5d8] sm:$0xff]
  %v226 = vld [vmem:[%s0 + $0x5e0] sm:$0xff]
  %v227 = vld [vmem:[%s0 + $0x5e8] sm:$0xff]
  %v228 = vld [vmem:[%s0 + $0x5f0] sm:$0xff]
  %v229 = vld [vmem:[%s0 + $0x5f8] sm:$0xff]
  %v230 = vld [vmem:[%s0 + $0x600] sm:$0xff]
  %v231 = vld [vmem:[%s0 + $0x608] sm:$0xff]
  %v232 = vld [vmem:[%s0 + $0x610] sm:$0xff]
  %v233 = vld [vmem:[%s0 + $0x618] sm:$0xff]
  %v234 = vld [vmem:[%s0 + $0x620] sm:$0xff]
  %v235 = vld [vmem:[%s0 + $0x628] sm:$0xff]
  %v236 = vld [vmem:[%s0 + $0x630] sm:$0xff]
  %v237 = vld [vmem:[%s0 + $0x638] sm:$0xff]
  %v238 = vld [vmem:[%s0 + $0x640] sm:$0xff]
  %v239 = vld [vmem:[%s0 + $0x648] sm:$0xff]
  %v240 = vld [vmem:[%s0 + $0x650] sm:$0xff]
  %v241 = vld [vmem:[%s0 + $0x658] sm:$0xff]
  %v242 = vld [vmem:[%s0 + $0x660] sm:$0xff]
  %v243 = vld [vmem:[%s0 + $0x668] sm:$0xff]
  %v244 = vld [vmem:[%s0 + $0x670] sm:$0xff]
  %v245 = vld [vmem:[%s0 + $0x678] sm:$0xff]
  %v246 = vld [vmem:[%s0 + $0x680] sm:$0xff]
  %v247 = vld [vmem:[%s0 + $0x688] sm:$0xff]
  %v248 = vld [vmem:[%s0 + $0x690] sm:$0xff]
  %v249 = vld [vmem:[%s0 + $0x698] sm:$0xff]
  %v250 = vld [vmem:[%s0 + $0x6a0] sm:$0xff]
  %v251 = vld [vmem:[%s0 + $0x6a8] sm:$0xff]
  %v252 = vld [vmem:[%s0 + $0x6b0] sm:$0xff]
  %v253 = vld [vmem:[%s0 + $0x6b8] sm:$0xff]
  %v254 = vld [vmem:[%s0 + $0x6c0] sm:$0xff]
  %v255 = vld [vmem:[%s0 + $0x6c8] sm:$0xff]
  %v256 = vld [vmem:[%s0 + $0x6d0] sm:$0xff]
  %v257 = vld [vmem:[%s0 + $0x6d8] sm:$0xff]
  %v258 = vld [vmem:[%s0 + $0x6e0] sm:$0xff]
  %v259 = vld [vmem:[%s0 + $0x6e8] sm:$0xff]
  %v260 = vld [vmem:[%s0 + $0x6f0] sm:$0xff]
  %v261 = vld [vmem:[%s0 + $0x6f8] sm:$0xff]
  %v262 = vld [vmem:[%s0 + $0x700] sm:$0xff]
  %v263 = vld [vmem:[%s0 + $0x708] sm:$0xff]
  %v264 = vld [vmem:[%s0 + $0x710] sm:$0xff]
  %v265 = vld [vmem:[%s0 + $0x718] sm:$0xff]
  %v266 = vld [vmem:[%s0 + $0x720] sm:$0xff]
  %v267 = vld [vmem:[%s0 + $0x728] sm:$0xff]
  %v268 = vld [vmem:[%s0 + $0x730] sm:$0xff]
  %v269 = vld [vmem:[%s0 + $0x738] sm:$0xff]
  %v270 = vld [vmem:[%s0 + $0x740] sm:$0xff]
  %v271 = vld [vmem:[%s0 + $0x748] sm:$0xff]
  %v272 = vld [vmem:[%s0 + $0x750] sm:$0xff]
  %v273 = vld [vmem:[%s0 + $0x758] sm:$0xff]
  %v274 = vld [vmem:[%s0 + $0x760] sm:$0xff]
  %v275 = vld [vmem:[%s0 + $0x768] sm:$0xff]
  %v276 = vld [vmem:[%s0 + $0x770] sm:$0xff]
  %v277 = vld [vmem:[%s0 + $0x778] sm:$0xff]
  %v278 = vld [vmem:[%s0 + $0x780] sm:$0xff]
  %v279 = vld [vmem:[%s0 + $0x788] sm:$0xff]
  %v280 = vld [vmem:[%s0 + $0x790] sm:$0xff]
  %v281 = vld [vmem:[%s0 + $0x798] sm:$0xff]
  %v282 = vld [vmem:[%s0 + $0x7a0] sm:$0xff]
  %v283 = vld [vmem:[%s0 + $0x7a8] sm:$0xff]
  %v284 = vld [vmem:[%s0 + $0x7b0] sm:$0xff]
  %v285 = vld [vmem:[%s0 + $0x7b8] sm:$0xff]
  %v286 = vld [vmem:[%s0 + $0x7c0] sm:$0xff]
  %v287 = vld [vmem:[%s0 + $0x7c8] sm:$0xff]
  %v288 = vld [vmem:[%s0 + $0x7d0] sm:$0xff]
  %v289 = vld [vmem:[%s0 + $0x7d8] sm:$0xff]
  %v290 = vld [vmem:[%s0 + $0x7e0] sm:$0xff]
  %v291 = vld [vmem:[%s0 + $0x7e8] sm:$0xff]
  %v292 = vld [vmem:[%s0 + $0x7f0] sm:$0xff]
  %v293 = vld [vmem:[%s0 + $0x7f8] sm:$0xff]
  %v294 = vld [vmem:[%s1] sm:$0xff]
  %v295 = vld [vmem:[%s1 + $0x8] sm:$0xff]
  %v296 = vld [vmem:[%s1 + $0x10] sm:$0xff]
  %v297 = vld [vmem:[%s1 + $0x18] sm:$0xff]
  %v298 = vld [vmem:[%s1 + $0x20] sm:$0xff]
  %v299 = vld [vmem:[%s1 + $0x28] sm:$0xff]
  %v300 = vld [vmem:[%s1 + $0x30] sm:$0xff]
  %v301 = vld [vmem:[%s1 + $0x38] sm:$0xff]
  %v302 = vld [vmem:[%s1 + $0x40] sm:$0xff]
  %v303 = vld [vmem:[%s1 + $0x48] sm:$0xff]
  %v304 = vld [vmem:[%s1 + $0x50] sm:$0xff]
  %v305 = vld [vmem:[%s1 + $0x58] sm:$0xff]
  %v306 = vld [vmem:[%s1 + $0x60] sm:$0xff]
  %v307 = vld [vmem:[%s1 + $0x68] sm:$0xff]
  %v308 = vld [vmem:[%s1 + $0x70] sm:$0xff]
  %v309 = vld [vmem:[%s1 + $0x78] sm:$0xff]
  %v310 = vld [vmem:[%s2] sm:$0x1]
  %v312 = vlaneseq
  %v313 = vshrl.u32 %v312, 7
  %v314 = vsub.s32 0, %v313
  %v315 = vrot.slane %v310, %v314
  %317 = vmatprep.subr.mxu0 0.0
  %318 = vmatpush1.msra.mxu0 %v309
  %319 = vmatprep.subr.mxu0 0.0
  %320 = vmatpush1.msra.mxu0 %v308
  %321 = vmatprep.subr.mxu0 0.0
  %322 = vmatpush1.msra.mxu0 %v307
  %323 = vmatprep.subr.mxu0 0.0
  %324 = vmatpush1.msra.mxu0 %v306
  %325 = vmatprep.subr.mxu0 0.0
  %326 = vmatpush1.msra.mxu0 %v305
  %327 = vmatprep.subr.mxu0 0.0
  %328 = vmatpush1.msra.mxu0 %v304
  %329 = vmatprep.subr.mxu0 0.0
  %330 = vmatpush1.msra.mxu0 %v303
  %331 = vmatprep.subr.mxu0 0.0
  %332 = vmatpush1.msra.mxu0 %v302
  %333 = vmatprep.subr.mxu0 0.0
  %334 = vmatpush1.msra.mxu0 %v301
  %335 = vmatprep.subr.mxu0 0.0
  %336 = vmatpush1.msra.mxu0 %v300
  %337 = vmatprep.subr.mxu0 0.0
  %338 = vmatpush1.msra.mxu0 %v299
  %339 = vmatprep.subr.mxu0 0.0
  %340 = vmatpush1.msra.mxu0 %v298
  %341 = vmatprep.subr.mxu0 0.0
  %342 = vmatpush1.msra.mxu0 %v297
  %343 = vmatprep.subr.mxu0 0.0
  %344 = vmatpush1.msra.mxu0 %v296
  %345 = vmatprep.subr.mxu0 0.0
  %346 = vmatpush1.msra.mxu0 %v295
  %347 = vmatprep.subr.mxu0 0.0
  %348 = vmatpush1.msra.mxu0 %v294
  %349 = vmatprep.subr.mxu0 0.0
  %350 = vmatpush2.msra.mxu0 0.0
  %351 = vmatprep.subr.mxu0 0.0
  %352 = vmatpush2.msra.mxu0 0.0
  %353 = vmatprep.subr.mxu0 0.0
  %354 = vmatpush2.msra.mxu0 0.0
  %355 = vmatprep.subr.mxu0 0.0
  %356 = vmatpush2.msra.mxu0 0.0
  %357 = vmatprep.subr.mxu0 0.0
  %358 = vmatpush2.msra.mxu0 0.0
  %359 = vmatprep.subr.mxu0 0.0
  %360 = vmatpush2.msra.mxu0 0.0
  %361 = vmatprep.subr.mxu0 0.0
  %362 = vmatpush2.msra.mxu0 0.0
  %363 = vmatprep.subr.mxu0 0.0
  %364 = vmatpush2.msra.mxu0 0.0
  %365 = vmatprep.subr.mxu0 0.0
  %366 = vmatpush2.msra.mxu0 0.0
  %367 = vmatprep.subr.mxu0 0.0
  %368 = vmatpush2.msra.mxu0 0.0
  %369 = vmatprep.subr.mxu0 0.0
  %370 = vmatpush2.msra.mxu0 0.0
  %371 = vmatprep.subr.mxu0 0.0
  %372 = vmatpush2.msra.mxu0 0.0
  %373 = vmatprep.subr.mxu0 0.0
  %374 = vmatpush2.msra.mxu0 0.0
  %375 = vmatprep.subr.mxu0 0.0
  %376 = vmatpush2.msra.mxu0 0.0
  %377 = vmatprep.subr.mxu0 0.0
  %378 = vmatpush2.msra.mxu0 0.0
  %379 = vmatprep.subr.mxu0 0.0
  %380 = vmatpush2.msra.mxu0 0.0
  %381 = vmatprep.mubr.f32.mxu0 0.0
  %382 = vmatmul.mubr.f32.gmra.mxu0 %v38
  %v383 = vpop.f32.mrf.mxu0
  %v384 = vadd.f32 %v315, %v383
  %v385 = vpop.f32.mrf.mxu0
  %386 = vmatprep.mubr.f32.mxu0 0.0
  %387 = vmatmul.mubr.f32.gmra.mxu0 %v39
  %v388 = vpop.f32.mrf.mxu0
  %v389 = vadd.f32 %v315, %v388
  %v390 = vpop.f32.mrf.mxu0
  %391 = vmatprep.mubr.f32.mxu0 0.0
  %392 = vmatmul.mubr.f32.gmra.mxu0 %v40
  %v393 = vpop.f32.mrf.mxu0
  %v394 = vadd.f32 %v315, %v393
  %v395 = vpop.f32.mrf.mxu0
  %396 = vmatprep.mubr.f32.mxu0 0.0
  %397 = vmatmul.mubr.f32.gmra.mxu0 %v41
  %v398 = vpop.f32.mrf.mxu0
  %v399 = vadd.f32 %v315, %v398
  %v400 = vpop.f32.mrf.mxu0
  %401 = vmatprep.mubr.f32.mxu0 0.0
  %402 = vmatmul.mubr.f32.gmra.mxu0 %v42
  %v403 = vpop.f32.mrf.mxu0
  %v404 = vadd.f32 %v315, %v403
  %v405 = vpop.f32.mrf.mxu0
  %406 = vmatprep.mubr.f32.mxu0 0.0
  %407 = vmatmul.mubr.f32.gmra.mxu0 %v43
  %v408 = vpop.f32.mrf.mxu0
  %v409 = vadd.f32 %v315, %v408
  %v410 = vpop.f32.mrf.mxu0
  %411 = vmatprep.mubr.f32.mxu0 0.0
  %412 = vmatmul.mubr.f32.gmra.mxu0 %v44
  %v413 = vpop.f32.mrf.mxu0
  %v414 = vadd.f32 %v315, %v413
  %v415 = vpop.f32.mrf.mxu0
  %416 = vmatprep.mubr.f32.mxu0 0.0
  %417 = vmatmul.mubr.f32.gmra.mxu0 %v45
  %v418 = vpop.f32.mrf.mxu0
  %v419 = vadd.f32 %v315, %v418
  %v420 = vpop.f32.mrf.mxu0
  %421 = vmatprep.mubr.f32.mxu0 0.0
  %422 = vmatmul.mubr.f32.gmra.mxu0 %v46
  %v423 = vpop.f32.mrf.mxu0
  %v424 = vadd.f32 %v315, %v423
  %v425 = vpop.f32.mrf.mxu0
  %426 = vmatprep.mubr.f32.mxu0 0.0
  %427 = vmatmul.mubr.f32.gmra.mxu0 %v47
  %v428 = vpop.f32.mrf.mxu0
  %v429 = vadd.f32 %v315, %v428
  %v430 = vpop.f32.mrf.mxu0
  %431 = vmatprep.mubr.f32.mxu0 0.0
  %432 = vmatmul.mubr.f32.gmra.mxu0 %v48
  %v433 = vpop.f32.mrf.mxu0
  %v434 = vadd.f32 %v315, %v433
  %v435 = vpop.f32.mrf.mxu0
  %436 = vmatprep.mubr.f32.mxu0 0.0
  %437 = vmatmul.mubr.f32.gmra.mxu0 %v49
  %v438 = vpop.f32.mrf.mxu0
  %v439 = vadd.f32 %v315, %v438
  %v440 = vpop.f32.mrf.mxu0
  %441 = vmatprep.mubr.f32.mxu0 0.0
  %442 = vmatmul.mubr.f32.gmra.mxu0 %v50
  %v443 = vpop.f32.mrf.mxu0
  %v444 = vadd.f32 %v315, %v443
  %v445 = vpop.f32.mrf.mxu0
  %446 = vmatprep.mubr.f32.mxu0 0.0
  %447 = vmatmul.mubr.f32.gmra.mxu0 %v51
  %v448 = vpop.f32.mrf.mxu0
  %v449 = vadd.f32 %v315, %v448
  %v450 = vpop.f32.mrf.mxu0
  %451 = vmatprep.mubr.f32.mxu0 0.0
  %452 = vmatmul.mubr.f32.gmra.mxu0 %v52
  %v453 = vpop.f32.mrf.mxu0
  %v454 = vadd.f32 %v315, %v453
  %v455 = vpop.f32.mrf.mxu0
  %456 = vmatprep.mubr.f32.mxu0 0.0
  %457 = vmatmul.mubr.f32.gmra.mxu0 %v53
  %v458 = vpop.f32.mrf.mxu0
  %v459 = vadd.f32 %v315, %v458
  %v460 = vpop.f32.mrf.mxu0
  %461 = vmatprep.mubr.f32.mxu0 0.0
  %462 = vmatmul.mubr.f32.gmra.mxu0 %v54
  %v463 = vpop.f32.mrf.mxu0
  %v464 = vadd.f32 %v315, %v463
  %v465 = vpop.f32.mrf.mxu0
  %466 = vmatprep.mubr.f32.mxu0 0.0
  %467 = vmatmul.mubr.f32.gmra.mxu0 %v55
  %v468 = vpop.f32.mrf.mxu0
  %v469 = vadd.f32 %v315, %v468
  %v470 = vpop.f32.mrf.mxu0
  %471 = vmatprep.mubr.f32.mxu0 0.0
  %472 = vmatmul.mubr.f32.gmra.mxu0 %v56
  %v473 = vpop.f32.mrf.mxu0
  %v474 = vadd.f32 %v315, %v473
  %v475 = vpop.f32.mrf.mxu0
  %476 = vmatprep.mubr.f32.mxu0 0.0
  %477 = vmatmul.mubr.f32.gmra.mxu0 %v57
  %v478 = vpop.f32.mrf.mxu0
  %v479 = vadd.f32 %v315, %v478
  %v480 = vpop.f32.mrf.mxu0
  %481 = vmatprep.mubr.f32.mxu0 0.0
  %482 = vmatmul.mubr.f32.gmra.mxu0 %v58
  %v483 = vpop.f32.mrf.mxu0
  %v484 = vadd.f32 %v315, %v483
  %v485 = vpop.f32.mrf.mxu0
  %486 = vmatprep.mubr.f32.mxu0 0.0
  %487 = vmatmul.mubr.f32.gmra.mxu0 %v59
  %v488 = vpop.f32.mrf.mxu0
  %v489 = vadd.f32 %v315, %v488
  %v490 = vpop.f32.mrf.mxu0
  %491 = vmatprep.mubr.f32.mxu0 0.0
  %492 = vmatmul.mubr.f32.gmra.mxu0 %v60
  %v493 = vpop.f32.mrf.mxu0
  %v494 = vadd.f32 %v315, %v493
  %v495 = vpop.f32.mrf.mxu0
  %496 = vmatprep.mubr.f32.mxu0 0.0
  %497 = vmatmul.mubr.f32.gmra.mxu0 %v61
  %v498 = vpop.f32.mrf.mxu0
  %v499 = vadd.f32 %v315, %v498
  %v500 = vpop.f32.mrf.mxu0
  %501 = vmatprep.mubr.f32.mxu0 0.0
  %502 = vmatmul.mubr.f32.gmra.mxu0 %v62
  %v503 = vpop.f32.mrf.mxu0
  %v504 = vadd.f32 %v315, %v503
  %v505 = vpop.f32.mrf.mxu0
  %506 = vmatprep.mubr.f32.mxu0 0.0
  %507 = vmatmul.mubr.f32.gmra.mxu0 %v63
  %v508 = vpop.f32.mrf.mxu0
  %v509 = vadd.f32 %v315, %v508
  %v510 = vpop.f32.mrf.mxu0
  %511 = vmatprep.mubr.f32.mxu0 0.0
  %512 = vmatmul.mubr.f32.gmra.mxu0 %v64
  %v513 = vpop.f32.mrf.mxu0
  %v514 = vadd.f32 %v315, %v513
  %v515 = vpop.f32.mrf.mxu0
  %516 = vmatprep.mubr.f32.mxu0 0.0
  %517 = vmatmul.mubr.f32.gmra.mxu0 %v65
  %v518 = vpop.f32.mrf.mxu0
  %v519 = vadd.f32 %v315, %v518
  %v520 = vpop.f32.mrf.mxu0
  %521 = vmatprep.mubr.f32.mxu0 0.0
  %522 = vmatmul.mubr.f32.gmra.mxu0 %v66
  %v523 = vpop.f32.mrf.mxu0
  %v524 = vadd.f32 %v315, %v523
  %v525 = vpop.f32.mrf.mxu0
  %526 = vmatprep.mubr.f32.mxu0 0.0
  %527 = vmatmul.mubr.f32.gmra.mxu0 %v67
  %v528 = vpop.f32.mrf.mxu0
  %v529 = vadd.f32 %v315, %v528
  %v530 = vpop.f32.mrf.mxu0
  %531 = vmatprep.mubr.f32.mxu0 0.0
  %532 = vmatmul.mubr.f32.gmra.mxu0 %v68
  %v533 = vpop.f32.mrf.mxu0
  %v534 = vadd.f32 %v315, %v533
  %v535 = vpop.f32.mrf.mxu0
  %536 = vmatprep.mubr.f32.mxu0 0.0
  %537 = vmatmul.mubr.f32.gmra.mxu0 %v69
  %v538 = vpop.f32.mrf.mxu0
  %v539 = vadd.f32 %v315, %v538
  %v540 = vpop.f32.mrf.mxu0
  %541 = vmatprep.mubr.f32.mxu0 0.0
  %542 = vmatmul.mubr.f32.gmra.mxu0 %v70
  %v543 = vpop.f32.mrf.mxu0
  %v544 = vadd.f32 %v315, %v543
  %v545 = vpop.f32.mrf.mxu0
  %546 = vmatprep.mubr.f32.mxu0 0.0
  %547 = vmatmul.mubr.f32.gmra.mxu0 %v71
  %v548 = vpop.f32.mrf.mxu0
  %v549 = vadd.f32 %v315, %v548
  %v550 = vpop.f32.mrf.mxu0
  %551 = vmatprep.mubr.f32.mxu0 0.0
  %552 = vmatmul.mubr.f32.gmra.mxu0 %v72
  %v553 = vpop.f32.mrf.mxu0
  %v554 = vadd.f32 %v315, %v553
  %v555 = vpop.f32.mrf.mxu0
  %556 = vmatprep.mubr.f32.mxu0 0.0
  %557 = vmatmul.mubr.f32.gmra.mxu0 %v73
  %v558 = vpop.f32.mrf.mxu0
  %v559 = vadd.f32 %v315, %v558
  %v560 = vpop.f32.mrf.mxu0
  %561 = vmatprep.mubr.f32.mxu0 0.0
  %562 = vmatmul.mubr.f32.gmra.mxu0 %v74
  %v563 = vpop.f32.mrf.mxu0
  %v564 = vadd.f32 %v315, %v563
  %v565 = vpop.f32.mrf.mxu0
  %566 = vmatprep.mubr.f32.mxu0 0.0
  %567 = vmatmul.mubr.f32.gmra.mxu0 %v75
  %v568 = vpop.f32.mrf.mxu0
  %v569 = vadd.f32 %v315, %v568
  %v570 = vpop.f32.mrf.mxu0
  %571 = vmatprep.mubr.f32.mxu0 0.0
  %572 = vmatmul.mubr.f32.gmra.mxu0 %v76
  %v573 = vpop.f32.mrf.mxu0
  %v574 = vadd.f32 %v315, %v573
  %v575 = vpop.f32.mrf.mxu0
  %576 = vmatprep.mubr.f32.mxu0 0.0
  %577 = vmatmul.mubr.f32.gmra.mxu0 %v77
  %v578 = vpop.f32.mrf.mxu0
  %v579 = vadd.f32 %v315, %v578
  %v580 = vpop.f32.mrf.mxu0
  %581 = vmatprep.mubr.f32.mxu0 0.0
  %582 = vmatmul.mubr.f32.gmra.mxu0 %v78
  %v583 = vpop.f32.mrf.mxu0
  %v584 = vadd.f32 %v315, %v583
  %v585 = vpop.f32.mrf.mxu0
  %586 = vmatprep.mubr.f32.mxu0 0.0
  %587 = vmatmul.mubr.f32.gmra.mxu0 %v79
  %v588 = vpop.f32.mrf.mxu0
  %v589 = vadd.f32 %v315, %v588
  %v590 = vpop.f32.mrf.mxu0
  %591 = vmatprep.mubr.f32.mxu0 0.0
  %592 = vmatmul.mubr.f32.gmra.mxu0 %v80
  %v593 = vpop.f32.mrf.mxu0
  %v594 = vadd.f32 %v315, %v593
  %v595 = vpop.f32.mrf.mxu0
  %596 = vmatprep.mubr.f32.mxu0 0.0
  %597 = vmatmul.mubr.f32.gmra.mxu0 %v81
  %v598 = vpop.f32.mrf.mxu0
  %v599 = vadd.f32 %v315, %v598
  %v600 = vpop.f32.mrf.mxu0
  %601 = vmatprep.mubr.f32.mxu0 0.0
  %602 = vmatmul.mubr.f32.gmra.mxu0 %v82
  %v603 = vpop.f32.mrf.mxu0
  %v604 = vadd.f32 %v315, %v603
  %v605 = vpop.f32.mrf.mxu0
  %606 = vmatprep.mubr.f32.mxu0 0.0
  %607 = vmatmul.mubr.f32.gmra.mxu0 %v83
  %v608 = vpop.f32.mrf.mxu0
  %v609 = vadd.f32 %v315, %v608
  %v610 = vpop.f32.mrf.mxu0
  %611 = vmatprep.mubr.f32.mxu0 0.0
  %612 = vmatmul.mubr.f32.gmra.mxu0 %v84
  %v613 = vpop.f32.mrf.mxu0
  %v614 = vadd.f32 %v315, %v613
  %v615 = vpop.f32.mrf.mxu0
  %616 = vmatprep.mubr.f32.mxu0 0.0
  %617 = vmatmul.mubr.f32.gmra.mxu0 %v85
  %v618 = vpop.f32.mrf.mxu0
  %v619 = vadd.f32 %v315, %v618
  %v620 = vpop.f32.mrf.mxu0
  %621 = vmatprep.mubr.f32.mxu0 0.0
  %622 = vmatmul.mubr.f32.gmra.mxu0 %v86
  %v623 = vpop.f32.mrf.mxu0
  %v624 = vadd.f32 %v315, %v623
  %v625 = vpop.f32.mrf.mxu0
  %626 = vmatprep.mubr.f32.mxu0 0.0
  %627 = vmatmul.mubr.f32.gmra.mxu0 %v87
  %v628 = vpop.f32.mrf.mxu0
  %v629 = vadd.f32 %v315, %v628
  %v630 = vpop.f32.mrf.mxu0
  %631 = vmatprep.mubr.f32.mxu0 0.0
  %632 = vmatmul.mubr.f32.gmra.mxu0 %v88
  %v633 = vpop.f32.mrf.mxu0
  %v634 = vadd.f32 %v315, %v633
  %v635 = vpop.f32.mrf.mxu0
  %636 = vmatprep.mubr.f32.mxu0 0.0
  %637 = vmatmul.mubr.f32.gmra.mxu0 %v89
  %v638 = vpop.f32.mrf.mxu0
  %v639 = vadd.f32 %v315, %v638
  %v640 = vpop.f32.mrf.mxu0
  %641 = vmatprep.mubr.f32.mxu0 0.0
  %642 = vmatmul.mubr.f32.gmra.mxu0 %v90
  %v643 = vpop.f32.mrf.mxu0
  %v644 = vadd.f32 %v315, %v643
  %v645 = vpop.f32.mrf.mxu0
  %646 = vmatprep.mubr.f32.mxu0 0.0
  %647 = vmatmul.mubr.f32.gmra.mxu0 %v91
  %v648 = vpop.f32.mrf.mxu0
  %v649 = vadd.f32 %v315, %v648
  %v650 = vpop.f32.mrf.mxu0
  %651 = vmatprep.mubr.f32.mxu0 0.0
  %652 = vmatmul.mubr.f32.gmra.mxu0 %v92
  %v653 = vpop.f32.mrf.mxu0
  %v654 = vadd.f32 %v315, %v653
  %v655 = vpop.f32.mrf.mxu0
  %656 = vmatprep.mubr.f32.mxu0 0.0
  %657 = vmatmul.mubr.f32.gmra.mxu0 %v93
  %v658 = vpop.f32.mrf.mxu0
  %v659 = vadd.f32 %v315, %v658
  %v660 = vpop.f32.mrf.mxu0
  %661 = vmatprep.mubr.f32.mxu0 0.0
  %662 = vmatmul.mubr.f32.gmra.mxu0 %v94
  %v663 = vpop.f32.mrf.mxu0
  %v664 = vadd.f32 %v315, %v663
  %v665 = vpop.f32.mrf.mxu0
  %666 = vmatprep.mubr.f32.mxu0 0.0
  %667 = vmatmul.mubr.f32.gmra.mxu0 %v95
  %v668 = vpop.f32.mrf.mxu0
  %v669 = vadd.f32 %v315, %v668
  %v670 = vpop.f32.mrf.mxu0
  %671 = vmatprep.mubr.f32.mxu0 0.0
  %672 = vmatmul.mubr.f32.gmra.mxu0 %v96
  %v673 = vpop.f32.mrf.mxu0
  %v674 = vadd.f32 %v315, %v673
  %v675 = vpop.f32.mrf.mxu0
  %676 = vmatprep.mubr.f32.mxu0 0.0
  %677 = vmatmul.mubr.f32.gmra.mxu0 %v97
  %v678 = vpop.f32.mrf.mxu0
  %v679 = vadd.f32 %v315, %v678
  %v680 = vpop.f32.mrf.mxu0
  %681 = vmatprep.mubr.f32.mxu0 0.0
  %682 = vmatmul.mubr.f32.gmra.mxu0 %v98
  %v683 = vpop.f32.mrf.mxu0
  %v684 = vadd.f32 %v315, %v683
  %v685 = vpop.f32.mrf.mxu0
  %686 = vmatprep.mubr.f32.mxu0 0.0
  %687 = vmatmul.mubr.f32.gmra.mxu0 %v99
  %v688 = vpop.f32.mrf.mxu0
  %v689 = vadd.f32 %v315, %v688
  %v690 = vpop.f32.mrf.mxu0
  %691 = vmatprep.mubr.f32.mxu0 0.0
  %692 = vmatmul.mubr.f32.gmra.mxu0 %v100
  %v693 = vpop.f32.mrf.mxu0
  %v694 = vadd.f32 %v315, %v693
  %v695 = vpop.f32.mrf.mxu0
  %696 = vmatprep.mubr.f32.mxu0 0.0
  %697 = vmatmul.mubr.f32.gmra.mxu0 %v101
  %v698 = vpop.f32.mrf.mxu0
  %v699 = vadd.f32 %v315, %v698
  %v700 = vpop.f32.mrf.mxu0
  %701 = vmatprep.mubr.f32.mxu0 0.0
  %702 = vmatmul.mubr.f32.gmra.mxu0 %v102
  %v703 = vpop.f32.mrf.mxu0
  %v704 = vadd.f32 %v315, %v703
  %v705 = vpop.f32.mrf.mxu0
  %706 = vmatprep.mubr.f32.mxu0 0.0
  %707 = vmatmul.mubr.f32.gmra.mxu0 %v103
  %v708 = vpop.f32.mrf.mxu0
  %v709 = vadd.f32 %v315, %v708
  %v710 = vpop.f32.mrf.mxu0
  %711 = vmatprep.mubr.f32.mxu0 0.0
  %712 = vmatmul.mubr.f32.gmra.mxu0 %v104
  %v713 = vpop.f32.mrf.mxu0
  %v714 = vadd.f32 %v315, %v713
  %v715 = vpop.f32.mrf.mxu0
  %716 = vmatprep.mubr.f32.mxu0 0.0
  %717 = vmatmul.mubr.f32.gmra.mxu0 %v105
  %v718 = vpop.f32.mrf.mxu0
  %v719 = vadd.f32 %v315, %v718
  %v720 = vpop.f32.mrf.mxu0
  %721 = vmatprep.mubr.f32.mxu0 0.0
  %722 = vmatmul.mubr.f32.gmra.mxu0 %v106
  %v723 = vpop.f32.mrf.mxu0
  %v724 = vadd.f32 %v315, %v723
  %v725 = vpop.f32.mrf.mxu0
  %726 = vmatprep.mubr.f32.mxu0 0.0
  %727 = vmatmul.mubr.f32.gmra.mxu0 %v107
  %v728 = vpop.f32.mrf.mxu0
  %v729 = vadd.f32 %v315, %v728
  %v730 = vpop.f32.mrf.mxu0
  %731 = vmatprep.mubr.f32.mxu0 0.0
  %732 = vmatmul.mubr.f32.gmra.mxu0 %v108
  %v733 = vpop.f32.mrf.mxu0
  %v734 = vadd.f32 %v315, %v733
  %v735 = vpop.f32.mrf.mxu0
  %736 = vmatprep.mubr.f32.mxu0 0.0
  %737 = vmatmul.mubr.f32.gmra.mxu0 %v109
  %v738 = vpop.f32.mrf.mxu0
  %v739 = vadd.f32 %v315, %v738
  %v740 = vpop.f32.mrf.mxu0
  %741 = vmatprep.mubr.f32.mxu0 0.0
  %742 = vmatmul.mubr.f32.gmra.mxu0 %v110
  %v743 = vpop.f32.mrf.mxu0
  %v744 = vadd.f32 %v315, %v743
  %v745 = vpop.f32.mrf.mxu0
  %746 = vmatprep.mubr.f32.mxu0 0.0
  %747 = vmatmul.mubr.f32.gmra.mxu0 %v111
  %v748 = vpop.f32.mrf.mxu0
  %v749 = vadd.f32 %v315, %v748
  %v750 = vpop.f32.mrf.mxu0
  %751 = vmatprep.mubr.f32.mxu0 0.0
  %752 = vmatmul.mubr.f32.gmra.mxu0 %v112
  %v753 = vpop.f32.mrf.mxu0
  %v754 = vadd.f32 %v315, %v753
  %v755 = vpop.f32.mrf.mxu0
  %756 = vmatprep.mubr.f32.mxu0 0.0
  %757 = vmatmul.mubr.f32.gmra.mxu0 %v113
  %v758 = vpop.f32.mrf.mxu0
  %v759 = vadd.f32 %v315, %v758
  %v760 = vpop.f32.mrf.mxu0
  %761 = vmatprep.mubr.f32.mxu0 0.0
  %762 = vmatmul.mubr.f32.gmra.mxu0 %v114
  %v763 = vpop.f32.mrf.mxu0
  %v764 = vadd.f32 %v315, %v763
  %v765 = vpop.f32.mrf.mxu0
  %766 = vmatprep.mubr.f32.mxu0 0.0
  %767 = vmatmul.mubr.f32.gmra.mxu0 %v115
  %v768 = vpop.f32.mrf.mxu0
  %v769 = vadd.f32 %v315, %v768
  %v770 = vpop.f32.mrf.mxu0
  %771 = vmatprep.mubr.f32.mxu0 0.0
  %772 = vmatmul.mubr.f32.gmra.mxu0 %v116
  %v773 = vpop.f32.mrf.mxu0
  %v774 = vadd.f32 %v315, %v773
  %v775 = vpop.f32.mrf.mxu0
  %776 = vmatprep.mubr.f32.mxu0 0.0
  %777 = vmatmul.mubr.f32.gmra.mxu0 %v117
  %v778 = vpop.f32.mrf.mxu0
  %v779 = vadd.f32 %v315, %v778
  %v780 = vpop.f32.mrf.mxu0
  %781 = vmatprep.mubr.f32.mxu0 0.0
  %782 = vmatmul.mubr.f32.gmra.mxu0 %v118
  %v783 = vpop.f32.mrf.mxu0
  %v784 = vadd.f32 %v315, %v783
  %v785 = vpop.f32.mrf.mxu0
  %786 = vmatprep.mubr.f32.mxu0 0.0
  %787 = vmatmul.mubr.f32.gmra.mxu0 %v119
  %v788 = vpop.f32.mrf.mxu0
  %v789 = vadd.f32 %v315, %v788
  %v790 = vpop.f32.mrf.mxu0
  %791 = vmatprep.mubr.f32.mxu0 0.0
  %792 = vmatmul.mubr.f32.gmra.mxu0 %v120
  %v793 = vpop.f32.mrf.mxu0
  %v794 = vadd.f32 %v315, %v793
  %v795 = vpop.f32.mrf.mxu0
  %796 = vmatprep.mubr.f32.mxu0 0.0
  %797 = vmatmul.mubr.f32.gmra.mxu0 %v121
  %v798 = vpop.f32.mrf.mxu0
  %v799 = vadd.f32 %v315, %v798
  %v800 = vpop.f32.mrf.mxu0
  %801 = vmatprep.mubr.f32.mxu0 0.0
  %802 = vmatmul.mubr.f32.gmra.mxu0 %v122
  %v803 = vpop.f32.mrf.mxu0
  %v804 = vadd.f32 %v315, %v803
  %v805 = vpop.f32.mrf.mxu0
  %806 = vmatprep.mubr.f32.mxu0 0.0
  %807 = vmatmul.mubr.f32.gmra.mxu0 %v123
  %v808 = vpop.f32.mrf.mxu0
  %v809 = vadd.f32 %v315, %v808
  %v810 = vpop.f32.mrf.mxu0
  %811 = vmatprep.mubr.f32.mxu0 0.0
  %812 = vmatmul.mubr.f32.gmra.mxu0 %v124
  %v813 = vpop.f32.mrf.mxu0
  %v814 = vadd.f32 %v315, %v813
  %v815 = vpop.f32.mrf.mxu0
  %816 = vmatprep.mubr.f32.mxu0 0.0
  %817 = vmatmul.mubr.f32.gmra.mxu0 %v125
  %v818 = vpop.f32.mrf.mxu0
  %v819 = vadd.f32 %v315, %v818
  %v820 = vpop.f32.mrf.mxu0
  %821 = vmatprep.mubr.f32.mxu0 0.0
  %822 = vmatmul.mubr.f32.gmra.mxu0 %v126
  %v823 = vpop.f32.mrf.mxu0
  %v824 = vadd.f32 %v315, %v823
  %v825 = vpop.f32.mrf.mxu0
  %826 = vmatprep.mubr.f32.mxu0 0.0
  %827 = vmatmul.mubr.f32.gmra.mxu0 %v127
  %v828 = vpop.f32.mrf.mxu0
  %v829 = vadd.f32 %v315, %v828
  %v830 = vpop.f32.mrf.mxu0
  %831 = vmatprep.mubr.f32.mxu0 0.0
  %832 = vmatmul.mubr.f32.gmra.mxu0 %v128
  %v833 = vpop.f32.mrf.mxu0
  %v834 = vadd.f32 %v315, %v833
  %v835 = vpop.f32.mrf.mxu0
  %836 = vmatprep.mubr.f32.mxu0 0.0
  %837 = vmatmul.mubr.f32.gmra.mxu0 %v129
  %v838 = vpop.f32.mrf.mxu0
  %v839 = vadd.f32 %v315, %v838
  %v840 = vpop.f32.mrf.mxu0
  %841 = vmatprep.mubr.f32.mxu0 0.0
  %842 = vmatmul.mubr.f32.gmra.mxu0 %v130
  %v843 = vpop.f32.mrf.mxu0
  %v844 = vadd.f32 %v315, %v843
  %v845 = vpop.f32.mrf.mxu0
  %846 = vmatprep.mubr.f32.mxu0 0.0
  %847 = vmatmul.mubr.f32.gmra.mxu0 %v131
  %v848 = vpop.f32.mrf.mxu0
  %v849 = vadd.f32 %v315, %v848
  %v850 = vpop.f32.mrf.mxu0
  %851 = vmatprep.mubr.f32.mxu0 0.0
  %852 = vmatmul.mubr.f32.gmra.mxu0 %v132
  %v853 = vpop.f32.mrf.mxu0
  %v854 = vadd.f32 %v315, %v853
  %v855 = vpop.f32.mrf.mxu0
  %856 = vmatprep.mubr.f32.mxu0 0.0
  %857 = vmatmul.mubr.f32.gmra.mxu0 %v133
  %v858 = vpop.f32.mrf.mxu0
  %v859 = vadd.f32 %v315, %v858
  %v860 = vpop.f32.mrf.mxu0
  %861 = vmatprep.mubr.f32.mxu0 0.0
  %862 = vmatmul.mubr.f32.gmra.mxu0 %v134
  %v863 = vpop.f32.mrf.mxu0
  %v864 = vadd.f32 %v315, %v863
  %v865 = vpop.f32.mrf.mxu0
  %866 = vmatprep.mubr.f32.mxu0 0.0
  %867 = vmatmul.mubr.f32.gmra.mxu0 %v135
  %v868 = vpop.f32.mrf.mxu0
  %v869 = vadd.f32 %v315, %v868
  %v870 = vpop.f32.mrf.mxu0
  %871 = vmatprep.mubr.f32.mxu0 0.0
  %872 = vmatmul.mubr.f32.gmra.mxu0 %v136
  %v873 = vpop.f32.mrf.mxu0
  %v874 = vadd.f32 %v315, %v873
  %v875 = vpop.f32.mrf.mxu0
  %876 = vmatprep.mubr.f32.mxu0 0.0
  %877 = vmatmul.mubr.f32.gmra.mxu0 %v137
  %v878 = vpop.f32.mrf.mxu0
  %v879 = vadd.f32 %v315, %v878
  %v880 = vpop.f32.mrf.mxu0
  %881 = vmatprep.mubr.f32.mxu0 0.0
  %882 = vmatmul.mubr.f32.gmra.mxu0 %v138
  %v883 = vpop.f32.mrf.mxu0
  %v884 = vadd.f32 %v315, %v883
  %v885 = vpop.f32.mrf.mxu0
  %886 = vmatprep.mubr.f32.mxu0 0.0
  %887 = vmatmul.mubr.f32.gmra.mxu0 %v139
  %v888 = vpop.f32.mrf.mxu0
  %v889 = vadd.f32 %v315, %v888
  %v890 = vpop.f32.mrf.mxu0
  %891 = vmatprep.mubr.f32.mxu0 0.0
  %892 = vmatmul.mubr.f32.gmra.mxu0 %v140
  %v893 = vpop.f32.mrf.mxu0
  %v894 = vadd.f32 %v315, %v893
  %v895 = vpop.f32.mrf.mxu0
  %896 = vmatprep.mubr.f32.mxu0 0.0
  %897 = vmatmul.mubr.f32.gmra.mxu0 %v141
  %v898 = vpop.f32.mrf.mxu0
  %v899 = vadd.f32 %v315, %v898
  %v900 = vpop.f32.mrf.mxu0
  %901 = vmatprep.mubr.f32.mxu0 0.0
  %902 = vmatmul.mubr.f32.gmra.mxu0 %v142
  %v903 = vpop.f32.mrf.mxu0
  %v904 = vadd.f32 %v315, %v903
  %v905 = vpop.f32.mrf.mxu0
  %906 = vmatprep.mubr.f32.mxu0 0.0
  %907 = vmatmul.mubr.f32.gmra.mxu0 %v143
  %v908 = vpop.f32.mrf.mxu0
  %v909 = vadd.f32 %v315, %v908
  %v910 = vpop.f32.mrf.mxu0
  %911 = vmatprep.mubr.f32.mxu0 0.0
  %912 = vmatmul.mubr.f32.gmra.mxu0 %v144
  %v913 = vpop.f32.mrf.mxu0
  %v914 = vadd.f32 %v315, %v913
  %v915 = vpop.f32.mrf.mxu0
  %916 = vmatprep.mubr.f32.mxu0 0.0
  %917 = vmatmul.mubr.f32.gmra.mxu0 %v145
  %v918 = vpop.f32.mrf.mxu0
  %v919 = vadd.f32 %v315, %v918
  %v920 = vpop.f32.mrf.mxu0
  %921 = vmatprep.mubr.f32.mxu0 0.0
  %922 = vmatmul.mubr.f32.gmra.mxu0 %v146
  %v923 = vpop.f32.mrf.mxu0
  %v924 = vadd.f32 %v315, %v923
  %v925 = vpop.f32.mrf.mxu0
  %926 = vmatprep.mubr.f32.mxu0 0.0
  %927 = vmatmul.mubr.f32.gmra.mxu0 %v147
  %v928 = vpop.f32.mrf.mxu0
  %v929 = vadd.f32 %v315, %v928
  %v930 = vpop.f32.mrf.mxu0
  %931 = vmatprep.mubr.f32.mxu0 0.0
  %932 = vmatmul.mubr.f32.gmra.mxu0 %v148
  %v933 = vpop.f32.mrf.mxu0
  %v934 = vadd.f32 %v315, %v933
  %v935 = vpop.f32.mrf.mxu0
  %936 = vmatprep.mubr.f32.mxu0 0.0
  %937 = vmatmul.mubr.f32.gmra.mxu0 %v149
  %v938 = vpop.f32.mrf.mxu0
  %v939 = vadd.f32 %v315, %v938
  %v940 = vpop.f32.mrf.mxu0
  %941 = vmatprep.mubr.f32.mxu0 0.0
  %942 = vmatmul.mubr.f32.gmra.mxu0 %v150
  %v943 = vpop.f32.mrf.mxu0
  %v944 = vadd.f32 %v315, %v943
  %v945 = vpop.f32.mrf.mxu0
  %946 = vmatprep.mubr.f32.mxu0 0.0
  %947 = vmatmul.mubr.f32.gmra.mxu0 %v151
  %v948 = vpop.f32.mrf.mxu0
  %v949 = vadd.f32 %v315, %v948
  %v950 = vpop.f32.mrf.mxu0
  %951 = vmatprep.mubr.f32.mxu0 0.0
  %952 = vmatmul.mubr.f32.gmra.mxu0 %v152
  %v953 = vpop.f32.mrf.mxu0
  %v954 = vadd.f32 %v315, %v953
  %v955 = vpop.f32.mrf.mxu0
  %956 = vmatprep.mubr.f32.mxu0 0.0
  %957 = vmatmul.mubr.f32.gmra.mxu0 %v153
  %v958 = vpop.f32.mrf.mxu0
  %v959 = vadd.f32 %v315, %v958
  %v960 = vpop.f32.mrf.mxu0
  %961 = vmatprep.mubr.f32.mxu0 0.0
  %962 = vmatmul.mubr.f32.gmra.mxu0 %v154
  %v963 = vpop.f32.mrf.mxu0
  %v964 = vadd.f32 %v315, %v963
  %v965 = vpop.f32.mrf.mxu0
  %966 = vmatprep.mubr.f32.mxu0 0.0
  %967 = vmatmul.mubr.f32.gmra.mxu0 %v155
  %v968 = vpop.f32.mrf.mxu0
  %v969 = vadd.f32 %v315, %v968
  %v970 = vpop.f32.mrf.mxu0
  %971 = vmatprep.mubr.f32.mxu0 0.0
  %972 = vmatmul.mubr.f32.gmra.mxu0 %v156
  %v973 = vpop.f32.mrf.mxu0
  %v974 = vadd.f32 %v315, %v973
  %v975 = vpop.f32.mrf.mxu0
  %976 = vmatprep.mubr.f32.mxu0 0.0
  %977 = vmatmul.mubr.f32.gmra.mxu0 %v157
  %v978 = vpop.f32.mrf.mxu0
  %v979 = vadd.f32 %v315, %v978
  %v980 = vpop.f32.mrf.mxu0
  %981 = vmatprep.mubr.f32.mxu0 0.0
  %982 = vmatmul.mubr.f32.gmra.mxu0 %v158
  %v983 = vpop.f32.mrf.mxu0
  %v984 = vadd.f32 %v315, %v983
  %v985 = vpop.f32.mrf.mxu0
  %986 = vmatprep.mubr.f32.mxu0 0.0
  %987 = vmatmul.mubr.f32.gmra.mxu0 %v159
  %v988 = vpop.f32.mrf.mxu0
  %v989 = vadd.f32 %v315, %v988
  %v990 = vpop.f32.mrf.mxu0
  %991 = vmatprep.mubr.f32.mxu0 0.0
  %992 = vmatmul.mubr.f32.gmra.mxu0 %v160
  %v993 = vpop.f32.mrf.mxu0
  %v994 = vadd.f32 %v315, %v993
  %v995 = vpop.f32.mrf.mxu0
  %996 = vmatprep.mubr.f32.mxu0 0.0
  %997 = vmatmul.mubr.f32.gmra.mxu0 %v161
  %v998 = vpop.f32.mrf.mxu0
  %v999 = vadd.f32 %v315, %v998
  %v1000 = vpop.f32.mrf.mxu0
  %1001 = vmatprep.mubr.f32.mxu0 0.0
  %1002 = vmatmul.mubr.f32.gmra.mxu0 %v162
  %v1003 = vpop.f32.mrf.mxu0
  %v1004 = vadd.f32 %v315, %v1003
  %v1005 = vpop.f32.mrf.mxu0
  %1006 = vmatprep.mubr.f32.mxu0 0.0
  %1007 = vmatmul.mubr.f32.gmra.mxu0 %v163
  %v1008 = vpop.f32.mrf.mxu0
  %v1009 = vadd.f32 %v315, %v1008
  %v1010 = vpop.f32.mrf.mxu0
  %1011 = vmatprep.mubr.f32.mxu0 0.0
  %1012 = vmatmul.mubr.f32.gmra.mxu0 %v164
  %v1013 = vpop.f32.mrf.mxu0
  %v1014 = vadd.f32 %v315, %v1013
  %v1015 = vpop.f32.mrf.mxu0
  %1016 = vmatprep.mubr.f32.mxu0 0.0
  %1017 = vmatmul.mubr.f32.gmra.mxu0 %v165
  %v1018 = vpop.f32.mrf.mxu0
  %v1019 = vadd.f32 %v315, %v1018
  %v1020 = vpop.f32.mrf.mxu0
  %1021 = vmatprep.mubr.f32.mxu0 0.0
  %1022 = vmatmul.mubr.f32.gmra.mxu0 %v166
  %v1023 = vpop.f32.mrf.mxu0
  %v1024 = vadd.f32 %v315, %v1023
  %v1025 = vpop.f32.mrf.mxu0
  %1026 = vmatprep.mubr.f32.mxu0 0.0
  %1027 = vmatmul.mubr.f32.gmra.mxu0 %v167
  %v1028 = vpop.f32.mrf.mxu0
  %v1029 = vadd.f32 %v315, %v1028
  %v1030 = vpop.f32.mrf.mxu0
  %1031 = vmatprep.mubr.f32.mxu0 0.0
  %1032 = vmatmul.mubr.f32.gmra.mxu0 %v168
  %v1033 = vpop.f32.mrf.mxu0
  %v1034 = vadd.f32 %v315, %v1033
  %v1035 = vpop.f32.mrf.mxu0
  %1036 = vmatprep.mubr.f32.mxu0 0.0
  %1037 = vmatmul.mubr.f32.gmra.mxu0 %v169
  %v1038 = vpop.f32.mrf.mxu0
  %v1039 = vadd.f32 %v315, %v1038
  %v1040 = vpop.f32.mrf.mxu0
  %1041 = vmatprep.mubr.f32.mxu0 0.0
  %1042 = vmatmul.mubr.f32.gmra.mxu0 %v170
  %v1043 = vpop.f32.mrf.mxu0
  %v1044 = vadd.f32 %v315, %v1043
  %v1045 = vpop.f32.mrf.mxu0
  %1046 = vmatprep.mubr.f32.mxu0 0.0
  %1047 = vmatmul.mubr.f32.gmra.mxu0 %v171
  %v1048 = vpop.f32.mrf.mxu0
  %v1049 = vadd.f32 %v315, %v1048
  %v1050 = vpop.f32.mrf.mxu0
  %1051 = vmatprep.mubr.f32.mxu0 0.0
  %1052 = vmatmul.mubr.f32.gmra.mxu0 %v172
  %v1053 = vpop.f32.mrf.mxu0
  %v1054 = vadd.f32 %v315, %v1053
  %v1055 = vpop.f32.mrf.mxu0
  %1056 = vmatprep.mubr.f32.mxu0 0.0
  %1057 = vmatmul.mubr.f32.gmra.mxu0 %v173
  %v1058 = vpop.f32.mrf.mxu0
  %v1059 = vadd.f32 %v315, %v1058
  %v1060 = vpop.f32.mrf.mxu0
  %1061 = vmatprep.mubr.f32.mxu0 0.0
  %1062 = vmatmul.mubr.f32.gmra.mxu0 %v174
  %v1063 = vpop.f32.mrf.mxu0
  %v1064 = vadd.f32 %v315, %v1063
  %v1065 = vpop.f32.mrf.mxu0
  %1066 = vmatprep.mubr.f32.mxu0 0.0
  %1067 = vmatmul.mubr.f32.gmra.mxu0 %v175
  %v1068 = vpop.f32.mrf.mxu0
  %v1069 = vadd.f32 %v315, %v1068
  %v1070 = vpop.f32.mrf.mxu0
  %1071 = vmatprep.mubr.f32.mxu0 0.0
  %1072 = vmatmul.mubr.f32.gmra.mxu0 %v176
  %v1073 = vpop.f32.mrf.mxu0
  %v1074 = vadd.f32 %v315, %v1073
  %v1075 = vpop.f32.mrf.mxu0
  %1076 = vmatprep.mubr.f32.mxu0 0.0
  %1077 = vmatmul.mubr.f32.gmra.mxu0 %v177
  %v1078 = vpop.f32.mrf.mxu0
  %v1079 = vadd.f32 %v315, %v1078
  %v1080 = vpop.f32.mrf.mxu0
  %1081 = vmatprep.mubr.f32.mxu0 0.0
  %1082 = vmatmul.mubr.f32.gmra.mxu0 %v178
  %v1083 = vpop.f32.mrf.mxu0
  %v1084 = vadd.f32 %v315, %v1083
  %v1085 = vpop.f32.mrf.mxu0
  %1086 = vmatprep.mubr.f32.mxu0 0.0
  %1087 = vmatmul.mubr.f32.gmra.mxu0 %v179
  %v1088 = vpop.f32.mrf.mxu0
  %v1089 = vadd.f32 %v315, %v1088
  %v1090 = vpop.f32.mrf.mxu0
  %1091 = vmatprep.mubr.f32.mxu0 0.0
  %1092 = vmatmul.mubr.f32.gmra.mxu0 %v180
  %v1093 = vpop.f32.mrf.mxu0
  %v1094 = vadd.f32 %v315, %v1093
  %v1095 = vpop.f32.mrf.mxu0
  %1096 = vmatprep.mubr.f32.mxu0 0.0
  %1097 = vmatmul.mubr.f32.gmra.mxu0 %v181
  %v1098 = vpop.f32.mrf.mxu0
  %v1099 = vadd.f32 %v315, %v1098
  %v1100 = vpop.f32.mrf.mxu0
  %1101 = vmatprep.mubr.f32.mxu0 0.0
  %1102 = vmatmul.mubr.f32.gmra.mxu0 %v182
  %v1103 = vpop.f32.mrf.mxu0
  %v1104 = vadd.f32 %v315, %v1103
  %v1105 = vpop.f32.mrf.mxu0
  %1106 = vmatprep.mubr.f32.mxu0 0.0
  %1107 = vmatmul.mubr.f32.gmra.mxu0 %v183
  %v1108 = vpop.f32.mrf.mxu0
  %v1109 = vadd.f32 %v315, %v1108
  %v1110 = vpop.f32.mrf.mxu0
  %1111 = vmatprep.mubr.f32.mxu0 0.0
  %1112 = vmatmul.mubr.f32.gmra.mxu0 %v184
  %v1113 = vpop.f32.mrf.mxu0
  %v1114 = vadd.f32 %v315, %v1113
  %v1115 = vpop.f32.mrf.mxu0
  %1116 = vmatprep.mubr.f32.mxu0 0.0
  %1117 = vmatmul.mubr.f32.gmra.mxu0 %v185
  %v1118 = vpop.f32.mrf.mxu0
  %v1119 = vadd.f32 %v315, %v1118
  %v1120 = vpop.f32.mrf.mxu0
  %1121 = vmatprep.mubr.f32.mxu0 0.0
  %1122 = vmatmul.mubr.f32.gmra.mxu0 %v186
  %v1123 = vpop.f32.mrf.mxu0
  %v1124 = vadd.f32 %v315, %v1123
  %v1125 = vpop.f32.mrf.mxu0
  %1126 = vmatprep.mubr.f32.mxu0 0.0
  %1127 = vmatmul.mubr.f32.gmra.mxu0 %v187
  %v1128 = vpop.f32.mrf.mxu0
  %v1129 = vadd.f32 %v315, %v1128
  %v1130 = vpop.f32.mrf.mxu0
  %1131 = vmatprep.mubr.f32.mxu0 0.0
  %1132 = vmatmul.mubr.f32.gmra.mxu0 %v188
  %v1133 = vpop.f32.mrf.mxu0
  %v1134 = vadd.f32 %v315, %v1133
  %v1135 = vpop.f32.mrf.mxu0
  %1136 = vmatprep.mubr.f32.mxu0 0.0
  %1137 = vmatmul.mubr.f32.gmra.mxu0 %v189
  %v1138 = vpop.f32.mrf.mxu0
  %v1139 = vadd.f32 %v315, %v1138
  %v1140 = vpop.f32.mrf.mxu0
  %1141 = vmatprep.mubr.f32.mxu0 0.0
  %1142 = vmatmul.mubr.f32.gmra.mxu0 %v190
  %v1143 = vpop.f32.mrf.mxu0
  %v1144 = vadd.f32 %v315, %v1143
  %v1145 = vpop.f32.mrf.mxu0
  %1146 = vmatprep.mubr.f32.mxu0 0.0
  %1147 = vmatmul.mubr.f32.gmra.mxu0 %v191
  %v1148 = vpop.f32.mrf.mxu0
  %v1149 = vadd.f32 %v315, %v1148
  %v1150 = vpop.f32.mrf.mxu0
  %1151 = vmatprep.mubr.f32.mxu0 0.0
  %1152 = vmatmul.mubr.f32.gmra.mxu0 %v192
  %v1153 = vpop.f32.mrf.mxu0
  %v1154 = vadd.f32 %v315, %v1153
  %v1155 = vpop.f32.mrf.mxu0
  %1156 = vmatprep.mubr.f32.mxu0 0.0
  %1157 = vmatmul.mubr.f32.gmra.mxu0 %v193
  %v1158 = vpop.f32.mrf.mxu0
  %v1159 = vadd.f32 %v315, %v1158
  %v1160 = vpop.f32.mrf.mxu0
  %1161 = vmatprep.mubr.f32.mxu0 0.0
  %1162 = vmatmul.mubr.f32.gmra.mxu0 %v194
  %v1163 = vpop.f32.mrf.mxu0
  %v1164 = vadd.f32 %v315, %v1163
  %v1165 = vpop.f32.mrf.mxu0
  %1166 = vmatprep.mubr.f32.mxu0 0.0
  %1167 = vmatmul.mubr.f32.gmra.mxu0 %v195
  %v1168 = vpop.f32.mrf.mxu0
  %v1169 = vadd.f32 %v315, %v1168
  %v1170 = vpop.f32.mrf.mxu0
  %1171 = vmatprep.mubr.f32.mxu0 0.0
  %1172 = vmatmul.mubr.f32.gmra.mxu0 %v196
  %v1173 = vpop.f32.mrf.mxu0
  %v1174 = vadd.f32 %v315, %v1173
  %v1175 = vpop.f32.mrf.mxu0
  %1176 = vmatprep.mubr.f32.mxu0 0.0
  %1177 = vmatmul.mubr.f32.gmra.mxu0 %v197
  %v1178 = vpop.f32.mrf.mxu0
  %v1179 = vadd.f32 %v315, %v1178
  %v1180 = vpop.f32.mrf.mxu0
  %1181 = vmatprep.mubr.f32.mxu0 0.0
  %1182 = vmatmul.mubr.f32.gmra.mxu0 %v198
  %v1183 = vpop.f32.mrf.mxu0
  %v1184 = vadd.f32 %v315, %v1183
  %v1185 = vpop.f32.mrf.mxu0
  %1186 = vmatprep.mubr.f32.mxu0 0.0
  %1187 = vmatmul.mubr.f32.gmra.mxu0 %v199
  %v1188 = vpop.f32.mrf.mxu0
  %v1189 = vadd.f32 %v315, %v1188
  %v1190 = vpop.f32.mrf.mxu0
  %1191 = vmatprep.mubr.f32.mxu0 0.0
  %1192 = vmatmul.mubr.f32.gmra.mxu0 %v200
  %v1193 = vpop.f32.mrf.mxu0
  %v1194 = vadd.f32 %v315, %v1193
  %v1195 = vpop.f32.mrf.mxu0
  %1196 = vmatprep.mubr.f32.mxu0 0.0
  %1197 = vmatmul.mubr.f32.gmra.mxu0 %v201
  %v1198 = vpop.f32.mrf.mxu0
  %v1199 = vadd.f32 %v315, %v1198
  %v1200 = vpop.f32.mrf.mxu0
  %1201 = vmatprep.mubr.f32.mxu0 0.0
  %1202 = vmatmul.mubr.f32.gmra.mxu0 %v202
  %v1203 = vpop.f32.mrf.mxu0
  %v1204 = vadd.f32 %v315, %v1203
  %v1205 = vpop.f32.mrf.mxu0
  %1206 = vmatprep.mubr.f32.mxu0 0.0
  %1207 = vmatmul.mubr.f32.gmra.mxu0 %v203
  %v1208 = vpop.f32.mrf.mxu0
  %v1209 = vadd.f32 %v315, %v1208
  %v1210 = vpop.f32.mrf.mxu0
  %1211 = vmatprep.mubr.f32.mxu0 0.0
  %1212 = vmatmul.mubr.f32.gmra.mxu0 %v204
  %v1213 = vpop.f32.mrf.mxu0
  %v1214 = vadd.f32 %v315, %v1213
  %v1215 = vpop.f32.mrf.mxu0
  %1216 = vmatprep.mubr.f32.mxu0 0.0
  %1217 = vmatmul.mubr.f32.gmra.mxu0 %v205
  %v1218 = vpop.f32.mrf.mxu0
  %v1219 = vadd.f32 %v315, %v1218
  %v1220 = vpop.f32.mrf.mxu0
  %1221 = vmatprep.mubr.f32.mxu0 0.0
  %1222 = vmatmul.mubr.f32.gmra.mxu0 %v206
  %v1223 = vpop.f32.mrf.mxu0
  %v1224 = vadd.f32 %v315, %v1223
  %v1225 = vpop.f32.mrf.mxu0
  %1226 = vmatprep.mubr.f32.mxu0 0.0
  %1227 = vmatmul.mubr.f32.gmra.mxu0 %v207
  %v1228 = vpop.f32.mrf.mxu0
  %v1229 = vadd.f32 %v315, %v1228
  %v1230 = vpop.f32.mrf.mxu0
  %1231 = vmatprep.mubr.f32.mxu0 0.0
  %1232 = vmatmul.mubr.f32.gmra.mxu0 %v208
  %v1233 = vpop.f32.mrf.mxu0
  %v1234 = vadd.f32 %v315, %v1233
  %v1235 = vpop.f32.mrf.mxu0
  %1236 = vmatprep.mubr.f32.mxu0 0.0
  %1237 = vmatmul.mubr.f32.gmra.mxu0 %v209
  %v1238 = vpop.f32.mrf.mxu0
  %v1239 = vadd.f32 %v315, %v1238
  %v1240 = vpop.f32.mrf.mxu0
  %1241 = vmatprep.mubr.f32.mxu0 0.0
  %1242 = vmatmul.mubr.f32.gmra.mxu0 %v210
  %v1243 = vpop.f32.mrf.mxu0
  %v1244 = vadd.f32 %v315, %v1243
  %v1245 = vpop.f32.mrf.mxu0
  %1246 = vmatprep.mubr.f32.mxu0 0.0
  %1247 = vmatmul.mubr.f32.gmra.mxu0 %v211
  %v1248 = vpop.f32.mrf.mxu0
  %v1249 = vadd.f32 %v315, %v1248
  %v1250 = vpop.f32.mrf.mxu0
  %1251 = vmatprep.mubr.f32.mxu0 0.0
  %1252 = vmatmul.mubr.f32.gmra.mxu0 %v212
  %v1253 = vpop.f32.mrf.mxu0
  %v1254 = vadd.f32 %v315, %v1253
  %v1255 = vpop.f32.mrf.mxu0
  %1256 = vmatprep.mubr.f32.mxu0 0.0
  %1257 = vmatmul.mubr.f32.gmra.mxu0 %v213
  %v1258 = vpop.f32.mrf.mxu0
  %v1259 = vadd.f32 %v315, %v1258
  %v1260 = vpop.f32.mrf.mxu0
  %1261 = vmatprep.mubr.f32.mxu0 0.0
  %1262 = vmatmul.mubr.f32.gmra.mxu0 %v214
  %v1263 = vpop.f32.mrf.mxu0
  %v1264 = vadd.f32 %v315, %v1263
  %v1265 = vpop.f32.mrf.mxu0
  %1266 = vmatprep.mubr.f32.mxu0 0.0
  %1267 = vmatmul.mubr.f32.gmra.mxu0 %v215
  %v1268 = vpop.f32.mrf.mxu0
  %v1269 = vadd.f32 %v315, %v1268
  %v1270 = vpop.f32.mrf.mxu0
  %1271 = vmatprep.mubr.f32.mxu0 0.0
  %1272 = vmatmul.mubr.f32.gmra.mxu0 %v216
  %v1273 = vpop.f32.mrf.mxu0
  %v1274 = vadd.f32 %v315, %v1273
  %v1275 = vpop.f32.mrf.mxu0
  %1276 = vmatprep.mubr.f32.mxu0 0.0
  %1277 = vmatmul.mubr.f32.gmra.mxu0 %v217
  %v1278 = vpop.f32.mrf.mxu0
  %v1279 = vadd.f32 %v315, %v1278
  %v1280 = vpop.f32.mrf.mxu0
  %1281 = vmatprep.mubr.f32.mxu0 0.0
  %1282 = vmatmul.mubr.f32.gmra.mxu0 %v218
  %v1283 = vpop.f32.mrf.mxu0
  %v1284 = vadd.f32 %v315, %v1283
  %v1285 = vpop.f32.mrf.mxu0
  %1286 = vmatprep.mubr.f32.mxu0 0.0
  %1287 = vmatmul.mubr.f32.gmra.mxu0 %v219
  %v1288 = vpop.f32.mrf.mxu0
  %v1289 = vadd.f32 %v315, %v1288
  %v1290 = vpop.f32.mrf.mxu0
  %1291 = vmatprep.mubr.f32.mxu0 0.0
  %1292 = vmatmul.mubr.f32.gmra.mxu0 %v220
  %v1293 = vpop.f32.mrf.mxu0
  %v1294 = vadd.f32 %v315, %v1293
  %v1295 = vpop.f32.mrf.mxu0
  %1296 = vmatprep.mubr.f32.mxu0 0.0
  %1297 = vmatmul.mubr.f32.gmra.mxu0 %v221
  %v1298 = vpop.f32.mrf.mxu0
  %v1299 = vadd.f32 %v315, %v1298
  %v1300 = vpop.f32.mrf.mxu0
  %1301 = vmatprep.mubr.f32.mxu0 0.0
  %1302 = vmatmul.mubr.f32.gmra.mxu0 %v222
  %v1303 = vpop.f32.mrf.mxu0
  %v1304 = vadd.f32 %v315, %v1303
  %v1305 = vpop.f32.mrf.mxu0
  %1306 = vmatprep.mubr.f32.mxu0 0.0
  %1307 = vmatmul.mubr.f32.gmra.mxu0 %v223
  %v1308 = vpop.f32.mrf.mxu0
  %v1309 = vadd.f32 %v315, %v1308
  %v1310 = vpop.f32.mrf.mxu0
  %1311 = vmatprep.mubr.f32.mxu0 0.0
  %1312 = vmatmul.mubr.f32.gmra.mxu0 %v224
  %v1313 = vpop.f32.mrf.mxu0
  %v1314 = vadd.f32 %v315, %v1313
  %v1315 = vpop.f32.mrf.mxu0
  %1316 = vmatprep.mubr.f32.mxu0 0.0
  %1317 = vmatmul.mubr.f32.gmra.mxu0 %v225
  %v1318 = vpop.f32.mrf.mxu0
  %v1319 = vadd.f32 %v315, %v1318
  %v1320 = vpop.f32.mrf.mxu0
  %1321 = vmatprep.mubr.f32.mxu0 0.0
  %1322 = vmatmul.mubr.f32.gmra.mxu0 %v226
  %v1323 = vpop.f32.mrf.mxu0
  %v1324 = vadd.f32 %v315, %v1323
  %v1325 = vpop.f32.mrf.mxu0
  %1326 = vmatprep.mubr.f32.mxu0 0.0
  %1327 = vmatmul.mubr.f32.gmra.mxu0 %v227
  %v1328 = vpop.f32.mrf.mxu0
  %v1329 = vadd.f32 %v315, %v1328
  %v1330 = vpop.f32.mrf.mxu0
  %1331 = vmatprep.mubr.f32.mxu0 0.0
  %1332 = vmatmul.mubr.f32.gmra.mxu0 %v228
  %v1333 = vpop.f32.mrf.mxu0
  %v1334 = vadd.f32 %v315, %v1333
  %v1335 = vpop.f32.mrf.mxu0
  %1336 = vmatprep.mubr.f32.mxu0 0.0
  %1337 = vmatmul.mubr.f32.gmra.mxu0 %v229
  %v1338 = vpop.f32.mrf.mxu0
  %v1339 = vadd.f32 %v315, %v1338
  %v1340 = vpop.f32.mrf.mxu0
  %1341 = vmatprep.mubr.f32.mxu0 0.0
  %1342 = vmatmul.mubr.f32.gmra.mxu0 %v230
  %v1343 = vpop.f32.mrf.mxu0
  %v1344 = vadd.f32 %v315, %v1343
  %v1345 = vpop.f32.mrf.mxu0
  %1346 = vmatprep.mubr.f32.mxu0 0.0
  %1347 = vmatmul.mubr.f32.gmra.mxu0 %v231
  %v1348 = vpop.f32.mrf.mxu0
  %v1349 = vadd.f32 %v315, %v1348
  %v1350 = vpop.f32.mrf.mxu0
  %1351 = vmatprep.mubr.f32.mxu0 0.0
  %1352 = vmatmul.mubr.f32.gmra.mxu0 %v232
  %v1353 = vpop.f32.mrf.mxu0
  %v1354 = vadd.f32 %v315, %v1353
  %v1355 = vpop.f32.mrf.mxu0
  %1356 = vmatprep.mubr.f32.mxu0 0.0
  %1357 = vmatmul.mubr.f32.gmra.mxu0 %v233
  %v1358 = vpop.f32.mrf.mxu0
  %v1359 = vadd.f32 %v315, %v1358
  %v1360 = vpop.f32.mrf.mxu0
  %1361 = vmatprep.mubr.f32.mxu0 0.0
  %1362 = vmatmul.mubr.f32.gmra.mxu0 %v234
  %v1363 = vpop.f32.mrf.mxu0
  %v1364 = vadd.f32 %v315, %v1363
  %v1365 = vpop.f32.mrf.mxu0
  %1366 = vmatprep.mubr.f32.mxu0 0.0
  %1367 = vmatmul.mubr.f32.gmra.mxu0 %v235
  %v1368 = vpop.f32.mrf.mxu0
  %v1369 = vadd.f32 %v315, %v1368
  %v1370 = vpop.f32.mrf.mxu0
  %1371 = vmatprep.mubr.f32.mxu0 0.0
  %1372 = vmatmul.mubr.f32.gmra.mxu0 %v236
  %v1373 = vpop.f32.mrf.mxu0
  %v1374 = vadd.f32 %v315, %v1373
  %v1375 = vpop.f32.mrf.mxu0
  %1376 = vmatprep.mubr.f32.mxu0 0.0
  %1377 = vmatmul.mubr.f32.gmra.mxu0 %v237
  %v1378 = vpop.f32.mrf.mxu0
  %v1379 = vadd.f32 %v315, %v1378
  %v1380 = vpop.f32.mrf.mxu0
  %1381 = vmatprep.mubr.f32.mxu0 0.0
  %1382 = vmatmul.mubr.f32.gmra.mxu0 %v238
  %v1383 = vpop.f32.mrf.mxu0
  %v1384 = vadd.f32 %v315, %v1383
  %v1385 = vpop.f32.mrf.mxu0
  %1386 = vmatprep.mubr.f32.mxu0 0.0
  %1387 = vmatmul.mubr.f32.gmra.mxu0 %v239
  %v1388 = vpop.f32.mrf.mxu0
  %v1389 = vadd.f32 %v315, %v1388
  %v1390 = vpop.f32.mrf.mxu0
  %1391 = vmatprep.mubr.f32.mxu0 0.0
  %1392 = vmatmul.mubr.f32.gmra.mxu0 %v240
  %v1393 = vpop.f32.mrf.mxu0
  %v1394 = vadd.f32 %v315, %v1393
  %v1395 = vpop.f32.mrf.mxu0
  %1396 = vmatprep.mubr.f32.mxu0 0.0
  %1397 = vmatmul.mubr.f32.gmra.mxu0 %v241
  %v1398 = vpop.f32.mrf.mxu0
  %v1399 = vadd.f32 %v315, %v1398
  %v1400 = vpop.f32.mrf.mxu0
  %1401 = vmatprep.mubr.f32.mxu0 0.0
  %1402 = vmatmul.mubr.f32.gmra.mxu0 %v242
  %v1403 = vpop.f32.mrf.mxu0
  %v1404 = vadd.f32 %v315, %v1403
  %v1405 = vpop.f32.mrf.mxu0
  %1406 = vmatprep.mubr.f32.mxu0 0.0
  %1407 = vmatmul.mubr.f32.gmra.mxu0 %v243
  %v1408 = vpop.f32.mrf.mxu0
  %v1409 = vadd.f32 %v315, %v1408
  %v1410 = vpop.f32.mrf.mxu0
  %1411 = vmatprep.mubr.f32.mxu0 0.0
  %1412 = vmatmul.mubr.f32.gmra.mxu0 %v244
  %v1413 = vpop.f32.mrf.mxu0
  %v1414 = vadd.f32 %v315, %v1413
  %v1415 = vpop.f32.mrf.mxu0
  %1416 = vmatprep.mubr.f32.mxu0 0.0
  %1417 = vmatmul.mubr.f32.gmra.mxu0 %v245
  %v1418 = vpop.f32.mrf.mxu0
  %v1419 = vadd.f32 %v315, %v1418
  %v1420 = vpop.f32.mrf.mxu0
  %1421 = vmatprep.mubr.f32.mxu0 0.0
  %1422 = vmatmul.mubr.f32.gmra.mxu0 %v246
  %v1423 = vpop.f32.mrf.mxu0
  %v1424 = vadd.f32 %v315, %v1423
  %v1425 = vpop.f32.mrf.mxu0
  %1426 = vmatprep.mubr.f32.mxu0 0.0
  %1427 = vmatmul.mubr.f32.gmra.mxu0 %v247
  %v1428 = vpop.f32.mrf.mxu0
  %v1429 = vadd.f32 %v315, %v1428
  %v1430 = vpop.f32.mrf.mxu0
  %1431 = vmatprep.mubr.f32.mxu0 0.0
  %1432 = vmatmul.mubr.f32.gmra.mxu0 %v248
  %v1433 = vpop.f32.mrf.mxu0
  %v1434 = vadd.f32 %v315, %v1433
  %v1435 = vpop.f32.mrf.mxu0
  %1436 = vmatprep.mubr.f32.mxu0 0.0
  %1437 = vmatmul.mubr.f32.gmra.mxu0 %v249
  %v1438 = vpop.f32.mrf.mxu0
  %v1439 = vadd.f32 %v315, %v1438
  %v1440 = vpop.f32.mrf.mxu0
  %1441 = vmatprep.mubr.f32.mxu0 0.0
  %1442 = vmatmul.mubr.f32.gmra.mxu0 %v250
  %v1443 = vpop.f32.mrf.mxu0
  %v1444 = vadd.f32 %v315, %v1443
  %v1445 = vpop.f32.mrf.mxu0
  %1446 = vmatprep.mubr.f32.mxu0 0.0
  %1447 = vmatmul.mubr.f32.gmra.mxu0 %v251
  %v1448 = vpop.f32.mrf.mxu0
  %v1449 = vadd.f32 %v315, %v1448
  %v1450 = vpop.f32.mrf.mxu0
  %1451 = vmatprep.mubr.f32.mxu0 0.0
  %1452 = vmatmul.mubr.f32.gmra.mxu0 %v252
  %v1453 = vpop.f32.mrf.mxu0
  %v1454 = vadd.f32 %v315, %v1453
  %v1455 = vpop.f32.mrf.mxu0
  %1456 = vmatprep.mubr.f32.mxu0 0.0
  %1457 = vmatmul.mubr.f32.gmra.mxu0 %v253
  %v1458 = vpop.f32.mrf.mxu0
  %v1459 = vadd.f32 %v315, %v1458
  %v1460 = vpop.f32.mrf.mxu0
  %1461 = vmatprep.mubr.f32.mxu0 0.0
  %1462 = vmatmul.mubr.f32.gmra.mxu0 %v254
  %v1463 = vpop.f32.mrf.mxu0
  %v1464 = vadd.f32 %v315, %v1463
  %v1465 = vpop.f32.mrf.mxu0
  %1466 = vmatprep.mubr.f32.mxu0 0.0
  %1467 = vmatmul.mubr.f32.gmra.mxu0 %v255
  %v1468 = vpop.f32.mrf.mxu0
  %v1469 = vadd.f32 %v315, %v1468
  %v1470 = vpop.f32.mrf.mxu0
  %1471 = vmatprep.mubr.f32.mxu0 0.0
  %1472 = vmatmul.mubr.f32.gmra.mxu0 %v256
  %v1473 = vpop.f32.mrf.mxu0
  %v1474 = vadd.f32 %v315, %v1473
  %v1475 = vpop.f32.mrf.mxu0
  %1476 = vmatprep.mubr.f32.mxu0 0.0
  %1477 = vmatmul.mubr.f32.gmra.mxu0 %v257
  %v1478 = vpop.f32.mrf.mxu0
  %v1479 = vadd.f32 %v315, %v1478
  %v1480 = vpop.f32.mrf.mxu0
  %1481 = vmatprep.mubr.f32.mxu0 0.0
  %1482 = vmatmul.mubr.f32.gmra.mxu0 %v258
  %v1483 = vpop.f32.mrf.mxu0
  %v1484 = vadd.f32 %v315, %v1483
  %v1485 = vpop.f32.mrf.mxu0
  %1486 = vmatprep.mubr.f32.mxu0 0.0
  %1487 = vmatmul.mubr.f32.gmra.mxu0 %v259
  %v1488 = vpop.f32.mrf.mxu0
  %v1489 = vadd.f32 %v315, %v1488
  %v1490 = vpop.f32.mrf.mxu0
  %1491 = vmatprep.mubr.f32.mxu0 0.0
  %1492 = vmatmul.mubr.f32.gmra.mxu0 %v260
  %v1493 = vpop.f32.mrf.mxu0
  %v1494 = vadd.f32 %v315, %v1493
  %v1495 = vpop.f32.mrf.mxu0
  %1496 = vmatprep.mubr.f32.mxu0 0.0
  %1497 = vmatmul.mubr.f32.gmra.mxu0 %v261
  %v1498 = vpop.f32.mrf.mxu0
  %v1499 = vadd.f32 %v315, %v1498
  %v1500 = vpop.f32.mrf.mxu0
  %1501 = vmatprep.mubr.f32.mxu0 0.0
  %1502 = vmatmul.mubr.f32.gmra.mxu0 %v262
  %v1503 = vpop.f32.mrf.mxu0
  %v1504 = vadd.f32 %v315, %v1503
  %v1505 = vpop.f32.mrf.mxu0
  %1506 = vmatprep.mubr.f32.mxu0 0.0
  %1507 = vmatmul.mubr.f32.gmra.mxu0 %v263
  %v1508 = vpop.f32.mrf.mxu0
  %v1509 = vadd.f32 %v315, %v1508
  %v1510 = vpop.f32.mrf.mxu0
  %1511 = vmatprep.mubr.f32.mxu0 0.0
  %1512 = vmatmul.mubr.f32.gmra.mxu0 %v264
  %v1513 = vpop.f32.mrf.mxu0
  %v1514 = vadd.f32 %v315, %v1513
  %v1515 = vpop.f32.mrf.mxu0
  %1516 = vmatprep.mubr.f32.mxu0 0.0
  %1517 = vmatmul.mubr.f32.gmra.mxu0 %v265
  %v1518 = vpop.f32.mrf.mxu0
  %v1519 = vadd.f32 %v315, %v1518
  %v1520 = vpop.f32.mrf.mxu0
  %1521 = vmatprep.mubr.f32.mxu0 0.0
  %1522 = vmatmul.mubr.f32.gmra.mxu0 %v266
  %v1523 = vpop.f32.mrf.mxu0
  %v1524 = vadd.f32 %v315, %v1523
  %v1525 = vpop.f32.mrf.mxu0
  %1526 = vmatprep.mubr.f32.mxu0 0.0
  %1527 = vmatmul.mubr.f32.gmra.mxu0 %v267
  %v1528 = vpop.f32.mrf.mxu0
  %v1529 = vadd.f32 %v315, %v1528
  %v1530 = vpop.f32.mrf.mxu0
  %1531 = vmatprep.mubr.f32.mxu0 0.0
  %1532 = vmatmul.mubr.f32.gmra.mxu0 %v268
  %v1533 = vpop.f32.mrf.mxu0
  %v1534 = vadd.f32 %v315, %v1533
  %v1535 = vpop.f32.mrf.mxu0
  %1536 = vmatprep.mubr.f32.mxu0 0.0
  %1537 = vmatmul.mubr.f32.gmra.mxu0 %v269
  %v1538 = vpop.f32.mrf.mxu0
  %v1539 = vadd.f32 %v315, %v1538
  %v1540 = vpop.f32.mrf.mxu0
  %1541 = vmatprep.mubr.f32.mxu0 0.0
  %1542 = vmatmul.mubr.f32.gmra.mxu0 %v270
  %v1543 = vpop.f32.mrf.mxu0
  %v1544 = vadd.f32 %v315, %v1543
  %v1545 = vpop.f32.mrf.mxu0
  %1546 = vmatprep.mubr.f32.mxu0 0.0
  %1547 = vmatmul.mubr.f32.gmra.mxu0 %v271
  %v1548 = vpop.f32.mrf.mxu0
  %v1549 = vadd.f32 %v315, %v1548
  %v1550 = vpop.f32.mrf.mxu0
  %1551 = vmatprep.mubr.f32.mxu0 0.0
  %1552 = vmatmul.mubr.f32.gmra.mxu0 %v272
  %v1553 = vpop.f32.mrf.mxu0
  %v1554 = vadd.f32 %v315, %v1553
  %v1555 = vpop.f32.mrf.mxu0
  %1556 = vmatprep.mubr.f32.mxu0 0.0
  %1557 = vmatmul.mubr.f32.gmra.mxu0 %v273
  %v1558 = vpop.f32.mrf.mxu0
  %v1559 = vadd.f32 %v315, %v1558
  %v1560 = vpop.f32.mrf.mxu0
  %1561 = vmatprep.mubr.f32.mxu0 0.0
  %1562 = vmatmul.mubr.f32.gmra.mxu0 %v274
  %v1563 = vpop.f32.mrf.mxu0
  %v1564 = vadd.f32 %v315, %v1563
  %v1565 = vpop.f32.mrf.mxu0
  %1566 = vmatprep.mubr.f32.mxu0 0.0
  %1567 = vmatmul.mubr.f32.gmra.mxu0 %v275
  %v1568 = vpop.f32.mrf.mxu0
  %v1569 = vadd.f32 %v315, %v1568
  %v1570 = vpop.f32.mrf.mxu0
  %1571 = vmatprep.mubr.f32.mxu0 0.0
  %1572 = vmatmul.mubr.f32.gmra.mxu0 %v276
  %v1573 = vpop.f32.mrf.mxu0
  %v1574 = vadd.f32 %v315, %v1573
  %v1575 = vpop.f32.mrf.mxu0
  %1576 = vmatprep.mubr.f32.mxu0 0.0
  %1577 = vmatmul.mubr.f32.gmra.mxu0 %v277
  %v1578 = vpop.f32.mrf.mxu0
  %v1579 = vadd.f32 %v315, %v1578
  %v1580 = vpop.f32.mrf.mxu0
  %1581 = vmatprep.mubr.f32.mxu0 0.0
  %1582 = vmatmul.mubr.f32.gmra.mxu0 %v278
  %v1583 = vpop.f32.mrf.mxu0
  %v1584 = vadd.f32 %v315, %v1583
  %v1585 = vpop.f32.mrf.mxu0
  %1586 = vmatprep.mubr.f32.mxu0 0.0
  %1587 = vmatmul.mubr.f32.gmra.mxu0 %v279
  %v1588 = vpop.f32.mrf.mxu0
  %v1589 = vadd.f32 %v315, %v1588
  %v1590 = vpop.f32.mrf.mxu0
  %1591 = vmatprep.mubr.f32.mxu0 0.0
  %1592 = vmatmul.mubr.f32.gmra.mxu0 %v280
  %v1593 = vpop.f32.mrf.mxu0
  %v1594 = vadd.f32 %v315, %v1593
  %v1595 = vpop.f32.mrf.mxu0
  %1596 = vmatprep.mubr.f32.mxu0 0.0
  %1597 = vmatmul.mubr.f32.gmra.mxu0 %v281
  %v1598 = vpop.f32.mrf.mxu0
  %v1599 = vadd.f32 %v315, %v1598
  %v1600 = vpop.f32.mrf.mxu0
  %1601 = vmatprep.mubr.f32.mxu0 0.0
  %1602 = vmatmul.mubr.f32.gmra.mxu0 %v282
  %v1603 = vpop.f32.mrf.mxu0
  %v1604 = vadd.f32 %v315, %v1603
  %v1605 = vpop.f32.mrf.mxu0
  %1606 = vmatprep.mubr.f32.mxu0 0.0
  %1607 = vmatmul.mubr.f32.gmra.mxu0 %v283
  %v1608 = vpop.f32.mrf.mxu0
  %v1609 = vadd.f32 %v315, %v1608
  %v1610 = vpop.f32.mrf.mxu0
  %1611 = vmatprep.mubr.f32.mxu0 0.0
  %1612 = vmatmul.mubr.f32.gmra.mxu0 %v284
  %v1613 = vpop.f32.mrf.mxu0
  %v1614 = vadd.f32 %v315, %v1613
  %v1615 = vpop.f32.mrf.mxu0
  %1616 = vmatprep.mubr.f32.mxu0 0.0
  %1617 = vmatmul.mubr.f32.gmra.mxu0 %v285
  %v1618 = vpop.f32.mrf.mxu0
  %v1619 = vadd.f32 %v315, %v1618
  %v1620 = vpop.f32.mrf.mxu0
  %1621 = vmatprep.mubr.f32.mxu0 0.0
  %1622 = vmatmul.mubr.f32.gmra.mxu0 %v286
  %v1623 = vpop.f32.mrf.mxu0
  %v1624 = vadd.f32 %v315, %v1623
  %v1625 = vpop.f32.mrf.mxu0
  %1626 = vmatprep.mubr.f32.mxu0 0.0
  %1627 = vmatmul.mubr.f32.gmra.mxu0 %v287
  %v1628 = vpop.f32.mrf.mxu0
  %v1629 = vadd.f32 %v315, %v1628
  %v1630 = vpop.f32.mrf.mxu0
  %1631 = vmatprep.mubr.f32.mxu0 0.0
  %1632 = vmatmul.mubr.f32.gmra.mxu0 %v288
  %v1633 = vpop.f32.mrf.mxu0
  %v1634 = vadd.f32 %v315, %v1633
  %v1635 = vpop.f32.mrf.mxu0
  %1636 = vmatprep.mubr.f32.mxu0 0.0
  %1637 = vmatmul.mubr.f32.gmra.mxu0 %v289
  %v1638 = vpop.f32.mrf.mxu0
  %v1639 = vadd.f32 %v315, %v1638
  %v1640 = vpop.f32.mrf.mxu0
  %1641 = vmatprep.mubr.f32.mxu0 0.0
  %1642 = vmatmul.mubr.f32.gmra.mxu0 %v290
  %v1643 = vpop.f32.mrf.mxu0
  %v1644 = vadd.f32 %v315, %v1643
  %v1645 = vpop.f32.mrf.mxu0
  %1646 = vmatprep.mubr.f32.mxu0 0.0
  %1647 = vmatmul.mubr.f32.gmra.mxu0 %v291
  %v1648 = vpop.f32.mrf.mxu0
  %v1649 = vadd.f32 %v315, %v1648
  %v1650 = vpop.f32.mrf.mxu0
  %1651 = vmatprep.mubr.f32.mxu0 0.0
  %1652 = vmatmul.mubr.f32.gmra.mxu0 %v292
  %v1653 = vpop.f32.mrf.mxu0
  %v1654 = vadd.f32 %v315, %v1653
  %v1655 = vpop.f32.mrf.mxu0
  %1656 = vmatprep.mubr.f32.mxu0 0.0
  %1657 = vmatmul.mubr.f32.gmra.mxu0 %v293
  %v1658 = vpop.f32.mrf.mxu0
  %v1659 = vadd.f32 %v315, %v1658
  %v1660 = vpop.f32.mrf.mxu0
  %1661 = vdwg.mxu0
  %v1662 = vxor.u32 %v384, 2147483648
  %v1663 = vxor.u32 %v389, 2147483648
  %v1664 = vxor.u32 %v394, 2147483648
  %v1665 = vxor.u32 %v399, 2147483648
  %v1666 = vxor.u32 %v404, 2147483648
  %v1667 = vxor.u32 %v409, 2147483648
  %v1668 = vxor.u32 %v414, 2147483648
  %v1669 = vxor.u32 %v419, 2147483648
  %v1670 = vxor.u32 %v424, 2147483648
  %v1671 = vxor.u32 %v429, 2147483648
  %v1672 = vxor.u32 %v434, 2147483648
  %v1673 = vxor.u32 %v439, 2147483648
  %v1674 = vxor.u32 %v444, 2147483648
  %v1675 = vxor.u32 %v449, 2147483648
  %v1676 = vxor.u32 %v454, 2147483648
  %v1677 = vxor.u32 %v459, 2147483648
  %v1678 = vxor.u32 %v464, 2147483648
  %v1679 = vxor.u32 %v469, 2147483648
  %v1680 = vxor.u32 %v474, 2147483648
  %v1681 = vxor.u32 %v479, 2147483648
  %v1682 = vxor.u32 %v484, 2147483648
  %v1683 = vxor.u32 %v489, 2147483648
  %v1684 = vxor.u32 %v494, 2147483648
  %v1685 = vxor.u32 %v499, 2147483648
  %v1686 = vxor.u32 %v504, 2147483648
  %v1687 = vxor.u32 %v509, 2147483648
  %v1688 = vxor.u32 %v514, 2147483648
  %v1689 = vxor.u32 %v519, 2147483648
  %v1690 = vxor.u32 %v524, 2147483648
  %v1691 = vxor.u32 %v529, 2147483648
  %v1692 = vxor.u32 %v534, 2147483648
  %v1693 = vxor.u32 %v539, 2147483648
  %v1694 = vxor.u32 %v544, 2147483648
  %v1695 = vxor.u32 %v549, 2147483648
  %v1696 = vxor.u32 %v554, 2147483648
  %v1697 = vxor.u32 %v559, 2147483648
  %v1698 = vxor.u32 %v564, 2147483648
  %v1699 = vxor.u32 %v569, 2147483648
  %v1700 = vxor.u32 %v574, 2147483648
  %v1701 = vxor.u32 %v579, 2147483648
  %v1702 = vxor.u32 %v584, 2147483648
  %v1703 = vxor.u32 %v589, 2147483648
  %v1704 = vxor.u32 %v594, 2147483648
  %v1705 = vxor.u32 %v599, 2147483648
  %v1706 = vxor.u32 %v604, 2147483648
  %v1707 = vxor.u32 %v609, 2147483648
  %v1708 = vxor.u32 %v614, 2147483648
  %v1709 = vxor.u32 %v619, 2147483648
  %v1710 = vxor.u32 %v624, 2147483648
  %v1711 = vxor.u32 %v629, 2147483648
  %v1712 = vxor.u32 %v634, 2147483648
  %v1713 = vxor.u32 %v639, 2147483648
  %v1714 = vxor.u32 %v644, 2147483648
  %v1715 = vxor.u32 %v649, 2147483648
  %v1716 = vxor.u32 %v654, 2147483648
  %v1717 = vxor.u32 %v659, 2147483648
  %v1718 = vxor.u32 %v664, 2147483648
  %v1719 = vxor.u32 %v669, 2147483648
  %v1720 = vxor.u32 %v674, 2147483648
  %v1721 = vxor.u32 %v679, 2147483648
  %v1722 = vxor.u32 %v684, 2147483648
  %v1723 = vxor.u32 %v689, 2147483648
  %v1724 = vxor.u32 %v694, 2147483648
  %v1725 = vxor.u32 %v699, 2147483648
  %v1726 = vxor.u32 %v704, 2147483648
  %v1727 = vxor.u32 %v709, 2147483648
  %v1728 = vxor.u32 %v714, 2147483648
  %v1729 = vxor.u32 %v719, 2147483648
  %v1730 = vxor.u32 %v724, 2147483648
  %v1731 = vxor.u32 %v729, 2147483648
  %v1732 = vxor.u32 %v734, 2147483648
  %v1733 = vxor.u32 %v739, 2147483648
  %v1734 = vxor.u32 %v744, 2147483648
  %v1735 = vxor.u32 %v749, 2147483648
  %v1736 = vxor.u32 %v754, 2147483648
  %v1737 = vxor.u32 %v759, 2147483648
  %v1738 = vxor.u32 %v764, 2147483648
  %v1739 = vxor.u32 %v769, 2147483648
  %v1740 = vxor.u32 %v774, 2147483648
  %v1741 = vxor.u32 %v779, 2147483648
  %v1742 = vxor.u32 %v784, 2147483648
  %v1743 = vxor.u32 %v789, 2147483648
  %v1744 = vxor.u32 %v794, 2147483648
  %v1745 = vxor.u32 %v799, 2147483648
  %v1746 = vxor.u32 %v804, 2147483648
  %v1747 = vxor.u32 %v809, 2147483648
  %v1748 = vxor.u32 %v814, 2147483648
  %v1749 = vxor.u32 %v819, 2147483648
  %v1750 = vxor.u32 %v824, 2147483648
  %v1751 = vxor.u32 %v829, 2147483648
  %v1752 = vxor.u32 %v834, 2147483648
  %v1753 = vxor.u32 %v839, 2147483648
  %v1754 = vxor.u32 %v844, 2147483648
  %v1755 = vxor.u32 %v849, 2147483648
  %v1756 = vxor.u32 %v854, 2147483648
  %v1757 = vxor.u32 %v859, 2147483648
  %v1758 = vxor.u32 %v864, 2147483648
  %v1759 = vxor.u32 %v869, 2147483648
  %v1760 = vxor.u32 %v874, 2147483648
  %v1761 = vxor.u32 %v879, 2147483648
  %v1762 = vxor.u32 %v884, 2147483648
  %v1763 = vxor.u32 %v889, 2147483648
  %v1764 = vxor.u32 %v894, 2147483648
  %v1765 = vxor.u32 %v899, 2147483648
  %v1766 = vxor.u32 %v904, 2147483648
  %v1767 = vxor.u32 %v909, 2147483648
  %v1768 = vxor.u32 %v914, 2147483648
  %v1769 = vxor.u32 %v919, 2147483648
  %v1770 = vxor.u32 %v924, 2147483648
  %v1771 = vxor.u32 %v929, 2147483648
  %v1772 = vxor.u32 %v934, 2147483648
  %v1773 = vxor.u32 %v939, 2147483648
  %v1774 = vxor.u32 %v944, 2147483648
  %v1775 = vxor.u32 %v949, 2147483648
  %v1776 = vxor.u32 %v954, 2147483648
  %v1777 = vxor.u32 %v959, 2147483648
  %v1778 = vxor.u32 %v964, 2147483648
  %v1779 = vxor.u32 %v969, 2147483648
  %v1780 = vxor.u32 %v974, 2147483648
  %v1781 = vxor.u32 %v979, 2147483648
  %v1782 = vxor.u32 %v984, 2147483648
  %v1783 = vxor.u32 %v989, 2147483648
  %v1784 = vxor.u32 %v994, 2147483648
  %v1785 = vxor.u32 %v999, 2147483648
  %v1786 = vxor.u32 %v1004, 2147483648
  %v1787 = vxor.u32 %v1009, 2147483648
  %v1788 = vxor.u32 %v1014, 2147483648
  %v1789 = vxor.u32 %v1019, 2147483648
  %v1790 = vxor.u32 %v1024, 2147483648
  %v1791 = vxor.u32 %v1029, 2147483648
  %v1792 = vxor.u32 %v1034, 2147483648
  %v1793 = vxor.u32 %v1039, 2147483648
  %v1794 = vxor.u32 %v1044, 2147483648
  %v1795 = vxor.u32 %v1049, 2147483648
  %v1796 = vxor.u32 %v1054, 2147483648
  %v1797 = vxor.u32 %v1059, 2147483648
  %v1798 = vxor.u32 %v1064, 2147483648
  %v1799 = vxor.u32 %v1069, 2147483648
  %v1800 = vxor.u32 %v1074, 2147483648
  %v1801 = vxor.u32 %v1079, 2147483648
  %v1802 = vxor.u32 %v1084, 2147483648
  %v1803 = vxor.u32 %v1089, 2147483648
  %v1804 = vxor.u32 %v1094, 2147483648
  %v1805 = vxor.u32 %v1099, 2147483648
  %v1806 = vxor.u32 %v1104, 2147483648
  %v1807 = vxor.u32 %v1109, 2147483648
  %v1808 = vxor.u32 %v1114, 2147483648
  %v1809 = vxor.u32 %v1119, 2147483648
  %v1810 = vxor.u32 %v1124, 2147483648
  %v1811 = vxor.u32 %v1129, 2147483648
  %v1812 = vxor.u32 %v1134, 2147483648
  %v1813 = vxor.u32 %v1139, 2147483648
  %v1814 = vxor.u32 %v1144, 2147483648
  %v1815 = vxor.u32 %v1149, 2147483648
  %v1816 = vxor.u32 %v1154, 2147483648
  %v1817 = vxor.u32 %v1159, 2147483648
  %v1818 = vxor.u32 %v1164, 2147483648
  %v1819 = vxor.u32 %v1169, 2147483648
  %v1820 = vxor.u32 %v1174, 2147483648
  %v1821 = vxor.u32 %v1179, 2147483648
  %v1822 = vxor.u32 %v1184, 2147483648
  %v1823 = vxor.u32 %v1189, 2147483648
  %v1824 = vxor.u32 %v1194, 2147483648
  %v1825 = vxor.u32 %v1199, 2147483648
  %v1826 = vxor.u32 %v1204, 2147483648
  %v1827 = vxor.u32 %v1209, 2147483648
  %v1828 = vxor.u32 %v1214, 2147483648
  %v1829 = vxor.u32 %v1219, 2147483648
  %v1830 = vxor.u32 %v1224, 2147483648
  %v1831 = vxor.u32 %v1229, 2147483648
  %v1832 = vxor.u32 %v1234, 2147483648
  %v1833 = vxor.u32 %v1239, 2147483648
  %v1834 = vxor.u32 %v1244, 2147483648
  %v1835 = vxor.u32 %v1249, 2147483648
  %v1836 = vxor.u32 %v1254, 2147483648
  %v1837 = vxor.u32 %v1259, 2147483648
  %v1838 = vxor.u32 %v1264, 2147483648
  %v1839 = vxor.u32 %v1269, 2147483648
  %v1840 = vxor.u32 %v1274, 2147483648
  %v1841 = vxor.u32 %v1279, 2147483648
  %v1842 = vxor.u32 %v1284, 2147483648
  %v1843 = vxor.u32 %v1289, 2147483648
  %v1844 = vxor.u32 %v1294, 2147483648
  %v1845 = vxor.u32 %v1299, 2147483648
  %v1846 = vxor.u32 %v1304, 2147483648
  %v1847 = vxor.u32 %v1309, 2147483648
  %v1848 = vxor.u32 %v1314, 2147483648
  %v1849 = vxor.u32 %v1319, 2147483648
  %v1850 = vxor.u32 %v1324, 2147483648
  %v1851 = vxor.u32 %v1329, 2147483648
  %v1852 = vxor.u32 %v1334, 2147483648
  %v1853 = vxor.u32 %v1339, 2147483648
  %v1854 = vxor.u32 %v1344, 2147483648
  %v1855 = vxor.u32 %v1349, 2147483648
  %v1856 = vxor.u32 %v1354, 2147483648
  %v1857 = vxor.u32 %v1359, 2147483648
  %v1858 = vxor.u32 %v1364, 2147483648
  %v1859 = vxor.u32 %v1369, 2147483648
  %v1860 = vxor.u32 %v1374, 2147483648
  %v1861 = vxor.u32 %v1379, 2147483648
  %v1862 = vxor.u32 %v1384, 2147483648
  %v1863 = vxor.u32 %v1389, 2147483648
  %v1864 = vxor.u32 %v1394, 2147483648
  %v1865 = vxor.u32 %v1399, 2147483648
  %v1866 = vxor.u32 %v1404, 2147483648
  %v1867 = vxor.u32 %v1409, 2147483648
  %v1868 = vxor.u32 %v1414, 2147483648
  %v1869 = vxor.u32 %v1419, 2147483648
  %v1870 = vxor.u32 %v1424, 2147483648
  %v1871 = vxor.u32 %v1429, 2147483648
  %v1872 = vxor.u32 %v1434, 2147483648
  %v1873 = vxor.u32 %v1439, 2147483648
  %v1874 = vxor.u32 %v1444, 2147483648
  %v1875 = vxor.u32 %v1449, 2147483648
  %v1876 = vxor.u32 %v1454, 2147483648
  %v1877 = vxor.u32 %v1459, 2147483648
  %v1878 = vxor.u32 %v1464, 2147483648
  %v1879 = vxor.u32 %v1469, 2147483648
  %v1880 = vxor.u32 %v1474, 2147483648
  %v1881 = vxor.u32 %v1479, 2147483648
  %v1882 = vxor.u32 %v1484, 2147483648
  %v1883 = vxor.u32 %v1489, 2147483648
  %v1884 = vxor.u32 %v1494, 2147483648
  %v1885 = vxor.u32 %v1499, 2147483648
  %v1886 = vxor.u32 %v1504, 2147483648
  %v1887 = vxor.u32 %v1509, 2147483648
  %v1888 = vxor.u32 %v1514, 2147483648
  %v1889 = vxor.u32 %v1519, 2147483648
  %v1890 = vxor.u32 %v1524, 2147483648
  %v1891 = vxor.u32 %v1529, 2147483648
  %v1892 = vxor.u32 %v1534, 2147483648
  %v1893 = vxor.u32 %v1539, 2147483648
  %v1894 = vxor.u32 %v1544, 2147483648
  %v1895 = vxor.u32 %v1549, 2147483648
  %v1896 = vxor.u32 %v1554, 2147483648
  %v1897 = vxor.u32 %v1559, 2147483648
  %v1898 = vxor.u32 %v1564, 2147483648
  %v1899 = vxor.u32 %v1569, 2147483648
  %v1900 = vxor.u32 %v1574, 2147483648
  %v1901 = vxor.u32 %v1579, 2147483648
  %v1902 = vxor.u32 %v1584, 2147483648
  %v1903 = vxor.u32 %v1589, 2147483648
  %v1904 = vxor.u32 %v1594, 2147483648
  %v1905 = vxor.u32 %v1599, 2147483648
  %v1906 = vxor.u32 %v1604, 2147483648
  %v1907 = vxor.u32 %v1609, 2147483648
  %v1908 = vxor.u32 %v1614, 2147483648
  %v1909 = vxor.u32 %v1619, 2147483648
  %v1910 = vxor.u32 %v1624, 2147483648
  %v1911 = vxor.u32 %v1629, 2147483648
  %v1912 = vxor.u32 %v1634, 2147483648
  %v1913 = vxor.u32 %v1639, 2147483648
  %v1914 = vxor.u32 %v1644, 2147483648
  %v1915 = vxor.u32 %v1649, 2147483648
  %v1916 = vxor.u32 %v1654, 2147483648
  %v1917 = vxor.u32 %v1659, 2147483648
  %v1918 = vmul.f32 %v1662, 1.442695
  %v1919 = vpow.pop %v1918
  %v1920 = vmul.f32 %v1663, 1.442695
  %v1921 = vpow.pop %v1920
  %v1922 = vmul.f32 %v1664, 1.442695
  %v1923 = vpow.pop %v1922
  %v1924 = vmul.f32 %v1665, 1.442695
  %v1925 = vpow.pop %v1924
  %v1926 = vmul.f32 %v1666, 1.442695
  %v1927 = vpow.pop %v1926
  %v1928 = vmul.f32 %v1667, 1.442695
  %v1929 = vpow.pop %v1928
  %v1930 = vmul.f32 %v1668, 1.442695
  %v1931 = vpow.pop %v1930
  %v1932 = vmul.f32 %v1669, 1.442695
  %v1933 = vpow.pop %v1932
  %v1934 = vmul.f32 %v1670, 1.442695
  %v1935 = vpow.pop %v1934
  %v1936 = vmul.f32 %v1671, 1.442695
  %v1937 = vpow.pop %v1936
  %v1938 = vmul.f32 %v1672, 1.442695
  %v1939 = vpow.pop %v1938
  %v1940 = vmul.f32 %v1673, 1.442695
  %v1941 = vpow.pop %v1940
  %v1942 = vmul.f32 %v1674, 1.442695
  %v1943 = vpow.pop %v1942
  %v1944 = vmul.f32 %v1675, 1.442695
  %v1945 = vpow.pop %v1944
  %v1946 = vmul.f32 %v1676, 1.442695
  %v1947 = vpow.pop %v1946
  %v1948 = vmul.f32 %v1677, 1.442695
  %v1949 = vpow.pop %v1948
  %v1950 = vmul.f32 %v1678, 1.442695
  %v1951 = vpow.pop %v1950
  %v1952 = vmul.f32 %v1679, 1.442695
  %v1953 = vpow.pop %v1952
  %v1954 = vmul.f32 %v1680, 1.442695
  %v1955 = vpow.pop %v1954
  %v1956 = vmul.f32 %v1681, 1.442695
  %v1957 = vpow.pop %v1956
  %v1958 = vmul.f32 %v1682, 1.442695
  %v1959 = vpow.pop %v1958
  %v1960 = vmul.f32 %v1683, 1.442695
  %v1961 = vpow.pop %v1960
  %v1962 = vmul.f32 %v1684, 1.442695
  %v1963 = vpow.pop %v1962
  %v1964 = vmul.f32 %v1685, 1.442695
  %v1965 = vpow.pop %v1964
  %v1966 = vmul.f32 %v1686, 1.442695
  %v1967 = vpow.pop %v1966
  %v1968 = vmul.f32 %v1687, 1.442695
  %v1969 = vpow.pop %v1968
  %v1970 = vmul.f32 %v1688, 1.442695
  %v1971 = vpow.pop %v1970
  %v1972 = vmul.f32 %v1689, 1.442695
  %v1973 = vpow.pop %v1972
  %v1974 = vmul.f32 %v1690, 1.442695
  %v1975 = vpow.pop %v1974
  %v1976 = vmul.f32 %v1691, 1.442695
  %v1977 = vpow.pop %v1976
  %v1978 = vmul.f32 %v1692, 1.442695
  %v1979 = vpow.pop %v1978
  %v1980 = vmul.f32 %v1693, 1.442695
  %v1981 = vpow.pop %v1980
  %v1982 = vmul.f32 %v1694, 1.442695
  %v1983 = vpow.pop %v1982
  %v1984 = vmul.f32 %v1695, 1.442695
  %v1985 = vpow.pop %v1984
  %v1986 = vmul.f32 %v1696, 1.442695
  %v1987 = vpow.pop %v1986
  %v1988 = vmul.f32 %v1697, 1.442695
  %v1989 = vpow.pop %v1988
  %v1990 = vmul.f32 %v1698, 1.442695
  %v1991 = vpow.pop %v1990
  %v1992 = vmul.f32 %v1699, 1.442695
  %v1993 = vpow.pop %v1992
  %v1994 = vmul.f32 %v1700, 1.442695
  %v1995 = vpow.pop %v1994
  %v1996 = vmul.f32 %v1701, 1.442695
  %v1997 = vpow.pop %v1996
  %v1998 = vmul.f32 %v1702, 1.442695
  %v1999 = vpow.pop %v1998
  %v2000 = vmul.f32 %v1703, 1.442695
  %v2001 = vpow.pop %v2000
  %v2002 = vmul.f32 %v1704, 1.442695
  %v2003 = vpow.pop %v2002
  %v2004 = vmul.f32 %v1705, 1.442695
  %v2005 = vpow.pop %v2004
  %v2006 = vmul.f32 %v1706, 1.442695
  %v2007 = vpow.pop %v2006
  %v2008 = vmul.f32 %v1707, 1.442695
  %v2009 = vpow.pop %v2008
  %v2010 = vmul.f32 %v1708, 1.442695
  %v2011 = vpow.pop %v2010
  %v2012 = vmul.f32 %v1709, 1.442695
  %v2013 = vpow.pop %v2012
  %v2014 = vmul.f32 %v1710, 1.442695
  %v2015 = vpow.pop %v2014
  %v2016 = vmul.f32 %v1711, 1.442695
  %v2017 = vpow.pop %v2016
  %v2018 = vmul.f32 %v1712, 1.442695
  %v2019 = vpow.pop %v2018
  %v2020 = vmul.f32 %v1713, 1.442695
  %v2021 = vpow.pop %v2020
  %v2022 = vmul.f32 %v1714, 1.442695
  %v2023 = vpow.pop %v2022
  %v2024 = vmul.f32 %v1715, 1.442695
  %v2025 = vpow.pop %v2024
  %v2026 = vmul.f32 %v1716, 1.442695
  %v2027 = vpow.pop %v2026
  %v2028 = vmul.f32 %v1717, 1.442695
  %v2029 = vpow.pop %v2028
  %v2030 = vmul.f32 %v1718, 1.442695
  %v2031 = vpow.pop %v2030
  %v2032 = vmul.f32 %v1719, 1.442695
  %v2033 = vpow.pop %v2032
  %v2034 = vmul.f32 %v1720, 1.442695
  %v2035 = vpow.pop %v2034
  %v2036 = vmul.f32 %v1721, 1.442695
  %v2037 = vpow.pop %v2036
  %v2038 = vmul.f32 %v1722, 1.442695
  %v2039 = vpow.pop %v2038
  %v2040 = vmul.f32 %v1723, 1.442695
  %v2041 = vpow.pop %v2040
  %v2042 = vmul.f32 %v1724, 1.442695
  %v2043 = vpow.pop %v2042
  %v2044 = vmul.f32 %v1725, 1.442695
  %v2045 = vpow.pop %v2044
  %v2046 = vmul.f32 %v1726, 1.442695
  %v2047 = vpow.pop %v2046
  %v2048 = vmul.f32 %v1727, 1.442695
  %v2049 = vpow.pop %v2048
  %v2050 = vmul.f32 %v1728, 1.442695
  %v2051 = vpow.pop %v2050
  %v2052 = vmul.f32 %v1729, 1.442695
  %v2053 = vpow.pop %v2052
  %v2054 = vmul.f32 %v1730, 1.442695
  %v2055 = vpow.pop %v2054
  %v2056 = vmul.f32 %v1731, 1.442695
  %v2057 = vpow.pop %v2056
  %v2058 = vmul.f32 %v1732, 1.442695
  %v2059 = vpow.pop %v2058
  %v2060 = vmul.f32 %v1733, 1.442695
  %v2061 = vpow.pop %v2060
  %v2062 = vmul.f32 %v1734, 1.442695
  %v2063 = vpow.pop %v2062
  %v2064 = vmul.f32 %v1735, 1.442695
  %v2065 = vpow.pop %v2064
  %v2066 = vmul.f32 %v1736, 1.442695
  %v2067 = vpow.pop %v2066
  %v2068 = vmul.f32 %v1737, 1.442695
  %v2069 = vpow.pop %v2068
  %v2070 = vmul.f32 %v1738, 1.442695
  %v2071 = vpow.pop %v2070
  %v2072 = vmul.f32 %v1739, 1.442695
  %v2073 = vpow.pop %v2072
  %v2074 = vmul.f32 %v1740, 1.442695
  %v2075 = vpow.pop %v2074
  %v2076 = vmul.f32 %v1741, 1.442695
  %v2077 = vpow.pop %v2076
  %v2078 = vmul.f32 %v1742, 1.442695
  %v2079 = vpow.pop %v2078
  %v2080 = vmul.f32 %v1743, 1.442695
  %v2081 = vpow.pop %v2080
  %v2082 = vmul.f32 %v1744, 1.442695
  %v2083 = vpow.pop %v2082
  %v2084 = vmul.f32 %v1745, 1.442695
  %v2085 = vpow.pop %v2084
  %v2086 = vmul.f32 %v1746, 1.442695
  %v2087 = vpow.pop %v2086
  %v2088 = vmul.f32 %v1747, 1.442695
  %v2089 = vpow.pop %v2088
  %v2090 = vmul.f32 %v1748, 1.442695
  %v2091 = vpow.pop %v2090
  %v2092 = vmul.f32 %v1749, 1.442695
  %v2093 = vpow.pop %v2092
  %v2094 = vmul.f32 %v1750, 1.442695
  %v2095 = vpow.pop %v2094
  %v2096 = vmul.f32 %v1751, 1.442695
  %v2097 = vpow.pop %v2096
  %v2098 = vmul.f32 %v1752, 1.442695
  %v2099 = vpow.pop %v2098
  %v2100 = vmul.f32 %v1753, 1.442695
  %v2101 = vpow.pop %v2100
  %v2102 = vmul.f32 %v1754, 1.442695
  %v2103 = vpow.pop %v2102
  %v2104 = vmul.f32 %v1755, 1.442695
  %v2105 = vpow.pop %v2104
  %v2106 = vmul.f32 %v1756, 1.442695
  %v2107 = vpow.pop %v2106
  %v2108 = vmul.f32 %v1757, 1.442695
  %v2109 = vpow.pop %v2108
  %v2110 = vmul.f32 %v1758, 1.442695
  %v2111 = vpow.pop %v2110
  %v2112 = vmul.f32 %v1759, 1.442695
  %v2113 = vpow.pop %v2112
  %v2114 = vmul.f32 %v1760, 1.442695
  %v2115 = vpow.pop %v2114
  %v2116 = vmul.f32 %v1761, 1.442695
  %v2117 = vpow.pop %v2116
  %v2118 = vmul.f32 %v1762, 1.442695
  %v2119 = vpow.pop %v2118
  %v2120 = vmul.f32 %v1763, 1.442695
  %v2121 = vpow.pop %v2120
  %v2122 = vmul.f32 %v1764, 1.442695
  %v2123 = vpow.pop %v2122
  %v2124 = vmul.f32 %v1765, 1.442695
  %v2125 = vpow.pop %v2124
  %v2126 = vmul.f32 %v1766, 1.442695
  %v2127 = vpow.pop %v2126
  %v2128 = vmul.f32 %v1767, 1.442695
  %v2129 = vpow.pop %v2128
  %v2130 = vmul.f32 %v1768, 1.442695
  %v2131 = vpow.pop %v2130
  %v2132 = vmul.f32 %v1769, 1.442695
  %v2133 = vpow.pop %v2132
  %v2134 = vmul.f32 %v1770, 1.442695
  %v2135 = vpow.pop %v2134
  %v2136 = vmul.f32 %v1771, 1.442695
  %v2137 = vpow.pop %v2136
  %v2138 = vmul.f32 %v1772, 1.442695
  %v2139 = vpow.pop %v2138
  %v2140 = vmul.f32 %v1773, 1.442695
  %v2141 = vpow.pop %v2140
  %v2142 = vmul.f32 %v1774, 1.442695
  %v2143 = vpow.pop %v2142
  %v2144 = vmul.f32 %v1775, 1.442695
  %v2145 = vpow.pop %v2144
  %v2146 = vmul.f32 %v1776, 1.442695
  %v2147 = vpow.pop %v2146
  %v2148 = vmul.f32 %v1777, 1.442695
  %v2149 = vpow.pop %v2148
  %v2150 = vmul.f32 %v1778, 1.442695
  %v2151 = vpow.pop %v2150
  %v2152 = vmul.f32 %v1779, 1.442695
  %v2153 = vpow.pop %v2152
  %v2154 = vmul.f32 %v1780, 1.442695
  %v2155 = vpow.pop %v2154
  %v2156 = vmul.f32 %v1781, 1.442695
  %v2157 = vpow.pop %v2156
  %v2158 = vmul.f32 %v1782, 1.442695
  %v2159 = vpow.pop %v2158
  %v2160 = vmul.f32 %v1783, 1.442695
  %v2161 = vpow.pop %v2160
  %v2162 = vmul.f32 %v1784, 1.442695
  %v2163 = vpow.pop %v2162
  %v2164 = vmul.f32 %v1785, 1.442695
  %v2165 = vpow.pop %v2164
  %v2166 = vmul.f32 %v1786, 1.442695
  %v2167 = vpow.pop %v2166
  %v2168 = vmul.f32 %v1787, 1.442695
  %v2169 = vpow.pop %v2168
  %v2170 = vmul.f32 %v1788, 1.442695
  %v2171 = vpow.pop %v2170
  %v2172 = vmul.f32 %v1789, 1.442695
  %v2173 = vpow.pop %v2172
  %v2174 = vmul.f32 %v1790, 1.442695
  %v2175 = vpow.pop %v2174
  %v2176 = vmul.f32 %v1791, 1.442695
  %v2177 = vpow.pop %v2176
  %v2178 = vmul.f32 %v1792, 1.442695
  %v2179 = vpow.pop %v2178
  %v2180 = vmul.f32 %v1793, 1.442695
  %v2181 = vpow.pop %v2180
  %v2182 = vmul.f32 %v1794, 1.442695
  %v2183 = vpow.pop %v2182
  %v2184 = vmul.f32 %v1795, 1.442695
  %v2185 = vpow.pop %v2184
  %v2186 = vmul.f32 %v1796, 1.442695
  %v2187 = vpow.pop %v2186
  %v2188 = vmul.f32 %v1797, 1.442695
  %v2189 = vpow.pop %v2188
  %v2190 = vmul.f32 %v1798, 1.442695
  %v2191 = vpow.pop %v2190
  %v2192 = vmul.f32 %v1799, 1.442695
  %v2193 = vpow.pop %v2192
  %v2194 = vmul.f32 %v1800, 1.442695
  %v2195 = vpow.pop %v2194
  %v2196 = vmul.f32 %v1801, 1.442695
  %v2197 = vpow.pop %v2196
  %v2198 = vmul.f32 %v1802, 1.442695
  %v2199 = vpow.pop %v2198
  %v2200 = vmul.f32 %v1803, 1.442695
  %v2201 = vpow.pop %v2200
  %v2202 = vmul.f32 %v1804, 1.442695
  %v2203 = vpow.pop %v2202
  %v2204 = vmul.f32 %v1805, 1.442695
  %v2205 = vpow.pop %v2204
  %v2206 = vmul.f32 %v1806, 1.442695
  %v2207 = vpow.pop %v2206
  %v2208 = vmul.f32 %v1807, 1.442695
  %v2209 = vpow.pop %v2208
  %v2210 = vmul.f32 %v1808, 1.442695
  %v2211 = vpow.pop %v2210
  %v2212 = vmul.f32 %v1809, 1.442695
  %v2213 = vpow.pop %v2212
  %v2214 = vmul.f32 %v1810, 1.442695
  %v2215 = vpow.pop %v2214
  %v2216 = vmul.f32 %v1811, 1.442695
  %v2217 = vpow.pop %v2216
  %v2218 = vmul.f32 %v1812, 1.442695
  %v2219 = vpow.pop %v2218
  %v2220 = vmul.f32 %v1813, 1.442695
  %v2221 = vpow.pop %v2220
  %v2222 = vmul.f32 %v1814, 1.442695
  %v2223 = vpow.pop %v2222
  %v2224 = vmul.f32 %v1815, 1.442695
  %v2225 = vpow.pop %v2224
  %v2226 = vmul.f32 %v1816, 1.442695
  %v2227 = vpow.pop %v2226
  %v2228 = vmul.f32 %v1817, 1.442695
  %v2229 = vpow.pop %v2228
  %v2230 = vmul.f32 %v1818, 1.442695
  %v2231 = vpow.pop %v2230
  %v2232 = vmul.f32 %v1819, 1.442695
  %v2233 = vpow.pop %v2232
  %v2234 = vmul.f32 %v1820, 1.442695
  %v2235 = vpow.pop %v2234
  %v2236 = vmul.f32 %v1821, 1.442695
  %v2237 = vpow.pop %v2236
  %v2238 = vmul.f32 %v1822, 1.442695
  %v2239 = vpow.pop %v2238
  %v2240 = vmul.f32 %v1823, 1.442695
  %v2241 = vpow.pop %v2240
  %v2242 = vmul.f32 %v1824, 1.442695
  %v2243 = vpow.pop %v2242
  %v2244 = vmul.f32 %v1825, 1.442695
  %v2245 = vpow.pop %v2244
  %v2246 = vmul.f32 %v1826, 1.442695
  %v2247 = vpow.pop %v2246
  %v2248 = vmul.f32 %v1827, 1.442695
  %v2249 = vpow.pop %v2248
  %v2250 = vmul.f32 %v1828, 1.442695
  %v2251 = vpow.pop %v2250
  %v2252 = vmul.f32 %v1829, 1.442695
  %v2253 = vpow.pop %v2252
  %v2254 = vmul.f32 %v1830, 1.442695
  %v2255 = vpow.pop %v2254
  %v2256 = vmul.f32 %v1831, 1.442695
  %v2257 = vpow.pop %v2256
  %v2258 = vmul.f32 %v1832, 1.442695
  %v2259 = vpow.pop %v2258
  %v2260 = vmul.f32 %v1833, 1.442695
  %v2261 = vpow.pop %v2260
  %v2262 = vmul.f32 %v1834, 1.442695
  %v2263 = vpow.pop %v2262
  %v2264 = vmul.f32 %v1835, 1.442695
  %v2265 = vpow.pop %v2264
  %v2266 = vmul.f32 %v1836, 1.442695
  %v2267 = vpow.pop %v2266
  %v2268 = vmul.f32 %v1837, 1.442695
  %v2269 = vpow.pop %v2268
  %v2270 = vmul.f32 %v1838, 1.442695
  %v2271 = vpow.pop %v2270
  %v2272 = vmul.f32 %v1839, 1.442695
  %v2273 = vpow.pop %v2272
  %v2274 = vmul.f32 %v1840, 1.442695
  %v2275 = vpow.pop %v2274
  %v2276 = vmul.f32 %v1841, 1.442695
  %v2277 = vpow.pop %v2276
  %v2278 = vmul.f32 %v1842, 1.442695
  %v2279 = vpow.pop %v2278
  %v2280 = vmul.f32 %v1843, 1.442695
  %v2281 = vpow.pop %v2280
  %v2282 = vmul.f32 %v1844, 1.442695
  %v2283 = vpow.pop %v2282
  %v2284 = vmul.f32 %v1845, 1.442695
  %v2285 = vpow.pop %v2284
  %v2286 = vmul.f32 %v1846, 1.442695
  %v2287 = vpow.pop %v2286
  %v2288 = vmul.f32 %v1847, 1.442695
  %v2289 = vpow.pop %v2288
  %v2290 = vmul.f32 %v1848, 1.442695
  %v2291 = vpow.pop %v2290
  %v2292 = vmul.f32 %v1849, 1.442695
  %v2293 = vpow.pop %v2292
  %v2294 = vmul.f32 %v1850, 1.442695
  %v2295 = vpow.pop %v2294
  %v2296 = vmul.f32 %v1851, 1.442695
  %v2297 = vpow.pop %v2296
  %v2298 = vmul.f32 %v1852, 1.442695
  %v2299 = vpow.pop %v2298
  %v2300 = vmul.f32 %v1853, 1.442695
  %v2301 = vpow.pop %v2300
  %v2302 = vmul.f32 %v1854, 1.442695
  %v2303 = vpow.pop %v2302
  %v2304 = vmul.f32 %v1855, 1.442695
  %v2305 = vpow.pop %v2304
  %v2306 = vmul.f32 %v1856, 1.442695
  %v2307 = vpow.pop %v2306
  %v2308 = vmul.f32 %v1857, 1.442695
  %v2309 = vpow.pop %v2308
  %v2310 = vmul.f32 %v1858, 1.442695
  %v2311 = vpow.pop %v2310
  %v2312 = vmul.f32 %v1859, 1.442695
  %v2313 = vpow.pop %v2312
  %v2314 = vmul.f32 %v1860, 1.442695
  %v2315 = vpow.pop %v2314
  %v2316 = vmul.f32 %v1861, 1.442695
  %v2317 = vpow.pop %v2316
  %v2318 = vmul.f32 %v1862, 1.442695
  %v2319 = vpow.pop %v2318
  %v2320 = vmul.f32 %v1863, 1.442695
  %v2321 = vpow.pop %v2320
  %v2322 = vmul.f32 %v1864, 1.442695
  %v2323 = vpow.pop %v2322
  %v2324 = vmul.f32 %v1865, 1.442695
  %v2325 = vpow.pop %v2324
  %v2326 = vmul.f32 %v1866, 1.442695
  %v2327 = vpow.pop %v2326
  %v2328 = vmul.f32 %v1867, 1.442695
  %v2329 = vpow.pop %v2328
  %v2330 = vmul.f32 %v1868, 1.442695
  %v2331 = vpow.pop %v2330
  %v2332 = vmul.f32 %v1869, 1.442695
  %v2333 = vpow.pop %v2332
  %v2334 = vmul.f32 %v1870, 1.442695
  %v2335 = vpow.pop %v2334
  %v2336 = vmul.f32 %v1871, 1.442695
  %v2337 = vpow.pop %v2336
  %v2338 = vmul.f32 %v1872, 1.442695
  %v2339 = vpow.pop %v2338
  %v2340 = vmul.f32 %v1873, 1.442695
  %v2341 = vpow.pop %v2340
  %v2342 = vmul.f32 %v1874, 1.442695
  %v2343 = vpow.pop %v2342
  %v2344 = vmul.f32 %v1875, 1.442695
  %v2345 = vpow.pop %v2344
  %v2346 = vmul.f32 %v1876, 1.442695
  %v2347 = vpow.pop %v2346
  %v2348 = vmul.f32 %v1877, 1.442695
  %v2349 = vpow.pop %v2348
  %v2350 = vmul.f32 %v1878, 1.442695
  %v2351 = vpow.pop %v2350
  %v2352 = vmul.f32 %v1879, 1.442695
  %v2353 = vpow.pop %v2352
  %v2354 = vmul.f32 %v1880, 1.442695
  %v2355 = vpow.pop %v2354
  %v2356 = vmul.f32 %v1881, 1.442695
  %v2357 = vpow.pop %v2356
  %v2358 = vmul.f32 %v1882, 1.442695
  %v2359 = vpow.pop %v2358
  %v2360 = vmul.f32 %v1883, 1.442695
  %v2361 = vpow.pop %v2360
  %v2362 = vmul.f32 %v1884, 1.442695
  %v2363 = vpow.pop %v2362
  %v2364 = vmul.f32 %v1885, 1.442695
  %v2365 = vpow.pop %v2364
  %v2366 = vmul.f32 %v1886, 1.442695
  %v2367 = vpow.pop %v2366
  %v2368 = vmul.f32 %v1887, 1.442695
  %v2369 = vpow.pop %v2368
  %v2370 = vmul.f32 %v1888, 1.442695
  %v2371 = vpow.pop %v2370
  %v2372 = vmul.f32 %v1889, 1.442695
  %v2373 = vpow.pop %v2372
  %v2374 = vmul.f32 %v1890, 1.442695
  %v2375 = vpow.pop %v2374
  %v2376 = vmul.f32 %v1891, 1.442695
  %v2377 = vpow.pop %v2376
  %v2378 = vmul.f32 %v1892, 1.442695
  %v2379 = vpow.pop %v2378
  %v2380 = vmul.f32 %v1893, 1.442695
  %v2381 = vpow.pop %v2380
  %v2382 = vmul.f32 %v1894, 1.442695
  %v2383 = vpow.pop %v2382
  %v2384 = vmul.f32 %v1895, 1.442695
  %v2385 = vpow.pop %v2384
  %v2386 = vmul.f32 %v1896, 1.442695
  %v2387 = vpow.pop %v2386
  %v2388 = vmul.f32 %v1897, 1.442695
  %v2389 = vpow.pop %v2388
  %v2390 = vmul.f32 %v1898, 1.442695
  %v2391 = vpow.pop %v2390
  %v2392 = vmul.f32 %v1899, 1.442695
  %v2393 = vpow.pop %v2392
  %v2394 = vmul.f32 %v1900, 1.442695
  %v2395 = vpow.pop %v2394
  %v2396 = vmul.f32 %v1901, 1.442695
  %v2397 = vpow.pop %v2396
  %v2398 = vmul.f32 %v1902, 1.442695
  %v2399 = vpow.pop %v2398
  %v2400 = vmul.f32 %v1903, 1.442695
  %v2401 = vpow.pop %v2400
  %v2402 = vmul.f32 %v1904, 1.442695
  %v2403 = vpow.pop %v2402
  %v2404 = vmul.f32 %v1905, 1.442695
  %v2405 = vpow.pop %v2404
  %v2406 = vmul.f32 %v1906, 1.442695
  %v2407 = vpow.pop %v2406
  %v2408 = vmul.f32 %v1907, 1.442695
  %v2409 = vpow.pop %v2408
  %v2410 = vmul.f32 %v1908, 1.442695
  %v2411 = vpow.pop %v2410
  %v2412 = vmul.f32 %v1909, 1.442695
  %v2413 = vpow.pop %v2412
  %v2414 = vmul.f32 %v1910, 1.442695
  %v2415 = vpow.pop %v2414
  %v2416 = vmul.f32 %v1911, 1.442695
  %v2417 = vpow.pop %v2416
  %v2418 = vmul.f32 %v1912, 1.442695
  %v2419 = vpow.pop %v2418
  %v2420 = vmul.f32 %v1913, 1.442695
  %v2421 = vpow.pop %v2420
  %v2422 = vmul.f32 %v1914, 1.442695
  %v2423 = vpow.pop %v2422
  %v2424 = vmul.f32 %v1915, 1.442695
  %v2425 = vpow.pop %v2424
  %v2426 = vmul.f32 %v1916, 1.442695
  %v2427 = vpow.pop %v2426
  %v2428 = vmul.f32 %v1917, 1.442695
  %v2429 = vpow.pop %v2428
  %v2430 = vadd.f32 %v1919, 1.0
  %v2431 = vadd.f32 %v1921, 1.0
  %v2432 = vadd.f32 %v1923, 1.0
  %v2433 = vadd.f32 %v1925, 1.0
  %v2434 = vadd.f32 %v1927, 1.0
  %v2435 = vadd.f32 %v1929, 1.0
  %v2436 = vadd.f32 %v1931, 1.0
  %v2437 = vadd.f32 %v1933, 1.0
  %v2438 = vadd.f32 %v1935, 1.0
  %v2439 = vadd.f32 %v1937, 1.0
  %v2440 = vadd.f32 %v1939, 1.0
  %v2441 = vadd.f32 %v1941, 1.0
  %v2442 = vadd.f32 %v1943, 1.0
  %v2443 = vadd.f32 %v1945, 1.0
  %v2444 = vadd.f32 %v1947, 1.0
  %v2445 = vadd.f32 %v1949, 1.0
  %v2446 = vadd.f32 %v1951, 1.0
  %v2447 = vadd.f32 %v1953, 1.0
  %v2448 = vadd.f32 %v1955, 1.0
  %v2449 = vadd.f32 %v1957, 1.0
  %v2450 = vadd.f32 %v1959, 1.0
  %v2451 = vadd.f32 %v1961, 1.0
  %v2452 = vadd.f32 %v1963, 1.0
  %v2453 = vadd.f32 %v1965, 1.0
  %v2454 = vadd.f32 %v1967, 1.0
  %v2455 = vadd.f32 %v1969, 1.0
  %v2456 = vadd.f32 %v1971, 1.0
  %v2457 = vadd.f32 %v1973, 1.0
  %v2458 = vadd.f32 %v1975, 1.0
  %v2459 = vadd.f32 %v1977, 1.0
  %v2460 = vadd.f32 %v1979, 1.0
  %v2461 = vadd.f32 %v1981, 1.0
  %v2462 = vadd.f32 %v1983, 1.0
  %v2463 = vadd.f32 %v1985, 1.0
  %v2464 = vadd.f32 %v1987, 1.0
  %v2465 = vadd.f32 %v1989, 1.0
  %v2466 = vadd.f32 %v1991, 1.0
  %v2467 = vadd.f32 %v1993, 1.0
  %v2468 = vadd.f32 %v1995, 1.0
  %v2469 = vadd.f32 %v1997, 1.0
  %v2470 = vadd.f32 %v1999, 1.0
  %v2471 = vadd.f32 %v2001, 1.0
  %v2472 = vadd.f32 %v2003, 1.0
  %v2473 = vadd.f32 %v2005, 1.0
  %v2474 = vadd.f32 %v2007, 1.0
  %v2475 = vadd.f32 %v2009, 1.0
  %v2476 = vadd.f32 %v2011, 1.0
  %v2477 = vadd.f32 %v2013, 1.0
  %v2478 = vadd.f32 %v2015, 1.0
  %v2479 = vadd.f32 %v2017, 1.0
  %v2480 = vadd.f32 %v2019, 1.0
  %v2481 = vadd.f32 %v2021, 1.0
  %v2482 = vadd.f32 %v2023, 1.0
  %v2483 = vadd.f32 %v2025, 1.0
  %v2484 = vadd.f32 %v2027, 1.0
  %v2485 = vadd.f32 %v2029, 1.0
  %v2486 = vadd.f32 %v2031, 1.0
  %v2487 = vadd.f32 %v2033, 1.0
  %v2488 = vadd.f32 %v2035, 1.0
  %v2489 = vadd.f32 %v2037, 1.0
  %v2490 = vadd.f32 %v2039, 1.0
  %v2491 = vadd.f32 %v2041, 1.0
  %v2492 = vadd.f32 %v2043, 1.0
  %v2493 = vadd.f32 %v2045, 1.0
  %v2494 = vadd.f32 %v2047, 1.0
  %v2495 = vadd.f32 %v2049, 1.0
  %v2496 = vadd.f32 %v2051, 1.0
  %v2497 = vadd.f32 %v2053, 1.0
  %v2498 = vadd.f32 %v2055, 1.0
  %v2499 = vadd.f32 %v2057, 1.0
  %v2500 = vadd.f32 %v2059, 1.0
  %v2501 = vadd.f32 %v2061, 1.0
  %v2502 = vadd.f32 %v2063, 1.0
  %v2503 = vadd.f32 %v2065, 1.0
  %v2504 = vadd.f32 %v2067, 1.0
  %v2505 = vadd.f32 %v2069, 1.0
  %v2506 = vadd.f32 %v2071, 1.0
  %v2507 = vadd.f32 %v2073, 1.0
  %v2508 = vadd.f32 %v2075, 1.0
  %v2509 = vadd.f32 %v2077, 1.0
  %v2510 = vadd.f32 %v2079, 1.0
  %v2511 = vadd.f32 %v2081, 1.0
  %v2512 = vadd.f32 %v2083, 1.0
  %v2513 = vadd.f32 %v2085, 1.0
  %v2514 = vadd.f32 %v2087, 1.0
  %v2515 = vadd.f32 %v2089, 1.0
  %v2516 = vadd.f32 %v2091, 1.0
  %v2517 = vadd.f32 %v2093, 1.0
  %v2518 = vadd.f32 %v2095, 1.0
  %v2519 = vadd.f32 %v2097, 1.0
  %v2520 = vadd.f32 %v2099, 1.0
  %v2521 = vadd.f32 %v2101, 1.0
  %v2522 = vadd.f32 %v2103, 1.0
  %v2523 = vadd.f32 %v2105, 1.0
  %v2524 = vadd.f32 %v2107, 1.0
  %v2525 = vadd.f32 %v2109, 1.0
  %v2526 = vadd.f32 %v2111, 1.0
  %v2527 = vadd.f32 %v2113, 1.0
  %v2528 = vadd.f32 %v2115, 1.0
  %v2529 = vadd.f32 %v2117, 1.0
  %v2530 = vadd.f32 %v2119, 1.0
  %v2531 = vadd.f32 %v2121, 1.0
  %v2532 = vadd.f32 %v2123, 1.0
  %v2533 = vadd.f32 %v2125, 1.0
  %v2534 = vadd.f32 %v2127, 1.0
  %v2535 = vadd.f32 %v2129, 1.0
  %v2536 = vadd.f32 %v2131, 1.0
  %v2537 = vadd.f32 %v2133, 1.0
  %v2538 = vadd.f32 %v2135, 1.0
  %v2539 = vadd.f32 %v2137, 1.0
  %v2540 = vadd.f32 %v2139, 1.0
  %v2541 = vadd.f32 %v2141, 1.0
  %v2542 = vadd.f32 %v2143, 1.0
  %v2543 = vadd.f32 %v2145, 1.0
  %v2544 = vadd.f32 %v2147, 1.0
  %v2545 = vadd.f32 %v2149, 1.0
  %v2546 = vadd.f32 %v2151, 1.0
  %v2547 = vadd.f32 %v2153, 1.0
  %v2548 = vadd.f32 %v2155, 1.0
  %v2549 = vadd.f32 %v2157, 1.0
  %v2550 = vadd.f32 %v2159, 1.0
  %v2551 = vadd.f32 %v2161, 1.0
  %v2552 = vadd.f32 %v2163, 1.0
  %v2553 = vadd.f32 %v2165, 1.0
  %v2554 = vadd.f32 %v2167, 1.0
  %v2555 = vadd.f32 %v2169, 1.0
  %v2556 = vadd.f32 %v2171, 1.0
  %v2557 = vadd.f32 %v2173, 1.0
  %v2558 = vadd.f32 %v2175, 1.0
  %v2559 = vadd.f32 %v2177, 1.0
  %v2560 = vadd.f32 %v2179, 1.0
  %v2561 = vadd.f32 %v2181, 1.0
  %v2562 = vadd.f32 %v2183, 1.0
  %v2563 = vadd.f32 %v2185, 1.0
  %v2564 = vadd.f32 %v2187, 1.0
  %v2565 = vadd.f32 %v2189, 1.0
  %v2566 = vadd.f32 %v2191, 1.0
  %v2567 = vadd.f32 %v2193, 1.0
  %v2568 = vadd.f32 %v2195, 1.0
  %v2569 = vadd.f32 %v2197, 1.0
  %v2570 = vadd.f32 %v2199, 1.0
  %v2571 = vadd.f32 %v2201, 1.0
  %v2572 = vadd.f32 %v2203, 1.0
  %v2573 = vadd.f32 %v2205, 1.0
  %v2574 = vadd.f32 %v2207, 1.0
  %v2575 = vadd.f32 %v2209, 1.0
  %v2576 = vadd.f32 %v2211, 1.0
  %v2577 = vadd.f32 %v2213, 1.0
  %v2578 = vadd.f32 %v2215, 1.0
  %v2579 = vadd.f32 %v2217, 1.0
  %v2580 = vadd.f32 %v2219, 1.0
  %v2581 = vadd.f32 %v2221, 1.0
  %v2582 = vadd.f32 %v2223, 1.0
  %v2583 = vadd.f32 %v2225, 1.0
  %v2584 = vadd.f32 %v2227, 1.0
  %v2585 = vadd.f32 %v2229, 1.0
  %v2586 = vadd.f32 %v2231, 1.0
  %v2587 = vadd.f32 %v2233, 1.0
  %v2588 = vadd.f32 %v2235, 1.0
  %v2589 = vadd.f32 %v2237, 1.0
  %v2590 = vadd.f32 %v2239, 1.0
  %v2591 = vadd.f32 %v2241, 1.0
  %v2592 = vadd.f32 %v2243, 1.0
  %v2593 = vadd.f32 %v2245, 1.0
  %v2594 = vadd.f32 %v2247, 1.0
  %v2595 = vadd.f32 %v2249, 1.0
  %v2596 = vadd.f32 %v2251, 1.0
  %v2597 = vadd.f32 %v2253, 1.0
  %v2598 = vadd.f32 %v2255, 1.0
  %v2599 = vadd.f32 %v2257, 1.0
  %v2600 = vadd.f32 %v2259, 1.0
  %v2601 = vadd.f32 %v2261, 1.0
  %v2602 = vadd.f32 %v2263, 1.0
  %v2603 = vadd.f32 %v2265, 1.0
  %v2604 = vadd.f32 %v2267, 1.0
  %v2605 = vadd.f32 %v2269, 1.0
  %v2606 = vadd.f32 %v2271, 1.0
  %v2607 = vadd.f32 %v2273, 1.0
  %v2608 = vadd.f32 %v2275, 1.0
  %v2609 = vadd.f32 %v2277, 1.0
  %v2610 = vadd.f32 %v2279, 1.0
  %v2611 = vadd.f32 %v2281, 1.0
  %v2612 = vadd.f32 %v2283, 1.0
  %v2613 = vadd.f32 %v2285, 1.0
  %v2614 = vadd.f32 %v2287, 1.0
  %v2615 = vadd.f32 %v2289, 1.0
  %v2616 = vadd.f32 %v2291, 1.0
  %v2617 = vadd.f32 %v2293, 1.0
  %v2618 = vadd.f32 %v2295, 1.0
  %v2619 = vadd.f32 %v2297, 1.0
  %v2620 = vadd.f32 %v2299, 1.0
  %v2621 = vadd.f32 %v2301, 1.0
  %v2622 = vadd.f32 %v2303, 1.0
  %v2623 = vadd.f32 %v2305, 1.0
  %v2624 = vadd.f32 %v2307, 1.0
  %v2625 = vadd.f32 %v2309, 1.0
  %v2626 = vadd.f32 %v2311, 1.0
  %v2627 = vadd.f32 %v2313, 1.0
  %v2628 = vadd.f32 %v2315, 1.0
  %v2629 = vadd.f32 %v2317, 1.0
  %v2630 = vadd.f32 %v2319, 1.0
  %v2631 = vadd.f32 %v2321, 1.0
  %v2632 = vadd.f32 %v2323, 1.0
  %v2633 = vadd.f32 %v2325, 1.0
  %v2634 = vadd.f32 %v2327, 1.0
  %v2635 = vadd.f32 %v2329, 1.0
  %v2636 = vadd.f32 %v2331, 1.0
  %v2637 = vadd.f32 %v2333, 1.0
  %v2638 = vadd.f32 %v2335, 1.0
  %v2639 = vadd.f32 %v2337, 1.0
  %v2640 = vadd.f32 %v2339, 1.0
  %v2641 = vadd.f32 %v2341, 1.0
  %v2642 = vadd.f32 %v2343, 1.0
  %v2643 = vadd.f32 %v2345, 1.0
  %v2644 = vadd.f32 %v2347, 1.0
  %v2645 = vadd.f32 %v2349, 1.0
  %v2646 = vadd.f32 %v2351, 1.0
  %v2647 = vadd.f32 %v2353, 1.0
  %v2648 = vadd.f32 %v2355, 1.0
  %v2649 = vadd.f32 %v2357, 1.0
  %v2650 = vadd.f32 %v2359, 1.0
  %v2651 = vadd.f32 %v2361, 1.0
  %v2652 = vadd.f32 %v2363, 1.0
  %v2653 = vadd.f32 %v2365, 1.0
  %v2654 = vadd.f32 %v2367, 1.0
  %v2655 = vadd.f32 %v2369, 1.0
  %v2656 = vadd.f32 %v2371, 1.0
  %v2657 = vadd.f32 %v2373, 1.0
  %v2658 = vadd.f32 %v2375, 1.0
  %v2659 = vadd.f32 %v2377, 1.0
  %v2660 = vadd.f32 %v2379, 1.0
  %v2661 = vadd.f32 %v2381, 1.0
  %v2662 = vadd.f32 %v2383, 1.0
  %v2663 = vadd.f32 %v2385, 1.0
  %v2664 = vadd.f32 %v2387, 1.0
  %v2665 = vadd.f32 %v2389, 1.0
  %v2666 = vadd.f32 %v2391, 1.0
  %v2667 = vadd.f32 %v2393, 1.0
  %v2668 = vadd.f32 %v2395, 1.0
  %v2669 = vadd.f32 %v2397, 1.0
  %v2670 = vadd.f32 %v2399, 1.0
  %v2671 = vadd.f32 %v2401, 1.0
  %v2672 = vadd.f32 %v2403, 1.0
  %v2673 = vadd.f32 %v2405, 1.0
  %v2674 = vadd.f32 %v2407, 1.0
  %v2675 = vadd.f32 %v2409, 1.0
  %v2676 = vadd.f32 %v2411, 1.0
  %v2677 = vadd.f32 %v2413, 1.0
  %v2678 = vadd.f32 %v2415, 1.0
  %v2679 = vadd.f32 %v2417, 1.0
  %v2680 = vadd.f32 %v2419, 1.0
  %v2681 = vadd.f32 %v2421, 1.0
  %v2682 = vadd.f32 %v2423, 1.0
  %v2683 = vadd.f32 %v2425, 1.0
  %v2684 = vadd.f32 %v2427, 1.0
  %v2685 = vadd.f32 %v2429, 1.0
  %v2686 = vrcp.pop %v2430
  %v2687 = vmul.f32 1.0, %v2686
  %v2688 = vrcp.pop %v2431
  %v2689 = vmul.f32 1.0, %v2688
  %v2690 = vrcp.pop %v2432
  %v2691 = vmul.f32 1.0, %v2690
  %v2692 = vrcp.pop %v2433
  %v2693 = vmul.f32 1.0, %v2692
  %v2694 = vrcp.pop %v2434
  %v2695 = vmul.f32 1.0, %v2694
  %v2696 = vrcp.pop %v2435
  %v2697 = vmul.f32 1.0, %v2696
  %v2698 = vrcp.pop %v2436
  %v2699 = vmul.f32 1.0, %v2698
  %v2700 = vrcp.pop %v2437
  %v2701 = vmul.f32 1.0, %v2700
  %v2702 = vrcp.pop %v2438
  %v2703 = vmul.f32 1.0, %v2702
  %v2704 = vrcp.pop %v2439
  %v2705 = vmul.f32 1.0, %v2704
  %v2706 = vrcp.pop %v2440
  %v2707 = vmul.f32 1.0, %v2706
  %v2708 = vrcp.pop %v2441
  %v2709 = vmul.f32 1.0, %v2708
  %v2710 = vrcp.pop %v2442
  %v2711 = vmul.f32 1.0, %v2710
  %v2712 = vrcp.pop %v2443
  %v2713 = vmul.f32 1.0, %v2712
  %v2714 = vrcp.pop %v2444
  %v2715 = vmul.f32 1.0, %v2714
  %v2716 = vrcp.pop %v2445
  %v2717 = vmul.f32 1.0, %v2716
  %v2718 = vrcp.pop %v2446
  %v2719 = vmul.f32 1.0, %v2718
  %v2720 = vrcp.pop %v2447
  %v2721 = vmul.f32 1.0, %v2720
  %v2722 = vrcp.pop %v2448
  %v2723 = vmul.f32 1.0, %v2722
  %v2724 = vrcp.pop %v2449
  %v2725 = vmul.f32 1.0, %v2724
  %v2726 = vrcp.pop %v2450
  %v2727 = vmul.f32 1.0, %v2726
  %v2728 = vrcp.pop %v2451
  %v2729 = vmul.f32 1.0, %v2728
  %v2730 = vrcp.pop %v2452
  %v2731 = vmul.f32 1.0, %v2730
  %v2732 = vrcp.pop %v2453
  %v2733 = vmul.f32 1.0, %v2732
  %v2734 = vrcp.pop %v2454
  %v2735 = vmul.f32 1.0, %v2734
  %v2736 = vrcp.pop %v2455
  %v2737 = vmul.f32 1.0, %v2736
  %v2738 = vrcp.pop %v2456
  %v2739 = vmul.f32 1.0, %v2738
  %v2740 = vrcp.pop %v2457
  %v2741 = vmul.f32 1.0, %v2740
  %v2742 = vrcp.pop %v2458
  %v2743 = vmul.f32 1.0, %v2742
  %v2744 = vrcp.pop %v2459
  %v2745 = vmul.f32 1.0, %v2744
  %v2746 = vrcp.pop %v2460
  %v2747 = vmul.f32 1.0, %v2746
  %v2748 = vrcp.pop %v2461
  %v2749 = vmul.f32 1.0, %v2748
  %v2750 = vrcp.pop %v2462
  %v2751 = vmul.f32 1.0, %v2750
  %v2752 = vrcp.pop %v2463
  %v2753 = vmul.f32 1.0, %v2752
  %v2754 = vrcp.pop %v2464
  %v2755 = vmul.f32 1.0, %v2754
  %v2756 = vrcp.pop %v2465
  %v2757 = vmul.f32 1.0, %v2756
  %v2758 = vrcp.pop %v2466
  %v2759 = vmul.f32 1.0, %v2758
  %v2760 = vrcp.pop %v2467
  %v2761 = vmul.f32 1.0, %v2760
  %v2762 = vrcp.pop %v2468
  %v2763 = vmul.f32 1.0, %v2762
  %v2764 = vrcp.pop %v2469
  %v2765 = vmul.f32 1.0, %v2764
  %v2766 = vrcp.pop %v2470
  %v2767 = vmul.f32 1.0, %v2766
  %v2768 = vrcp.pop %v2471
  %v2769 = vmul.f32 1.0, %v2768
  %v2770 = vrcp.pop %v2472
  %v2771 = vmul.f32 1.0, %v2770
  %v2772 = vrcp.pop %v2473
  %v2773 = vmul.f32 1.0, %v2772
  %v2774 = vrcp.pop %v2474
  %v2775 = vmul.f32 1.0, %v2774
  %v2776 = vrcp.pop %v2475
  %v2777 = vmul.f32 1.0, %v2776
  %v2778 = vrcp.pop %v2476
  %v2779 = vmul.f32 1.0, %v2778
  %v2780 = vrcp.pop %v2477
  %v2781 = vmul.f32 1.0, %v2780
  %v2782 = vrcp.pop %v2478
  %v2783 = vmul.f32 1.0, %v2782
  %v2784 = vrcp.pop %v2479
  %v2785 = vmul.f32 1.0, %v2784
  %v2786 = vrcp.pop %v2480
  %v2787 = vmul.f32 1.0, %v2786
  %v2788 = vrcp.pop %v2481
  %v2789 = vmul.f32 1.0, %v2788
  %v2790 = vrcp.pop %v2482
  %v2791 = vmul.f32 1.0, %v2790
  %v2792 = vrcp.pop %v2483
  %v2793 = vmul.f32 1.0, %v2792
  %v2794 = vrcp.pop %v2484
  %v2795 = vmul.f32 1.0, %v2794
  %v2796 = vrcp.pop %v2485
  %v2797 = vmul.f32 1.0, %v2796
  %v2798 = vrcp.pop %v2486
  %v2799 = vmul.f32 1.0, %v2798
  %v2800 = vrcp.pop %v2487
  %v2801 = vmul.f32 1.0, %v2800
  %v2802 = vrcp.pop %v2488
  %v2803 = vmul.f32 1.0, %v2802
  %v2804 = vrcp.pop %v2489
  %v2805 = vmul.f32 1.0, %v2804
  %v2806 = vrcp.pop %v2490
  %v2807 = vmul.f32 1.0, %v2806
  %v2808 = vrcp.pop %v2491
  %v2809 = vmul.f32 1.0, %v2808
  %v2810 = vrcp.pop %v2492
  %v2811 = vmul.f32 1.0, %v2810
  %v2812 = vrcp.pop %v2493
  %v2813 = vmul.f32 1.0, %v2812
  %v2814 = vrcp.pop %v2494
  %v2815 = vmul.f32 1.0, %v2814
  %v2816 = vrcp.pop %v2495
  %v2817 = vmul.f32 1.0, %v2816
  %v2818 = vrcp.pop %v2496
  %v2819 = vmul.f32 1.0, %v2818
  %v2820 = vrcp.pop %v2497
  %v2821 = vmul.f32 1.0, %v2820
  %v2822 = vrcp.pop %v2498
  %v2823 = vmul.f32 1.0, %v2822
  %v2824 = vrcp.pop %v2499
  %v2825 = vmul.f32 1.0, %v2824
  %v2826 = vrcp.pop %v2500
  %v2827 = vmul.f32 1.0, %v2826
  %v2828 = vrcp.pop %v2501
  %v2829 = vmul.f32 1.0, %v2828
  %v2830 = vrcp.pop %v2502
  %v2831 = vmul.f32 1.0, %v2830
  %v2832 = vrcp.pop %v2503
  %v2833 = vmul.f32 1.0, %v2832
  %v2834 = vrcp.pop %v2504
  %v2835 = vmul.f32 1.0, %v2834
  %v2836 = vrcp.pop %v2505
  %v2837 = vmul.f32 1.0, %v2836
  %v2838 = vrcp.pop %v2506
  %v2839 = vmul.f32 1.0, %v2838
  %v2840 = vrcp.pop %v2507
  %v2841 = vmul.f32 1.0, %v2840
  %v2842 = vrcp.pop %v2508
  %v2843 = vmul.f32 1.0, %v2842
  %v2844 = vrcp.pop %v2509
  %v2845 = vmul.f32 1.0, %v2844
  %v2846 = vrcp.pop %v2510
  %v2847 = vmul.f32 1.0, %v2846
  %v2848 = vrcp.pop %v2511
  %v2849 = vmul.f32 1.0, %v2848
  %v2850 = vrcp.pop %v2512
  %v2851 = vmul.f32 1.0, %v2850
  %v2852 = vrcp.pop %v2513
  %v2853 = vmul.f32 1.0, %v2852
  %v2854 = vrcp.pop %v2514
  %v2855 = vmul.f32 1.0, %v2854
  %v2856 = vrcp.pop %v2515
  %v2857 = vmul.f32 1.0, %v2856
  %v2858 = vrcp.pop %v2516
  %v2859 = vmul.f32 1.0, %v2858
  %v2860 = vrcp.pop %v2517
  %v2861 = vmul.f32 1.0, %v2860
  %v2862 = vrcp.pop %v2518
  %v2863 = vmul.f32 1.0, %v2862
  %v2864 = vrcp.pop %v2519
  %v2865 = vmul.f32 1.0, %v2864
  %v2866 = vrcp.pop %v2520
  %v2867 = vmul.f32 1.0, %v2866
  %v2868 = vrcp.pop %v2521
  %v2869 = vmul.f32 1.0, %v2868
  %v2870 = vrcp.pop %v2522
  %v2871 = vmul.f32 1.0, %v2870
  %v2872 = vrcp.pop %v2523
  %v2873 = vmul.f32 1.0, %v2872
  %v2874 = vrcp.pop %v2524
  %v2875 = vmul.f32 1.0, %v2874
  %v2876 = vrcp.pop %v2525
  %v2877 = vmul.f32 1.0, %v2876
  %v2878 = vrcp.pop %v2526
  %v2879 = vmul.f32 1.0, %v2878
  %v2880 = vrcp.pop %v2527
  %v2881 = vmul.f32 1.0, %v2880
  %v2882 = vrcp.pop %v2528
  %v2883 = vmul.f32 1.0, %v2882
  %v2884 = vrcp.pop %v2529
  %v2885 = vmul.f32 1.0, %v2884
  %v2886 = vrcp.pop %v2530
  %v2887 = vmul.f32 1.0, %v2886
  %v2888 = vrcp.pop %v2531
  %v2889 = vmul.f32 1.0, %v2888
  %v2890 = vrcp.pop %v2532
  %v2891 = vmul.f32 1.0, %v2890
  %v2892 = vrcp.pop %v2533
  %v2893 = vmul.f32 1.0, %v2892
  %v2894 = vrcp.pop %v2534
  %v2895 = vmul.f32 1.0, %v2894
  %v2896 = vrcp.pop %v2535
  %v2897 = vmul.f32 1.0, %v2896
  %v2898 = vrcp.pop %v2536
  %v2899 = vmul.f32 1.0, %v2898
  %v2900 = vrcp.pop %v2537
  %v2901 = vmul.f32 1.0, %v2900
  %v2902 = vrcp.pop %v2538
  %v2903 = vmul.f32 1.0, %v2902
  %v2904 = vrcp.pop %v2539
  %v2905 = vmul.f32 1.0, %v2904
  %v2906 = vrcp.pop %v2540
  %v2907 = vmul.f32 1.0, %v2906
  %v2908 = vrcp.pop %v2541
  %v2909 = vmul.f32 1.0, %v2908
  %v2910 = vrcp.pop %v2542
  %v2911 = vmul.f32 1.0, %v2910
  %v2912 = vrcp.pop %v2543
  %v2913 = vmul.f32 1.0, %v2912
  %v2914 = vrcp.pop %v2544
  %v2915 = vmul.f32 1.0, %v2914
  %v2916 = vrcp.pop %v2545
  %v2917 = vmul.f32 1.0, %v2916
  %v2918 = vrcp.pop %v2546
  %v2919 = vmul.f32 1.0, %v2918
  %v2920 = vrcp.pop %v2547
  %v2921 = vmul.f32 1.0, %v2920
  %v2922 = vrcp.pop %v2548
  %v2923 = vmul.f32 1.0, %v2922
  %v2924 = vrcp.pop %v2549
  %v2925 = vmul.f32 1.0, %v2924
  %v2926 = vrcp.pop %v2550
  %v2927 = vmul.f32 1.0, %v2926
  %v2928 = vrcp.pop %v2551
  %v2929 = vmul.f32 1.0, %v2928
  %v2930 = vrcp.pop %v2552
  %v2931 = vmul.f32 1.0, %v2930
  %v2932 = vrcp.pop %v2553
  %v2933 = vmul.f32 1.0, %v2932
  %v2934 = vrcp.pop %v2554
  %v2935 = vmul.f32 1.0, %v2934
  %v2936 = vrcp.pop %v2555
  %v2937 = vmul.f32 1.0, %v2936
  %v2938 = vrcp.pop %v2556
  %v2939 = vmul.f32 1.0, %v2938
  %v2940 = vrcp.pop %v2557
  %v2941 = vmul.f32 1.0, %v2940
  %v2942 = vrcp.pop %v2558
  %v2943 = vmul.f32 1.0, %v2942
  %v2944 = vrcp.pop %v2559
  %v2945 = vmul.f32 1.0, %v2944
  %v2946 = vrcp.pop %v2560
  %v2947 = vmul.f32 1.0, %v2946
  %v2948 = vrcp.pop %v2561
  %v2949 = vmul.f32 1.0, %v2948
  %v2950 = vrcp.pop %v2562
  %v2951 = vmul.f32 1.0, %v2950
  %v2952 = vrcp.pop %v2563
  %v2953 = vmul.f32 1.0, %v2952
  %v2954 = vrcp.pop %v2564
  %v2955 = vmul.f32 1.0, %v2954
  %v2956 = vrcp.pop %v2565
  %v2957 = vmul.f32 1.0, %v2956
  %v2958 = vrcp.pop %v2566
  %v2959 = vmul.f32 1.0, %v2958
  %v2960 = vrcp.pop %v2567
  %v2961 = vmul.f32 1.0, %v2960
  %v2962 = vrcp.pop %v2568
  %v2963 = vmul.f32 1.0, %v2962
  %v2964 = vrcp.pop %v2569
  %v2965 = vmul.f32 1.0, %v2964
  %v2966 = vrcp.pop %v2570
  %v2967 = vmul.f32 1.0, %v2966
  %v2968 = vrcp.pop %v2571
  %v2969 = vmul.f32 1.0, %v2968
  %v2970 = vrcp.pop %v2572
  %v2971 = vmul.f32 1.0, %v2970
  %v2972 = vrcp.pop %v2573
  %v2973 = vmul.f32 1.0, %v2972
  %v2974 = vrcp.pop %v2574
  %v2975 = vmul.f32 1.0, %v2974
  %v2976 = vrcp.pop %v2575
  %v2977 = vmul.f32 1.0, %v2976
  %v2978 = vrcp.pop %v2576
  %v2979 = vmul.f32 1.0, %v2978
  %v2980 = vrcp.pop %v2577
  %v2981 = vmul.f32 1.0, %v2980
  %v2982 = vrcp.pop %v2578
  %v2983 = vmul.f32 1.0, %v2982
  %v2984 = vrcp.pop %v2579
  %v2985 = vmul.f32 1.0, %v2984
  %v2986 = vrcp.pop %v2580
  %v2987 = vmul.f32 1.0, %v2986
  %v2988 = vrcp.pop %v2581
  %v2989 = vmul.f32 1.0, %v2988
  %v2990 = vrcp.pop %v2582
  %v2991 = vmul.f32 1.0, %v2990
  %v2992 = vrcp.pop %v2583
  %v2993 = vmul.f32 1.0, %v2992
  %v2994 = vrcp.pop %v2584
  %v2995 = vmul.f32 1.0, %v2994
  %v2996 = vrcp.pop %v2585
  %v2997 = vmul.f32 1.0, %v2996
  %v2998 = vrcp.pop %v2586
  %v2999 = vmul.f32 1.0, %v2998
  %v3000 = vrcp.pop %v2587
  %v3001 = vmul.f32 1.0, %v3000
  %v3002 = vrcp.pop %v2588
  %v3003 = vmul.f32 1.0, %v3002
  %v3004 = vrcp.pop %v2589
  %v3005 = vmul.f32 1.0, %v3004
  %v3006 = vrcp.pop %v2590
  %v3007 = vmul.f32 1.0, %v3006
  %v3008 = vrcp.pop %v2591
  %v3009 = vmul.f32 1.0, %v3008
  %v3010 = vrcp.pop %v2592
  %v3011 = vmul.f32 1.0, %v3010
  %v3012 = vrcp.pop %v2593
  %v3013 = vmul.f32 1.0, %v3012
  %v3014 = vrcp.pop %v2594
  %v3015 = vmul.f32 1.0, %v3014
  %v3016 = vrcp.pop %v2595
  %v3017 = vmul.f32 1.0, %v3016
  %v3018 = vrcp.pop %v2596
  %v3019 = vmul.f32 1.0, %v3018
  %v3020 = vrcp.pop %v2597
  %v3021 = vmul.f32 1.0, %v3020
  %v3022 = vrcp.pop %v2598
  %v3023 = vmul.f32 1.0, %v3022
  %v3024 = vrcp.pop %v2599
  %v3025 = vmul.f32 1.0, %v3024
  %v3026 = vrcp.pop %v2600
  %v3027 = vmul.f32 1.0, %v3026
  %v3028 = vrcp.pop %v2601
  %v3029 = vmul.f32 1.0, %v3028
  %v3030 = vrcp.pop %v2602
  %v3031 = vmul.f32 1.0, %v3030
  %v3032 = vrcp.pop %v2603
  %v3033 = vmul.f32 1.0, %v3032
  %v3034 = vrcp.pop %v2604
  %v3035 = vmul.f32 1.0, %v3034
  %v3036 = vrcp.pop %v2605
  %v3037 = vmul.f32 1.0, %v3036
  %v3038 = vrcp.pop %v2606
  %v3039 = vmul.f32 1.0, %v3038
  %v3040 = vrcp.pop %v2607
  %v3041 = vmul.f32 1.0, %v3040
  %v3042 = vrcp.pop %v2608
  %v3043 = vmul.f32 1.0, %v3042
  %v3044 = vrcp.pop %v2609
  %v3045 = vmul.f32 1.0, %v3044
  %v3046 = vrcp.pop %v2610
  %v3047 = vmul.f32 1.0, %v3046
  %v3048 = vrcp.pop %v2611
  %v3049 = vmul.f32 1.0, %v3048
  %v3050 = vrcp.pop %v2612
  %v3051 = vmul.f32 1.0, %v3050
  %v3052 = vrcp.pop %v2613
  %v3053 = vmul.f32 1.0, %v3052
  %v3054 = vrcp.pop %v2614
  %v3055 = vmul.f32 1.0, %v3054
  %v3056 = vrcp.pop %v2615
  %v3057 = vmul.f32 1.0, %v3056
  %v3058 = vrcp.pop %v2616
  %v3059 = vmul.f32 1.0, %v3058
  %v3060 = vrcp.pop %v2617
  %v3061 = vmul.f32 1.0, %v3060
  %v3062 = vrcp.pop %v2618
  %v3063 = vmul.f32 1.0, %v3062
  %v3064 = vrcp.pop %v2619
  %v3065 = vmul.f32 1.0, %v3064
  %v3066 = vrcp.pop %v2620
  %v3067 = vmul.f32 1.0, %v3066
  %v3068 = vrcp.pop %v2621
  %v3069 = vmul.f32 1.0, %v3068
  %v3070 = vrcp.pop %v2622
  %v3071 = vmul.f32 1.0, %v3070
  %v3072 = vrcp.pop %v2623
  %v3073 = vmul.f32 1.0, %v3072
  %v3074 = vrcp.pop %v2624
  %v3075 = vmul.f32 1.0, %v3074
  %v3076 = vrcp.pop %v2625
  %v3077 = vmul.f32 1.0, %v3076
  %v3078 = vrcp.pop %v2626
  %v3079 = vmul.f32 1.0, %v3078
  %v3080 = vrcp.pop %v2627
  %v3081 = vmul.f32 1.0, %v3080
  %v3082 = vrcp.pop %v2628
  %v3083 = vmul.f32 1.0, %v3082
  %v3084 = vrcp.pop %v2629
  %v3085 = vmul.f32 1.0, %v3084
  %v3086 = vrcp.pop %v2630
  %v3087 = vmul.f32 1.0, %v3086
  %v3088 = vrcp.pop %v2631
  %v3089 = vmul.f32 1.0, %v3088
  %v3090 = vrcp.pop %v2632
  %v3091 = vmul.f32 1.0, %v3090
  %v3092 = vrcp.pop %v2633
  %v3093 = vmul.f32 1.0, %v3092
  %v3094 = vrcp.pop %v2634
  %v3095 = vmul.f32 1.0, %v3094
  %v3096 = vrcp.pop %v2635
  %v3097 = vmul.f32 1.0, %v3096
  %v3098 = vrcp.pop %v2636
  %v3099 = vmul.f32 1.0, %v3098
  %v3100 = vrcp.pop %v2637
  %v3101 = vmul.f32 1.0, %v3100
  %v3102 = vrcp.pop %v2638
  %v3103 = vmul.f32 1.0, %v3102
  %v3104 = vrcp.pop %v2639
  %v3105 = vmul.f32 1.0, %v3104
  %v3106 = vrcp.pop %v2640
  %v3107 = vmul.f32 1.0, %v3106
  %v3108 = vrcp.pop %v2641
  %v3109 = vmul.f32 1.0, %v3108
  %v3110 = vrcp.pop %v2642
  %v3111 = vmul.f32 1.0, %v3110
  %v3112 = vrcp.pop %v2643
  %v3113 = vmul.f32 1.0, %v3112
  %v3114 = vrcp.pop %v2644
  %v3115 = vmul.f32 1.0, %v3114
  %v3116 = vrcp.pop %v2645
  %v3117 = vmul.f32 1.0, %v3116
  %v3118 = vrcp.pop %v2646
  %v3119 = vmul.f32 1.0, %v3118
  %v3120 = vrcp.pop %v2647
  %v3121 = vmul.f32 1.0, %v3120
  %v3122 = vrcp.pop %v2648
  %v3123 = vmul.f32 1.0, %v3122
  %v3124 = vrcp.pop %v2649
  %v3125 = vmul.f32 1.0, %v3124
  %v3126 = vrcp.pop %v2650
  %v3127 = vmul.f32 1.0, %v3126
  %v3128 = vrcp.pop %v2651
  %v3129 = vmul.f32 1.0, %v3128
  %v3130 = vrcp.pop %v2652
  %v3131 = vmul.f32 1.0, %v3130
  %v3132 = vrcp.pop %v2653
  %v3133 = vmul.f32 1.0, %v3132
  %v3134 = vrcp.pop %v2654
  %v3135 = vmul.f32 1.0, %v3134
  %v3136 = vrcp.pop %v2655
  %v3137 = vmul.f32 1.0, %v3136
  %v3138 = vrcp.pop %v2656
  %v3139 = vmul.f32 1.0, %v3138
  %v3140 = vrcp.pop %v2657
  %v3141 = vmul.f32 1.0, %v3140
  %v3142 = vrcp.pop %v2658
  %v3143 = vmul.f32 1.0, %v3142
  %v3144 = vrcp.pop %v2659
  %v3145 = vmul.f32 1.0, %v3144
  %v3146 = vrcp.pop %v2660
  %v3147 = vmul.f32 1.0, %v3146
  %v3148 = vrcp.pop %v2661
  %v3149 = vmul.f32 1.0, %v3148
  %v3150 = vrcp.pop %v2662
  %v3151 = vmul.f32 1.0, %v3150
  %v3152 = vrcp.pop %v2663
  %v3153 = vmul.f32 1.0, %v3152
  %v3154 = vrcp.pop %v2664
  %v3155 = vmul.f32 1.0, %v3154
  %v3156 = vrcp.pop %v2665
  %v3157 = vmul.f32 1.0, %v3156
  %v3158 = vrcp.pop %v2666
  %v3159 = vmul.f32 1.0, %v3158
  %v3160 = vrcp.pop %v2667
  %v3161 = vmul.f32 1.0, %v3160
  %v3162 = vrcp.pop %v2668
  %v3163 = vmul.f32 1.0, %v3162
  %v3164 = vrcp.pop %v2669
  %v3165 = vmul.f32 1.0, %v3164
  %v3166 = vrcp.pop %v2670
  %v3167 = vmul.f32 1.0, %v3166
  %v3168 = vrcp.pop %v2671
  %v3169 = vmul.f32 1.0, %v3168
  %v3170 = vrcp.pop %v2672
  %v3171 = vmul.f32 1.0, %v3170
  %v3172 = vrcp.pop %v2673
  %v3173 = vmul.f32 1.0, %v3172
  %v3174 = vrcp.pop %v2674
  %v3175 = vmul.f32 1.0, %v3174
  %v3176 = vrcp.pop %v2675
  %v3177 = vmul.f32 1.0, %v3176
  %v3178 = vrcp.pop %v2676
  %v3179 = vmul.f32 1.0, %v3178
  %v3180 = vrcp.pop %v2677
  %v3181 = vmul.f32 1.0, %v3180
  %v3182 = vrcp.pop %v2678
  %v3183 = vmul.f32 1.0, %v3182
  %v3184 = vrcp.pop %v2679
  %v3185 = vmul.f32 1.0, %v3184
  %v3186 = vrcp.pop %v2680
  %v3187 = vmul.f32 1.0, %v3186
  %v3188 = vrcp.pop %v2681
  %v3189 = vmul.f32 1.0, %v3188
  %v3190 = vrcp.pop %v2682
  %v3191 = vmul.f32 1.0, %v3190
  %v3192 = vrcp.pop %v2683
  %v3193 = vmul.f32 1.0, %v3192
  %v3194 = vrcp.pop %v2684
  %v3195 = vmul.f32 1.0, %v3194
  %v3196 = vrcp.pop %v2685
  %v3197 = vmul.f32 1.0, %v3196
  %v3198 = vmul.f32 %v384, %v2687
  %v3199 = vmul.f32 %v389, %v2689
  %v3200 = vmul.f32 %v394, %v2691
  %v3201 = vmul.f32 %v399, %v2693
  %v3202 = vmul.f32 %v404, %v2695
  %v3203 = vmul.f32 %v409, %v2697
  %v3204 = vmul.f32 %v414, %v2699
  %v3205 = vmul.f32 %v419, %v2701
  %v3206 = vmul.f32 %v424, %v2703
  %v3207 = vmul.f32 %v429, %v2705
  %v3208 = vmul.f32 %v434, %v2707
  %v3209 = vmul.f32 %v439, %v2709
  %v3210 = vmul.f32 %v444, %v2711
  %v3211 = vmul.f32 %v449, %v2713
  %v3212 = vmul.f32 %v454, %v2715
  %v3213 = vmul.f32 %v459, %v2717
  %v3214 = vmul.f32 %v464, %v2719
  %v3215 = vmul.f32 %v469, %v2721
  %v3216 = vmul.f32 %v474, %v2723
  %v3217 = vmul.f32 %v479, %v2725
  %v3218 = vmul.f32 %v484, %v2727
  %v3219 = vmul.f32 %v489, %v2729
  %v3220 = vmul.f32 %v494, %v2731
  %v3221 = vmul.f32 %v499, %v2733
  %v3222 = vmul.f32 %v504, %v2735
  %v3223 = vmul.f32 %v509, %v2737
  %v3224 = vmul.f32 %v514, %v2739
  %v3225 = vmul.f32 %v519, %v2741
  %v3226 = vmul.f32 %v524, %v2743
  %v3227 = vmul.f32 %v529, %v2745
  %v3228 = vmul.f32 %v534, %v2747
  %v3229 = vmul.f32 %v539, %v2749
  %v3230 = vmul.f32 %v544, %v2751
  %v3231 = vmul.f32 %v549, %v2753
  %v3232 = vmul.f32 %v554, %v2755
  %v3233 = vmul.f32 %v559, %v2757
  %v3234 = vmul.f32 %v564, %v2759
  %v3235 = vmul.f32 %v569, %v2761
  %v3236 = vmul.f32 %v574, %v2763
  %v3237 = vmul.f32 %v579, %v2765
  %v3238 = vmul.f32 %v584, %v2767
  %v3239 = vmul.f32 %v589, %v2769
  %v3240 = vmul.f32 %v594, %v2771
  %v3241 = vmul.f32 %v599, %v2773
  %v3242 = vmul.f32 %v604, %v2775
  %v3243 = vmul.f32 %v609, %v2777
  %v3244 = vmul.f32 %v614, %v2779
  %v3245 = vmul.f32 %v619, %v2781
  %v3246 = vmul.f32 %v624, %v2783
  %v3247 = vmul.f32 %v629, %v2785
  %v3248 = vmul.f32 %v634, %v2787
  %v3249 = vmul.f32 %v639, %v2789
  %v3250 = vmul.f32 %v644, %v2791
  %v3251 = vmul.f32 %v649, %v2793
  %v3252 = vmul.f32 %v654, %v2795
  %v3253 = vmul.f32 %v659, %v2797
  %v3254 = vmul.f32 %v664, %v2799
  %v3255 = vmul.f32 %v669, %v2801
  %v3256 = vmul.f32 %v674, %v2803
  %v3257 = vmul.f32 %v679, %v2805
  %v3258 = vmul.f32 %v684, %v2807
  %v3259 = vmul.f32 %v689, %v2809
  %v3260 = vmul.f32 %v694, %v2811
  %v3261 = vmul.f32 %v699, %v2813
  %v3262 = vmul.f32 %v704, %v2815
  %v3263 = vmul.f32 %v709, %v2817
  %v3264 = vmul.f32 %v714, %v2819
  %v3265 = vmul.f32 %v719, %v2821
  %v3266 = vmul.f32 %v724, %v2823
  %v3267 = vmul.f32 %v729, %v2825
  %v3268 = vmul.f32 %v734, %v2827
  %v3269 = vmul.f32 %v739, %v2829
  %v3270 = vmul.f32 %v744, %v2831
  %v3271 = vmul.f32 %v749, %v2833
  %v3272 = vmul.f32 %v754, %v2835
  %v3273 = vmul.f32 %v759, %v2837
  %v3274 = vmul.f32 %v764, %v2839
  %v3275 = vmul.f32 %v769, %v2841
  %v3276 = vmul.f32 %v774, %v2843
  %v3277 = vmul.f32 %v779, %v2845
  %v3278 = vmul.f32 %v784, %v2847
  %v3279 = vmul.f32 %v789, %v2849
  %v3280 = vmul.f32 %v794, %v2851
  %v3281 = vmul.f32 %v799, %v2853
  %v3282 = vmul.f32 %v804, %v2855
  %v3283 = vmul.f32 %v809, %v2857
  %v3284 = vmul.f32 %v814, %v2859
  %v3285 = vmul.f32 %v819, %v2861
  %v3286 = vmul.f32 %v824, %v2863
  %v3287 = vmul.f32 %v829, %v2865
  %v3288 = vmul.f32 %v834, %v2867
  %v3289 = vmul.f32 %v839, %v2869
  %v3290 = vmul.f32 %v844, %v2871
  %v3291 = vmul.f32 %v849, %v2873
  %v3292 = vmul.f32 %v854, %v2875
  %v3293 = vmul.f32 %v859, %v2877
  %v3294 = vmul.f32 %v864, %v2879
  %v3295 = vmul.f32 %v869, %v2881
  %v3296 = vmul.f32 %v874, %v2883
  %v3297 = vmul.f32 %v879, %v2885
  %v3298 = vmul.f32 %v884, %v2887
  %v3299 = vmul.f32 %v889, %v2889
  %v3300 = vmul.f32 %v894, %v2891
  %v3301 = vmul.f32 %v899, %v2893
  %v3302 = vmul.f32 %v904, %v2895
  %v3303 = vmul.f32 %v909, %v2897
  %v3304 = vmul.f32 %v914, %v2899
  %v3305 = vmul.f32 %v919, %v2901
  %v3306 = vmul.f32 %v924, %v2903
  %v3307 = vmul.f32 %v929, %v2905
  %v3308 = vmul.f32 %v934, %v2907
  %v3309 = vmul.f32 %v939, %v2909
  %v3310 = vmul.f32 %v944, %v2911
  %v3311 = vmul.f32 %v949, %v2913
  %v3312 = vmul.f32 %v954, %v2915
  %v3313 = vmul.f32 %v959, %v2917
  %v3314 = vmul.f32 %v964, %v2919
  %v3315 = vmul.f32 %v969, %v2921
  %v3316 = vmul.f32 %v974, %v2923
  %v3317 = vmul.f32 %v979, %v2925
  %v3318 = vmul.f32 %v984, %v2927
  %v3319 = vmul.f32 %v989, %v2929
  %v3320 = vmul.f32 %v994, %v2931
  %v3321 = vmul.f32 %v999, %v2933
  %v3322 = vmul.f32 %v1004, %v2935
  %v3323 = vmul.f32 %v1009, %v2937
  %v3324 = vmul.f32 %v1014, %v2939
  %v3325 = vmul.f32 %v1019, %v2941
  %v3326 = vmul.f32 %v1024, %v2943
  %v3327 = vmul.f32 %v1029, %v2945
  %v3328 = vmul.f32 %v1034, %v2947
  %v3329 = vmul.f32 %v1039, %v2949
  %v3330 = vmul.f32 %v1044, %v2951
  %v3331 = vmul.f32 %v1049, %v2953
  %v3332 = vmul.f32 %v1054, %v2955
  %v3333 = vmul.f32 %v1059, %v2957
  %v3334 = vmul.f32 %v1064, %v2959
  %v3335 = vmul.f32 %v1069, %v2961
  %v3336 = vmul.f32 %v1074, %v2963
  %v3337 = vmul.f32 %v1079, %v2965
  %v3338 = vmul.f32 %v1084, %v2967
  %v3339 = vmul.f32 %v1089, %v2969
  %v3340 = vmul.f32 %v1094, %v2971
  %v3341 = vmul.f32 %v1099, %v2973
  %v3342 = vmul.f32 %v1104, %v2975
  %v3343 = vmul.f32 %v1109, %v2977
  %v3344 = vmul.f32 %v1114, %v2979
  %v3345 = vmul.f32 %v1119, %v2981
  %v3346 = vmul.f32 %v1124, %v2983
  %v3347 = vmul.f32 %v1129, %v2985
  %v3348 = vmul.f32 %v1134, %v2987
  %v3349 = vmul.f32 %v1139, %v2989
  %v3350 = vmul.f32 %v1144, %v2991
  %v3351 = vmul.f32 %v1149, %v2993
  %v3352 = vmul.f32 %v1154, %v2995
  %v3353 = vmul.f32 %v1159, %v2997
  %v3354 = vmul.f32 %v1164, %v2999
  %v3355 = vmul.f32 %v1169, %v3001
  %v3356 = vmul.f32 %v1174, %v3003
  %v3357 = vmul.f32 %v1179, %v3005
  %v3358 = vmul.f32 %v1184, %v3007
  %v3359 = vmul.f32 %v1189, %v3009
  %v3360 = vmul.f32 %v1194, %v3011
  %v3361 = vmul.f32 %v1199, %v3013
  %v3362 = vmul.f32 %v1204, %v3015
  %v3363 = vmul.f32 %v1209, %v3017
  %v3364 = vmul.f32 %v1214, %v3019
  %v3365 = vmul.f32 %v1219, %v3021
  %v3366 = vmul.f32 %v1224, %v3023
  %v3367 = vmul.f32 %v1229, %v3025
  %v3368 = vmul.f32 %v1234, %v3027
  %v3369 = vmul.f32 %v1239, %v3029
  %v3370 = vmul.f32 %v1244, %v3031
  %v3371 = vmul.f32 %v1249, %v3033
  %v3372 = vmul.f32 %v1254, %v3035
  %v3373 = vmul.f32 %v1259, %v3037
  %v3374 = vmul.f32 %v1264, %v3039
  %v3375 = vmul.f32 %v1269, %v3041
  %v3376 = vmul.f32 %v1274, %v3043
  %v3377 = vmul.f32 %v1279, %v3045
  %v3378 = vmul.f32 %v1284, %v3047
  %v3379 = vmul.f32 %v1289, %v3049
  %v3380 = vmul.f32 %v1294, %v3051
  %v3381 = vmul.f32 %v1299, %v3053
  %v3382 = vmul.f32 %v1304, %v3055
  %v3383 = vmul.f32 %v1309, %v3057
  %v3384 = vmul.f32 %v1314, %v3059
  %v3385 = vmul.f32 %v1319, %v3061
  %v3386 = vmul.f32 %v1324, %v3063
  %v3387 = vmul.f32 %v1329, %v3065
  %v3388 = vmul.f32 %v1334, %v3067
  %v3389 = vmul.f32 %v1339, %v3069
  %v3390 = vmul.f32 %v1344, %v3071
  %v3391 = vmul.f32 %v1349, %v3073
  %v3392 = vmul.f32 %v1354, %v3075
  %v3393 = vmul.f32 %v1359, %v3077
  %v3394 = vmul.f32 %v1364, %v3079
  %v3395 = vmul.f32 %v1369, %v3081
  %v3396 = vmul.f32 %v1374, %v3083
  %v3397 = vmul.f32 %v1379, %v3085
  %v3398 = vmul.f32 %v1384, %v3087
  %v3399 = vmul.f32 %v1389, %v3089
  %v3400 = vmul.f32 %v1394, %v3091
  %v3401 = vmul.f32 %v1399, %v3093
  %v3402 = vmul.f32 %v1404, %v3095
  %v3403 = vmul.f32 %v1409, %v3097
  %v3404 = vmul.f32 %v1414, %v3099
  %v3405 = vmul.f32 %v1419, %v3101
  %v3406 = vmul.f32 %v1424, %v3103
  %v3407 = vmul.f32 %v1429, %v3105
  %v3408 = vmul.f32 %v1434, %v3107
  %v3409 = vmul.f32 %v1439, %v3109
  %v3410 = vmul.f32 %v1444, %v3111
  %v3411 = vmul.f32 %v1449, %v3113
  %v3412 = vmul.f32 %v1454, %v3115
  %v3413 = vmul.f32 %v1459, %v3117
  %v3414 = vmul.f32 %v1464, %v3119
  %v3415 = vmul.f32 %v1469, %v3121
  %v3416 = vmul.f32 %v1474, %v3123
  %v3417 = vmul.f32 %v1479, %v3125
  %v3418 = vmul.f32 %v1484, %v3127
  %v3419 = vmul.f32 %v1489, %v3129
  %v3420 = vmul.f32 %v1494, %v3131
  %v3421 = vmul.f32 %v1499, %v3133
  %v3422 = vmul.f32 %v1504, %v3135
  %v3423 = vmul.f32 %v1509, %v3137
  %v3424 = vmul.f32 %v1514, %v3139
  %v3425 = vmul.f32 %v1519, %v3141
  %v3426 = vmul.f32 %v1524, %v3143
  %v3427 = vmul.f32 %v1529, %v3145
  %v3428 = vmul.f32 %v1534, %v3147
  %v3429 = vmul.f32 %v1539, %v3149
  %v3430 = vmul.f32 %v1544, %v3151
  %v3431 = vmul.f32 %v1549, %v3153
  %v3432 = vmul.f32 %v1554, %v3155
  %v3433 = vmul.f32 %v1559, %v3157
  %v3434 = vmul.f32 %v1564, %v3159
  %v3435 = vmul.f32 %v1569, %v3161
  %v3436 = vmul.f32 %v1574, %v3163
  %v3437 = vmul.f32 %v1579, %v3165
  %v3438 = vmul.f32 %v1584, %v3167
  %v3439 = vmul.f32 %v1589, %v3169
  %v3440 = vmul.f32 %v1594, %v3171
  %v3441 = vmul.f32 %v1599, %v3173
  %v3442 = vmul.f32 %v1604, %v3175
  %v3443 = vmul.f32 %v1609, %v3177
  %v3444 = vmul.f32 %v1614, %v3179
  %v3445 = vmul.f32 %v1619, %v3181
  %v3446 = vmul.f32 %v1624, %v3183
  %v3447 = vmul.f32 %v1629, %v3185
  %v3448 = vmul.f32 %v1634, %v3187
  %v3449 = vmul.f32 %v1639, %v3189
  %v3450 = vmul.f32 %v1644, %v3191
  %v3451 = vmul.f32 %v1649, %v3193
  %v3452 = vmul.f32 %v1654, %v3195
  %v3453 = vmul.f32 %v1659, %v3197
  %v3454 = vadd.f32 %v3198, %v3199
  %v3455 = vadd.f32 %v3454, %v3200
  %v3456 = vadd.f32 %v3455, %v3201
  %v3457 = vadd.f32 %v3456, %v3202
  %v3458 = vadd.f32 %v3457, %v3203
  %v3459 = vadd.f32 %v3458, %v3204
  %v3460 = vadd.f32 %v3459, %v3205
  %v3461 = vadd.f32 %v3460, %v3206
  %v3462 = vadd.f32 %v3461, %v3207
  %v3463 = vadd.f32 %v3462, %v3208
  %v3464 = vadd.f32 %v3463, %v3209
  %v3465 = vadd.f32 %v3464, %v3210
  %v3466 = vadd.f32 %v3465, %v3211
  %v3467 = vadd.f32 %v3466, %v3212
  %v3468 = vadd.f32 %v3467, %v3213
  %v3469 = vadd.f32 %v3468, %v3214
  %v3470 = vadd.f32 %v3469, %v3215
  %v3471 = vadd.f32 %v3470, %v3216
  %v3472 = vadd.f32 %v3471, %v3217
  %v3473 = vadd.f32 %v3472, %v3218
  %v3474 = vadd.f32 %v3473, %v3219
  %v3475 = vadd.f32 %v3474, %v3220
  %v3476 = vadd.f32 %v3475, %v3221
  %v3477 = vadd.f32 %v3476, %v3222
  %v3478 = vadd.f32 %v3477, %v3223
  %v3479 = vadd.f32 %v3478, %v3224
  %v3480 = vadd.f32 %v3479, %v3225
  %v3481 = vadd.f32 %v3480, %v3226
  %v3482 = vadd.f32 %v3481, %v3227
  %v3483 = vadd.f32 %v3482, %v3228
  %v3484 = vadd.f32 %v3483, %v3229
  %v3485 = vrot.slane %v3484, 4
  %v3486 = vadd.f32 %v3484, %v3485
  %v3487 = vrot.slane %v3486, 2
  %v3488 = vadd.f32 %v3486, %v3487
  %v3489 = vrot.slane %v3488, 1
  %v3490 = vadd.f32 %v3488, %v3489
  %v3491 = vadd.f32 %v3230, %v3231
  %v3492 = vadd.f32 %v3491, %v3232
  %v3493 = vadd.f32 %v3492, %v3233
  %v3494 = vadd.f32 %v3493, %v3234
  %v3495 = vadd.f32 %v3494, %v3235
  %v3496 = vadd.f32 %v3495, %v3236
  %v3497 = vadd.f32 %v3496, %v3237
  %v3498 = vadd.f32 %v3497, %v3238
  %v3499 = vadd.f32 %v3498, %v3239
  %v3500 = vadd.f32 %v3499, %v3240
  %v3501 = vadd.f32 %v3500, %v3241
  %v3502 = vadd.f32 %v3501, %v3242
  %v3503 = vadd.f32 %v3502, %v3243
  %v3504 = vadd.f32 %v3503, %v3244
  %v3505 = vadd.f32 %v3504, %v3245
  %v3506 = vadd.f32 %v3505, %v3246
  %v3507 = vadd.f32 %v3506, %v3247
  %v3508 = vadd.f32 %v3507, %v3248
  %v3509 = vadd.f32 %v3508, %v3249
  %v3510 = vadd.f32 %v3509, %v3250
  %v3511 = vadd.f32 %v3510, %v3251
  %v3512 = vadd.f32 %v3511, %v3252
  %v3513 = vadd.f32 %v3512, %v3253
  %v3514 = vadd.f32 %v3513, %v3254
  %v3515 = vadd.f32 %v3514, %v3255
  %v3516 = vadd.f32 %v3515, %v3256
  %v3517 = vadd.f32 %v3516, %v3257
  %v3518 = vadd.f32 %v3517, %v3258
  %v3519 = vadd.f32 %v3518, %v3259
  %v3520 = vadd.f32 %v3519, %v3260
  %v3521 = vadd.f32 %v3520, %v3261
  %v3522 = vrot.slane %v3521, 4
  %v3523 = vadd.f32 %v3521, %v3522
  %v3524 = vrot.slane %v3523, 2
  %v3525 = vadd.f32 %v3523, %v3524
  %v3526 = vrot.slane %v3525, 1
  %v3527 = vadd.f32 %v3525, %v3526
  %v3528 = vadd.f32 %v3262, %v3263
  %v3529 = vadd.f32 %v3528, %v3264
  %v3530 = vadd.f32 %v3529, %v3265
  %v3531 = vadd.f32 %v3530, %v3266
  %v3532 = vadd.f32 %v3531, %v3267
  %v3533 = vadd.f32 %v3532, %v3268
  %v3534 = vadd.f32 %v3533, %v3269
  %v3535 = vadd.f32 %v3534, %v3270
  %v3536 = vadd.f32 %v3535, %v3271
  %v3537 = vadd.f32 %v3536, %v3272
  %v3538 = vadd.f32 %v3537, %v3273
  %v3539 = vadd.f32 %v3538, %v3274
  %v3540 = vadd.f32 %v3539, %v3275
  %v3541 = vadd.f32 %v3540, %v3276
  %v3542 = vadd.f32 %v3541, %v3277
  %v3543 = vadd.f32 %v3542, %v3278
  %v3544 = vadd.f32 %v3543, %v3279
  %v3545 = vadd.f32 %v3544, %v3280
  %v3546 = vadd.f32 %v3545, %v3281
  %v3547 = vadd.f32 %v3546, %v3282
  %v3548 = vadd.f32 %v3547, %v3283
  %v3549 = vadd.f32 %v3548, %v3284
  %v3550 = vadd.f32 %v3549, %v3285
  %v3551 = vadd.f32 %v3550, %v3286
  %v3552 = vadd.f32 %v3551, %v3287
  %v3553 = vadd.f32 %v3552, %v3288
  %v3554 = vadd.f32 %v3553, %v3289
  %v3555 = vadd.f32 %v3554, %v3290
  %v3556 = vadd.f32 %v3555, %v3291
  %v3557 = vadd.f32 %v3556, %v3292
  %v3558 = vadd.f32 %v3557, %v3293
  %v3559 = vrot.slane %v3558, 4
  %v3560 = vadd.f32 %v3558, %v3559
  %v3561 = vrot.slane %v3560, 2
  %v3562 = vadd.f32 %v3560, %v3561
  %v3563 = vrot.slane %v3562, 1
  %v3564 = vadd.f32 %v3562, %v3563
  %v3565 = vadd.f32 %v3294, %v3295
  %v3566 = vadd.f32 %v3565, %v3296
  %v3567 = vadd.f32 %v3566, %v3297
  %v3568 = vadd.f32 %v3567, %v3298
  %v3569 = vadd.f32 %v3568, %v3299
  %v3570 = vadd.f32 %v3569, %v3300
  %v3571 = vadd.f32 %v3570, %v3301
  %v3572 = vadd.f32 %v3571, %v3302
  %v3573 = vadd.f32 %v3572, %v3303
  %v3574 = vadd.f32 %v3573, %v3304
  %v3575 = vadd.f32 %v3574, %v3305
  %v3576 = vadd.f32 %v3575, %v3306
  %v3577 = vadd.f32 %v3576, %v3307
  %v3578 = vadd.f32 %v3577, %v3308
  %v3579 = vadd.f32 %v3578, %v3309
  %v3580 = vadd.f32 %v3579, %v3310
  %v3581 = vadd.f32 %v3580, %v3311
  %v3582 = vadd.f32 %v3581, %v3312
  %v3583 = vadd.f32 %v3582, %v3313
  %v3584 = vadd.f32 %v3583, %v3314
  %v3585 = vadd.f32 %v3584, %v3315
  %v3586 = vadd.f32 %v3585, %v3316
  %v3587 = vadd.f32 %v3586, %v3317
  %v3588 = vadd.f32 %v3587, %v3318
  %v3589 = vadd.f32 %v3588, %v3319
  %v3590 = vadd.f32 %v3589, %v3320
  %v3591 = vadd.f32 %v3590, %v3321
  %v3592 = vadd.f32 %v3591, %v3322
  %v3593 = vadd.f32 %v3592, %v3323
  %v3594 = vadd.f32 %v3593, %v3324
  %v3595 = vadd.f32 %v3594, %v3325
  %v3596 = vrot.slane %v3595, 4
  %v3597 = vadd.f32 %v3595, %v3596
  %v3598 = vrot.slane %v3597, 2
  %v3599 = vadd.f32 %v3597, %v3598
  %v3600 = vrot.slane %v3599, 1
  %v3601 = vadd.f32 %v3599, %v3600
  %v3602 = vadd.f32 %v3326, %v3327
  %v3603 = vadd.f32 %v3602, %v3328
  %v3604 = vadd.f32 %v3603, %v3329
  %v3605 = vadd.f32 %v3604, %v3330
  %v3606 = vadd.f32 %v3605, %v3331
  %v3607 = vadd.f32 %v3606, %v3332
  %v3608 = vadd.f32 %v3607, %v3333
  %v3609 = vadd.f32 %v3608, %v3334
  %v3610 = vadd.f32 %v3609, %v3335
  %v3611 = vadd.f32 %v3610, %v3336
  %v3612 = vadd.f32 %v3611, %v3337
  %v3613 = vadd.f32 %v3612, %v3338
  %v3614 = vadd.f32 %v3613, %v3339
  %v3615 = vadd.f32 %v3614, %v3340
  %v3616 = vadd.f32 %v3615, %v3341
  %v3617 = vadd.f32 %v3616, %v3342
  %v3618 = vadd.f32 %v3617, %v3343
  %v3619 = vadd.f32 %v3618, %v3344
  %v3620 = vadd.f32 %v3619, %v3345
  %v3621 = vadd.f32 %v3620, %v3346
  %v3622 = vadd.f32 %v3621, %v3347
  %v3623 = vadd.f32 %v3622, %v3348
  %v3624 = vadd.f32 %v3623, %v3349
  %v3625 = vadd.f32 %v3624, %v3350
  %v3626 = vadd.f32 %v3625, %v3351
  %v3627 = vadd.f32 %v3626, %v3352
  %v3628 = vadd.f32 %v3627, %v3353
  %v3629 = vadd.f32 %v3628, %v3354
  %v3630 = vadd.f32 %v3629, %v3355
  %v3631 = vadd.f32 %v3630, %v3356
  %v3632 = vadd.f32 %v3631, %v3357
  %v3633 = vrot.slane %v3632, 4
  %v3634 = vadd.f32 %v3632, %v3633
  %v3635 = vrot.slane %v3634, 2
  %v3636 = vadd.f32 %v3634, %v3635
  %v3637 = vrot.slane %v3636, 1
  %v3638 = vadd.f32 %v3636, %v3637
  %v3639 = vadd.f32 %v3358, %v3359
  %v3640 = vadd.f32 %v3639, %v3360
  %v3641 = vadd.f32 %v3640, %v3361
  %v3642 = vadd.f32 %v3641, %v3362
  %v3643 = vadd.f32 %v3642, %v3363
  %v3644 = vadd.f32 %v3643, %v3364
  %v3645 = vadd.f32 %v3644, %v3365
  %v3646 = vadd.f32 %v3645, %v3366
  %v3647 = vadd.f32 %v3646, %v3367
  %v3648 = vadd.f32 %v3647, %v3368
  %v3649 = vadd.f32 %v3648, %v3369
  %v3650 = vadd.f32 %v3649, %v3370
  %v3651 = vadd.f32 %v3650, %v3371
  %v3652 = vadd.f32 %v3651, %v3372
  %v3653 = vadd.f32 %v3652, %v3373
  %v3654 = vadd.f32 %v3653, %v3374
  %v3655 = vadd.f32 %v3654, %v3375
  %v3656 = vadd.f32 %v3655, %v3376
  %v3657 = vadd.f32 %v3656, %v3377
  %v3658 = vadd.f32 %v3657, %v3378
  %v3659 = vadd.f32 %v3658, %v3379
  %v3660 = vadd.f32 %v3659, %v3380
  %v3661 = vadd.f32 %v3660, %v3381
  %v3662 = vadd.f32 %v3661, %v3382
  %v3663 = vadd.f32 %v3662, %v3383
  %v3664 = vadd.f32 %v3663, %v3384
  %v3665 = vadd.f32 %v3664, %v3385
  %v3666 = vadd.f32 %v3665, %v3386
  %v3667 = vadd.f32 %v3666, %v3387
  %v3668 = vadd.f32 %v3667, %v3388
  %v3669 = vadd.f32 %v3668, %v3389
  %v3670 = vrot.slane %v3669, 4
  %v3671 = vadd.f32 %v3669, %v3670
  %v3672 = vrot.slane %v3671, 2
  %v3673 = vadd.f32 %v3671, %v3672
  %v3674 = vrot.slane %v3673, 1
  %v3675 = vadd.f32 %v3673, %v3674
  %v3676 = vadd.f32 %v3390, %v3391
  %v3677 = vadd.f32 %v3676, %v3392
  %v3678 = vadd.f32 %v3677, %v3393
  %v3679 = vadd.f32 %v3678, %v3394
  %v3680 = vadd.f32 %v3679, %v3395
  %v3681 = vadd.f32 %v3680, %v3396
  %v3682 = vadd.f32 %v3681, %v3397
  %v3683 = vadd.f32 %v3682, %v3398
  %v3684 = vadd.f32 %v3683, %v3399
  %v3685 = vadd.f32 %v3684, %v3400
  %v3686 = vadd.f32 %v3685, %v3401
  %v3687 = vadd.f32 %v3686, %v3402
  %v3688 = vadd.f32 %v3687, %v3403
  %v3689 = vadd.f32 %v3688, %v3404
  %v3690 = vadd.f32 %v3689, %v3405
  %v3691 = vadd.f32 %v3690, %v3406
  %v3692 = vadd.f32 %v3691, %v3407
  %v3693 = vadd.f32 %v3692, %v3408
  %v3694 = vadd.f32 %v3693, %v3409
  %v3695 = vadd.f32 %v3694, %v3410
  %v3696 = vadd.f32 %v3695, %v3411
  %v3697 = vadd.f32 %v3696, %v3412
  %v3698 = vadd.f32 %v3697, %v3413
  %v3699 = vadd.f32 %v3698, %v3414
  %v3700 = vadd.f32 %v3699, %v3415
  %v3701 = vadd.f32 %v3700, %v3416
  %v3702 = vadd.f32 %v3701, %v3417
  %v3703 = vadd.f32 %v3702, %v3418
  %v3704 = vadd.f32 %v3703, %v3419
  %v3705 = vadd.f32 %v3704, %v3420
  %v3706 = vadd.f32 %v3705, %v3421
  %v3707 = vrot.slane %v3706, 4
  %v3708 = vadd.f32 %v3706, %v3707
  %v3709 = vrot.slane %v3708, 2
  %v3710 = vadd.f32 %v3708, %v3709
  %v3711 = vrot.slane %v3710, 1
  %v3712 = vadd.f32 %v3710, %v3711
  %v3713 = vadd.f32 %v3422, %v3423
  %v3714 = vadd.f32 %v3713, %v3424
  %v3715 = vadd.f32 %v3714, %v3425
  %v3716 = vadd.f32 %v3715, %v3426
  %v3717 = vadd.f32 %v3716, %v3427
  %v3718 = vadd.f32 %v3717, %v3428
  %v3719 = vadd.f32 %v3718, %v3429
  %v3720 = vadd.f32 %v3719, %v3430
  %v3721 = vadd.f32 %v3720, %v3431
  %v3722 = vadd.f32 %v3721, %v3432
  %v3723 = vadd.f32 %v3722, %v3433
  %v3724 = vadd.f32 %v3723, %v3434
  %v3725 = vadd.f32 %v3724, %v3435
  %v3726 = vadd.f32 %v3725, %v3436
  %v3727 = vadd.f32 %v3726, %v3437
  %v3728 = vadd.f32 %v3727, %v3438
  %v3729 = vadd.f32 %v3728, %v3439
  %v3730 = vadd.f32 %v3729, %v3440
  %v3731 = vadd.f32 %v3730, %v3441
  %v3732 = vadd.f32 %v3731, %v3442
  %v3733 = vadd.f32 %v3732, %v3443
  %v3734 = vadd.f32 %v3733, %v3444
  %v3735 = vadd.f32 %v3734, %v3445
  %v3736 = vadd.f32 %v3735, %v3446
  %v3737 = vadd.f32 %v3736, %v3447
  %v3738 = vadd.f32 %v3737, %v3448
  %v3739 = vadd.f32 %v3738, %v3449
  %v3740 = vadd.f32 %v3739, %v3450
  %v3741 = vadd.f32 %v3740, %v3451
  %v3742 = vadd.f32 %v3741, %v3452
  %v3743 = vadd.f32 %v3742, %v3453
  %v3744 = vrot.slane %v3743, 4
  %v3745 = vadd.f32 %v3743, %v3744
  %v3746 = vrot.slane %v3745, 2
  %v3747 = vadd.f32 %v3745, %v3746
  %v3748 = vrot.slane %v3747, 1
  %v3749 = vadd.f32 %v3747, %v3748
  %v3750 = vmul.f32 %v3490, 0.00390625
  %v3751 = vmul.f32 %v3527, 0.00390625
  %v3752 = vmul.f32 %v3564, 0.00390625
  %v3753 = vmul.f32 %v3601, 0.00390625
  %v3754 = vmul.f32 %v3638, 0.00390625
  %v3755 = vmul.f32 %v3675, 0.00390625
  %v3756 = vmul.f32 %v3712, 0.00390625
  %v3757 = vmul.f32 %v3749, 0.00390625
  %v3758 = vld [vmem:[%s3] sm:$0xff]
  %v3759 = vld [vmem:[%s3 + $0x8] sm:$0xff]
  %v3760 = vld [vmem:[%s3 + $0x10] sm:$0xff]
  %v3761 = vld [vmem:[%s3 + $0x18] sm:$0xff]
  %v3762 = vld [vmem:[%s3 + $0x20] sm:$0xff]
  %v3763 = vld [vmem:[%s3 + $0x28] sm:$0xff]
  %v3764 = vld [vmem:[%s3 + $0x30] sm:$0xff]
  %v3765 = vld [vmem:[%s3 + $0x38] sm:$0xff]
  %v3766 = vld [vmem:[%s3 + $0x40] sm:$0xff]
  %v3767 = vld [vmem:[%s3 + $0x48] sm:$0xff]
  %v3768 = vld [vmem:[%s3 + $0x50] sm:$0xff]
  %v3769 = vld [vmem:[%s3 + $0x58] sm:$0xff]
  %v3770 = vld [vmem:[%s3 + $0x60] sm:$0xff]
  %v3771 = vld [vmem:[%s3 + $0x68] sm:$0xff]
  %v3772 = vld [vmem:[%s3 + $0x70] sm:$0xff]
  %v3773 = vld [vmem:[%s3 + $0x78] sm:$0xff]
  %v3774 = vld [vmem:[%s3 + $0x80] sm:$0xff]
  %v3775 = vld [vmem:[%s3 + $0x88] sm:$0xff]
  %v3776 = vld [vmem:[%s3 + $0x90] sm:$0xff]
  %v3777 = vld [vmem:[%s3 + $0x98] sm:$0xff]
  %v3778 = vld [vmem:[%s3 + $0xa0] sm:$0xff]
  %v3779 = vld [vmem:[%s3 + $0xa8] sm:$0xff]
  %v3780 = vld [vmem:[%s3 + $0xb0] sm:$0xff]
  %v3781 = vld [vmem:[%s3 + $0xb8] sm:$0xff]
  %v3782 = vld [vmem:[%s3 + $0xc0] sm:$0xff]
  %v3783 = vld [vmem:[%s3 + $0xc8] sm:$0xff]
  %v3784 = vld [vmem:[%s3 + $0xd0] sm:$0xff]
  %v3785 = vld [vmem:[%s3 + $0xd8] sm:$0xff]
  %v3786 = vld [vmem:[%s3 + $0xe0] sm:$0xff]
  %v3787 = vld [vmem:[%s3 + $0xe8] sm:$0xff]
  %v3788 = vld [vmem:[%s3 + $0xf0] sm:$0xff]
  %v3789 = vld [vmem:[%s3 + $0xf8] sm:$0xff]
  %v3790 = vld [vmem:[%s4] sm:$0x3]
  %v3792 = vlaneseq
  %v3793 = vshrl.u32 %v3792, 7
  %v3794 = vsub.s32 0, %v3793
  %v3795 = vrot.slane %v3790, %v3794
  %v3796 = vlaneseq
  %v3797 = vshrl.u32 %v3796, 7
  %v3798 = vsub.s32 1, %v3797
  %v3799 = vrot.slane %v3790, %v3798
  %vm3810 = vcmask 1041409
  %v3811 = vsel %vm3810, %v3751, %v3750
  %vm3812 = vcmask 1042434
  %v3813 = vsel %vm3812, %v3752, %v3811
  %vm3814 = vcmask 1043459
  %v3815 = vsel %vm3814, %v3753, %v3813
  %vm3816 = vcmask 1044484
  %v3817 = vsel %vm3816, %v3754, %v3815
  %vm3818 = vcmask 1045509
  %v3819 = vsel %vm3818, %v3755, %v3817
  %vm3820 = vcmask 1046534
  %v3821 = vsel %vm3820, %v3756, %v3819
  %vm3822 = vcmask 1047559
  %v3823 = vsel %vm3822, %v3757, %v3821
  %3825 = vmatprep.subr.mxu0 %v3789
  %3826 = vmatpush1.msra.mxu0 %v3788
  %3827 = vmatprep.subr.mxu0 %v3787
  %3828 = vmatpush1.msra.mxu0 %v3786
  %3829 = vmatprep.subr.mxu0 %v3785
  %3830 = vmatpush1.msra.mxu0 %v3784
  %3831 = vmatprep.subr.mxu0 %v3783
  %3832 = vmatpush1.msra.mxu0 %v3782
  %3833 = vmatprep.subr.mxu0 %v3781
  %3834 = vmatpush1.msra.mxu0 %v3780
  %3835 = vmatprep.subr.mxu0 %v3779
  %3836 = vmatpush1.msra.mxu0 %v3778
  %3837 = vmatprep.subr.mxu0 %v3777
  %3838 = vmatpush1.msra.mxu0 %v3776
  %3839 = vmatprep.subr.mxu0 %v3775
  %3840 = vmatpush1.msra.mxu0 %v3774
  %3841 = vmatprep.subr.mxu0 %v3773
  %3842 = vmatpush1.msra.mxu0 %v3772
  %3843 = vmatprep.subr.mxu0 %v3771
  %3844 = vmatpush1.msra.mxu0 %v3770
  %3845 = vmatprep.subr.mxu0 %v3769
  %3846 = vmatpush1.msra.mxu0 %v3768
  %3847 = vmatprep.subr.mxu0 %v3767
  %3848 = vmatpush1.msra.mxu0 %v3766
  %3849 = vmatprep.subr.mxu0 %v3765
  %3850 = vmatpush1.msra.mxu0 %v3764
  %3851 = vmatprep.subr.mxu0 %v3763
  %3852 = vmatpush1.msra.mxu0 %v3762
  %3853 = vmatprep.subr.mxu0 %v3761
  %3854 = vmatpush1.msra.mxu0 %v3760
  %3855 = vmatprep.subr.mxu0 %v3759
  %3856 = vmatpush1.msra.mxu0 %v3758
  %3857 = vmatprep.subr.mxu0 0.0
  %3858 = vmatpush2.msra.mxu0 0.0
  %3859 = vmatprep.subr.mxu0 0.0
  %3860 = vmatpush2.msra.mxu0 0.0
  %3861 = vmatprep.subr.mxu0 0.0
  %3862 = vmatpush2.msra.mxu0 0.0
  %3863 = vmatprep.subr.mxu0 0.0
  %3864 = vmatpush2.msra.mxu0 0.0
  %3865 = vmatprep.subr.mxu0 0.0
  %3866 = vmatpush2.msra.mxu0 0.0
  %3867 = vmatprep.subr.mxu0 0.0
  %3868 = vmatpush2.msra.mxu0 0.0
  %3869 = vmatprep.subr.mxu0 0.0
  %3870 = vmatpush2.msra.mxu0 0.0
  %3871 = vmatprep.subr.mxu0 0.0
  %3872 = vmatpush2.msra.mxu0 0.0
  %3873 = vmatprep.subr.mxu0 0.0
  %3874 = vmatpush2.msra.mxu0 0.0
  %3875 = vmatprep.subr.mxu0 0.0
  %3876 = vmatpush2.msra.mxu0 0.0
  %3877 = vmatprep.subr.mxu0 0.0
  %3878 = vmatpush2.msra.mxu0 0.0
  %3879 = vmatprep.subr.mxu0 0.0
  %3880 = vmatpush2.msra.mxu0 0.0
  %3881 = vmatprep.subr.mxu0 0.0
  %3882 = vmatpush2.msra.mxu0 0.0
  %3883 = vmatprep.subr.mxu0 0.0
  %3884 = vmatpush2.msra.mxu0 0.0
  %3885 = vmatprep.subr.mxu0 0.0
  %3886 = vmatpush2.msra.mxu0 0.0
  %3887 = vmatprep.subr.mxu0 0.0
  %3888 = vmatpush2.msra.mxu0 0.0
  %3889 = vmatprep.mubr.f32.mxu0 0.0
  %3890 = vmatmul.mubr.f32.gmra.mxu0 %v3823
  %v3891 = vpop.f32.mrf.mxu0
  %v3892 = vadd.f32 %v3795, %v3891
  %v3893 = vpop.f32.mrf.mxu0
  %v3894 = vadd.f32 %v3799, %v3893
  %3895 = vdwg.mxu0
  %v3896 = vld [vmem:[%s9] sm:$0xff]
  %v3897 = vld [vmem:[%s9 + $0x8] sm:$0xff]
  %v3898 = vmul.f32 %v3892, %v3896
  %v3899 = vmul.f32 %v3894, %v3897
  %v3900 = vmul.f32 %v3898, 2.0
  %v3901 = vmul.f32 %v3899, 2.0
  %v3902 = vmax.f32 %v3900, 0.0
  %v3903 = vmax.f32 %v3901, 0.0
  %v3904 = vld [vmem:[%s5] sm:$0xff]
  %v3905 = vld [vmem:[%s5 + $0x8] sm:$0xff]
  %v3906 = vld [vmem:[%s5 + $0x10] sm:$0xff]
  %v3907 = vld [vmem:[%s5 + $0x18] sm:$0xff]
  %v3908 = vld [vmem:[%s5 + $0x20] sm:$0xff]
  %v3909 = vld [vmem:[%s5 + $0x28] sm:$0xff]
  %v3910 = vld [vmem:[%s5 + $0x30] sm:$0xff]
  %v3911 = vld [vmem:[%s5 + $0x38] sm:$0xff]
  %v3912 = vld [vmem:[%s5 + $0x40] sm:$0xff]
  %v3913 = vld [vmem:[%s5 + $0x48] sm:$0xff]
  %v3914 = vld [vmem:[%s5 + $0x50] sm:$0xff]
  %v3915 = vld [vmem:[%s5 + $0x58] sm:$0xff]
  %v3916 = vld [vmem:[%s5 + $0x60] sm:$0xff]
  %v3917 = vld [vmem:[%s5 + $0x68] sm:$0xff]
  %v3918 = vld [vmem:[%s5 + $0x70] sm:$0xff]
  %v3919 = vld [vmem:[%s5 + $0x78] sm:$0xff]
  %v3920 = vld [vmem:[%s5 + $0x80] sm:$0xff]
  %v3921 = vld [vmem:[%s5 + $0x88] sm:$0xff]
  %v3922 = vld [vmem:[%s5 + $0x90] sm:$0xff]
  %v3923 = vld [vmem:[%s5 + $0x98] sm:$0xff]
  %v3924 = vld [vmem:[%s5 + $0xa0] sm:$0xff]
  %v3925 = vld [vmem:[%s5 + $0xa8] sm:$0xff]
  %v3926 = vld [vmem:[%s5 + $0xb0] sm:$0xff]
  %v3927 = vld [vmem:[%s5 + $0xb8] sm:$0xff]
  %v3928 = vld [vmem:[%s5 + $0xc0] sm:$0xff]
  %v3929 = vld [vmem:[%s5 + $0xc8] sm:$0xff]
  %v3930 = vld [vmem:[%s5 + $0xd0] sm:$0xff]
  %v3931 = vld [vmem:[%s5 + $0xd8] sm:$0xff]
  %v3932 = vld [vmem:[%s5 + $0xe0] sm:$0xff]
  %v3933 = vld [vmem:[%s5 + $0xe8] sm:$0xff]
  %v3934 = vld [vmem:[%s5 + $0xf0] sm:$0xff]
  %v3935 = vld [vmem:[%s5 + $0xf8] sm:$0xff]
  %v3936 = vld [vmem:[%s6] sm:$0x1]
  %v3938 = vlaneseq
  %v3939 = vshrl.u32 %v3938, 7
  %v3940 = vsub.s32 0, %v3939
  %v3941 = vrot.slane %v3936, %v3940
  %3943 = vmatprep.subr.mxu0 0.0
  %3944 = vmatpush1.msra.mxu0 %v3919
  %3945 = vmatprep.subr.mxu0 0.0
  %3946 = vmatpush1.msra.mxu0 %v3918
  %3947 = vmatprep.subr.mxu0 0.0
  %3948 = vmatpush1.msra.mxu0 %v3917
  %3949 = vmatprep.subr.mxu0 0.0
  %3950 = vmatpush1.msra.mxu0 %v3916
  %3951 = vmatprep.subr.mxu0 0.0
  %3952 = vmatpush1.msra.mxu0 %v3915
  %3953 = vmatprep.subr.mxu0 0.0
  %3954 = vmatpush1.msra.mxu0 %v3914
  %3955 = vmatprep.subr.mxu0 0.0
  %3956 = vmatpush1.msra.mxu0 %v3913
  %3957 = vmatprep.subr.mxu0 0.0
  %3958 = vmatpush1.msra.mxu0 %v3912
  %3959 = vmatprep.subr.mxu0 0.0
  %3960 = vmatpush1.msra.mxu0 %v3911
  %3961 = vmatprep.subr.mxu0 0.0
  %3962 = vmatpush1.msra.mxu0 %v3910
  %3963 = vmatprep.subr.mxu0 0.0
  %3964 = vmatpush1.msra.mxu0 %v3909
  %3965 = vmatprep.subr.mxu0 0.0
  %3966 = vmatpush1.msra.mxu0 %v3908
  %3967 = vmatprep.subr.mxu0 0.0
  %3968 = vmatpush1.msra.mxu0 %v3907
  %3969 = vmatprep.subr.mxu0 0.0
  %3970 = vmatpush1.msra.mxu0 %v3906
  %3971 = vmatprep.subr.mxu0 0.0
  %3972 = vmatpush1.msra.mxu0 %v3905
  %3973 = vmatprep.subr.mxu0 0.0
  %3974 = vmatpush1.msra.mxu0 %v3904
  %3975 = vmatprep.subr.mxu0 0.0
  %3976 = vmatpush2.msra.mxu0 %v3935
  %3977 = vmatprep.subr.mxu0 0.0
  %3978 = vmatpush2.msra.mxu0 %v3934
  %3979 = vmatprep.subr.mxu0 0.0
  %3980 = vmatpush2.msra.mxu0 %v3933
  %3981 = vmatprep.subr.mxu0 0.0
  %3982 = vmatpush2.msra.mxu0 %v3932
  %3983 = vmatprep.subr.mxu0 0.0
  %3984 = vmatpush2.msra.mxu0 %v3931
  %3985 = vmatprep.subr.mxu0 0.0
  %3986 = vmatpush2.msra.mxu0 %v3930
  %3987 = vmatprep.subr.mxu0 0.0
  %3988 = vmatpush2.msra.mxu0 %v3929
  %3989 = vmatprep.subr.mxu0 0.0
  %3990 = vmatpush2.msra.mxu0 %v3928
  %3991 = vmatprep.subr.mxu0 0.0
  %3992 = vmatpush2.msra.mxu0 %v3927
  %3993 = vmatprep.subr.mxu0 0.0
  %3994 = vmatpush2.msra.mxu0 %v3926
  %3995 = vmatprep.subr.mxu0 0.0
  %3996 = vmatpush2.msra.mxu0 %v3925
  %3997 = vmatprep.subr.mxu0 0.0
  %3998 = vmatpush2.msra.mxu0 %v3924
  %3999 = vmatprep.subr.mxu0 0.0
  %4000 = vmatpush2.msra.mxu0 %v3923
  %4001 = vmatprep.subr.mxu0 0.0
  %4002 = vmatpush2.msra.mxu0 %v3922
  %4003 = vmatprep.subr.mxu0 0.0
  %4004 = vmatpush2.msra.mxu0 %v3921
  %4005 = vmatprep.subr.mxu0 0.0
  %4006 = vmatpush2.msra.mxu0 %v3920
  %4007 = vmatprep.mubr.f32.mxu0 %v3903
  %4008 = vmatmul.mubr.f32.gmra.mxu0 %v3902
  %v4009 = vpop.f32.mrf.mxu0
  %v4010 = vadd.f32 %v3941, %v4009
  %v4011 = vpop.f32.mrf.mxu0
  %4012 = vdwg.mxu0
  %v4013 = vld [vmem:[%s10] sm:$0xff]
  %v4014 = vmul.f32 %v4010, %v4013
  %v4015 = vmul.f32 %v4014, 2.0
  %v4016 = vmax.f32 %v4015, 0.0
  %v4017 = vld [vmem:[%s7] sm:$0xff]
  %v4018 = vld [vmem:[%s7 + $0x8] sm:$0xff]
  %v4019 = vld [vmem:[%s7 + $0x10] sm:$0xff]
  %v4020 = vld [vmem:[%s7 + $0x18] sm:$0xff]
  %v4021 = vld [vmem:[%s7 + $0x20] sm:$0xff]
  %v4022 = vld [vmem:[%s7 + $0x28] sm:$0xff]
  %v4023 = vld [vmem:[%s7 + $0x30] sm:$0xff]
  %v4024 = vld [vmem:[%s7 + $0x38] sm:$0xff]
  %v4025 = vld [vmem:[%s7 + $0x40] sm:$0xff]
  %v4026 = vld [vmem:[%s7 + $0x48] sm:$0xff]
  %v4027 = vld [vmem:[%s7 + $0x50] sm:$0xff]
  %v4028 = vld [vmem:[%s7 + $0x58] sm:$0xff]
  %v4029 = vld [vmem:[%s7 + $0x60] sm:$0xff]
  %v4030 = vld [vmem:[%s7 + $0x68] sm:$0xff]
  %v4031 = vld [vmem:[%s7 + $0x70] sm:$0xff]
  %v4032 = vld [vmem:[%s7 + $0x78] sm:$0xff]
  %v4033 = vld [vmem:[%s8] sm:$0x1]
  %v4035 = vlaneseq
  %v4036 = vshrl.u32 %v4035, 7
  %v4037 = vsub.s32 0, %v4036
  %v4038 = vrot.slane %v4033, %v4037
  %4040 = vmatprep.subr.mxu0 0.0
  %4041 = vmatpush1.msra.mxu0 %v4032
  %4042 = vmatprep.subr.mxu0 0.0
  %4043 = vmatpush1.msra.mxu0 %v4031
  %4044 = vmatprep.subr.mxu0 0.0
  %4045 = vmatpush1.msra.mxu0 %v4030
  %4046 = vmatprep.subr.mxu0 0.0
  %4047 = vmatpush1.msra.mxu0 %v4029
  %4048 = vmatprep.subr.mxu0 0.0
  %4049 = vmatpush1.msra.mxu0 %v4028
  %4050 = vmatprep.subr.mxu0 0.0
  %4051 = vmatpush1.msra.mxu0 %v4027
  %4052 = vmatprep.subr.mxu0 0.0
  %4053 = vmatpush1.msra.mxu0 %v4026
  %4054 = vmatprep.subr.mxu0 0.0
  %4055 = vmatpush1.msra.mxu0 %v4025
  %4056 = vmatprep.subr.mxu0 0.0
  %4057 = vmatpush1.msra.mxu0 %v4024
  %4058 = vmatprep.subr.mxu0 0.0
  %4059 = vmatpush1.msra.mxu0 %v4023
  %4060 = vmatprep.subr.mxu0 0.0
  %4061 = vmatpush1.msra.mxu0 %v4022
  %4062 = vmatprep.subr.mxu0 0.0
  %4063 = vmatpush1.msra.mxu0 %v4021
  %4064 = vmatprep.subr.mxu0 0.0
  %4065 = vmatpush1.msra.mxu0 %v4020
  %4066 = vmatprep.subr.mxu0 0.0
  %4067 = vmatpush1.msra.mxu0 %v4019
  %4068 = vmatprep.subr.mxu0 0.0
  %4069 = vmatpush1.msra.mxu0 %v4018
  %4070 = vmatprep.subr.mxu0 0.0
  %4071 = vmatpush1.msra.mxu0 %v4017
  %4072 = vmatprep.subr.mxu0 0.0
  %4073 = vmatpush2.msra.mxu0 0.0
  %4074 = vmatprep.subr.mxu0 0.0
  %4075 = vmatpush2.msra.mxu0 0.0
  %4076 = vmatprep.subr.mxu0 0.0
  %4077 = vmatpush2.msra.mxu0 0.0
  %4078 = vmatprep.subr.mxu0 0.0
  %4079 = vmatpush2.msra.mxu0 0.0
  %4080 = vmatprep.subr.mxu0 0.0
  %4081 = vmatpush2.msra.mxu0 0.0
  %4082 = vmatprep.subr.mxu0 0.0
  %4083 = vmatpush2.msra.mxu0 0.0
  %4084 = vmatprep.subr.mxu0 0.0
  %4085 = vmatpush2.msra.mxu0 0.0
  %4086 = vmatprep.subr.mxu0 0.0
  %4087 = vmatpush2.msra.mxu0 0.0
  %4088 = vmatprep.subr.mxu0 0.0
  %4089 = vmatpush2.msra.mxu0 0.0
  %4090 = vmatprep.subr.mxu0 0.0
  %4091 = vmatpush2.msra.mxu0 0.0
  %4092 = vmatprep.subr.mxu0 0.0
  %4093 = vmatpush2.msra.mxu0 0.0
  %4094 = vmatprep.subr.mxu0 0.0
  %4095 = vmatpush2.msra.mxu0 0.0
  %4096 = vmatprep.subr.mxu0 0.0
  %4097 = vmatpush2.msra.mxu0 0.0
  %4098 = vmatprep.subr.mxu0 0.0
  %4099 = vmatpush2.msra.mxu0 0.0
  %4100 = vmatprep.subr.mxu0 0.0
  %4101 = vmatpush2.msra.mxu0 0.0
  %4102 = vmatprep.subr.mxu0 0.0
  %4103 = vmatpush2.msra.mxu0 0.0
  %4104 = vmatprep.mubr.f32.mxu0 0.0
  %4105 = vmatmul.mubr.f32.gmra.mxu0 %v4016
  %v4106 = vpop.f32.mrf.mxu0
  %v4107 = vadd.f32 %v4038, %v4106
  %v4108 = vpop.f32.mrf.mxu0
  %4109 = vdwg.mxu0
  %4110 = vst [vmem:[%s11] sm:$0xff] %v4107
  // Predicated region
  $region46: #{full_efficientnet_dropout_forward.3} parent=0 // pred_check
    _
  $region47: #{full_efficientnet_dropout_forward.3} parent=0 // pred_check_branch
    %4112 = sbr.rel (0) target = $region49
  $region48: #{full_efficientnet_dropout_forward.3} parent=0 // pred_region
    _
  $region49: #{full_efficientnet_dropout_forward.3} parent=0 // pred_fallthru
    _
  // Predicated region
  $region50: #{full_efficientnet_dropout_forward.3} parent=0 // pred_check
    _
  $region51: #{full_efficientnet_dropout_forward.3} parent=0 // pred_check_branch
    %4114 = sbr.rel (0) target = $region53
  $region52: #{full_efficientnet_dropout_forward.3} parent=0 // pred_region
    _
  $region53: #{full_efficientnet_dropout_forward.3} parent=0 // pred_fallthru
    _

</llo_original>
